<compile_context>
chip_gen: v7x
topology: tpu7x:2x2x1
jax: 0.10.0
libtpu: 0.0.40
codegen_flags: <defaults>
</compile_context>

<pallas_src>
import functools

import jax
import jax.numpy as jnp
from jax import lax
from jax.experimental import pallas as pl
from jax.experimental.pallas import tpu as pltpu

BN_EPS = 1e-5
LANE = 128
SUBLANE = 8
LEFT = 8          # sublane-aligned column where the real (interior) columns start
COL0 = LEFT - 1   # column of the (dh, dw=0) tap == the left zero-halo column


def _round_up(x, m):
    return ((x + m - 1) // m) * m


def _pick_row_tile(H, Wi):
    """Largest divisor of H such that the matmul M-dim (TH*Wi) stays moderate."""
    cap = max(SUBLANE, 2048 // max(Wi, 1))
    best = 1
    for d in range(1, H + 1):
        if H % d == 0 and d <= cap:
            best = d
    return best


def _conv3x3_acc(load_slab, w_ref, rows_out, width, cp):
    """3x3 conv as 3 accumulating MXU matmuls over kernel rows (dh).

    `load_slab(dw)` returns the dw-shifted slab of shape (rows_out + 2, width, cp)
    in the MXU compute dtype.  The three slabs are lane-concatenated once
    (copies the activation 3x instead of 9x for a full im2col) and each dh
    offset is a free major-dim slice of that concat.  `w_ref` is (3, 3*cp, cp)
    with rows ordered (dw, ci).
    """
    cat = jnp.concatenate([load_slab(dw) for dw in range(3)], axis=-1)
    acc = None
    for dh in range(3):
        tap = cat[dh:dh + rows_out].reshape(rows_out * width, 3 * cp)
        part = jnp.dot(tap, w_ref[dh], preferred_element_type=jnp.float32)
        acc = part if acc is None else acc + part
    return acc  # (rows_out * width, cp) float32


def basic_block_kernel(x_ref, w1_ref, b1_ref, w2_ref, b2_ref, o_ref, mid_ref, *, W):
    # x_ref  : (1, H+4, Wp, Cp) bf16  padded input (interior rows 2..H+1, cols LEFT..LEFT+W-1)
    # w*_ref : (3, 3*Cp, Cp)    bf16  per-dh weights, BN scale pre-folded, rows ordered (dw, ci)
    # b*_ref : (1, Cp)          f32   folded BN bias
    # o_ref  : (1, TH, Wi, Cp)  bf16  output row tile (Wi = W rounded up to 8)
    # mid_ref: (TH+2, Wp, Cp)   bf16  conv1 -> conv2 intermediate (interior cols LEFT..LEFT+Wi-1)
    TH, Wi, Cp = o_ref.shape[1], o_ref.shape[2], o_ref.shape[3]
    Hm = TH + 2                       # mid rows: output rows + one conv2 halo row per side
    w_scr = mid_ref.shape[1]

    t = pl.program_id(1)
    row0 = t * TH                     # first padded-input row of this tile's window

    # ---- conv1 (+ folded BN scale): 3 dw slabs -> lane concat -> 3 matmuls over dh ----
    def x_slab(dw):
        return x_ref[0, pl.ds(row0, TH + 4), pl.ds(COL0 + dw, Wi), :]

    y1 = _conv3x3_acc(x_slab, w1_ref, Hm, Wi, Cp)
    y1 = jnp.maximum(y1 + b1_ref[...], 0.0)                        # (Hm*Wi, Cp) f32

    # ---- stash conv1 output in the sublane-aligned scratch; rebuild the halo ring ----
    mid_ref[:, LEFT:LEFT + Wi, :] = y1.reshape(Hm, Wi, Cp).astype(mid_ref.dtype)
    zcols = jnp.zeros((Hm, SUBLANE, Cp), mid_ref.dtype)
    mid_ref[:, 0:SUBLANE, :] = zcols                               # covers left halo col COL0
    mid_ref[:, LEFT + Wi:LEFT + Wi + SUBLANE, :] = zcols           # covers right halo col
    if W < Wi:
        # conv2's zero-padding column for the last *real* output column lies inside
        # the width-padded interior; overwrite just that one column.
        mid_ref[:, LEFT + W:LEFT + W + 1, :] = jnp.zeros((Hm, 1, Cp), mid_ref.dtype)

    zrow = jnp.zeros((1, w_scr, Cp), mid_ref.dtype)

    @pl.when(t == 0)
    def _():                                                       # global mid row -1 is conv2 padding
        mid_ref[0:1, :, :] = zrow

    @pl.when(t == pl.num_programs(1) - 1)
    def _():                                                       # global mid row H is conv2 padding
        mid_ref[Hm - 1:Hm, :, :] = zrow

    # ---- conv2 (+ folded BN scale) + bias, identity residual, ReLU ----
    def m_slab(dw):
        return mid_ref[:, pl.ds(COL0 + dw, Wi), :]

    y2 = _conv3x3_acc(m_slab, w2_ref, TH, Wi, Cp) + b2_ref[...]    # (TH*Wi, Cp) f32
    # NOTE: residual is taken from the bf16-cast padded input (aligned load at col LEFT).
    res = x_ref[0, pl.ds(row0 + 2, TH), pl.ds(LEFT, Wi), :].astype(jnp.float32)
    out = jnp.maximum(y2 + res.reshape(TH * Wi, Cp), 0.0)
    o_ref[0] = out.reshape(TH, Wi, Cp).astype(o_ref.dtype)         # bf16 output store


def basic_block_forward(x_nchw, params, compute_dtype=jnp.bfloat16, row_tile=None):
    """BasicBlock forward (stride=1, downsample=None, eval-mode BatchNorm)."""
    N, C, H, W = x_nchw.shape
    Cout = params["w1"].shape[-1]
    assert C == Cout, "identity residual path requires in_channels == out_channels"

    Cp = _round_up(max(Cout, LANE), LANE)     # lane-dense channel dim
    Wi = _round_up(W, SUBLANE)                # compute width (mult of 8)
    Wp = Wi + 2 * LEFT                        # padded width: 8 left cols + Wi + 8 right cols

    if row_tile is None:
        row_tile = _pick_row_tile(H, Wi)
    TH = row_tile
    assert H % TH == 0, "row_tile must divide H"
    n_tiles = H // TH

    # NCHW -> NHWC; 2 zero rows top/bottom (conv1 halo + conv2-of-conv1 halo),
    # 8 zero cols left (sublane alignment, col 7 = conv halo), zeros to Wp on the
    # right, channels padded to Cp; cast to the MXU compute dtype.
    x = jnp.transpose(x_nchw, (0, 2, 3, 1)).astype(jnp.float32)
    xp = jnp.pad(x, ((0, 0), (2, 2), (LEFT, Wp - LEFT - W), (0, Cp - C))).astype(compute_dtype)

    def fold(w, g, beta, m, v):
        # Inference-mode BN folded into the conv: scale into weights, bias kept in f32.
        s = g / jnp.sqrt(v + BN_EPS)                                # (C,)
        b = beta - m * s                                            # (C,)
        w = w * s                                                   # scale output channels
        w = jnp.pad(w, ((0, 0), (0, 0), (0, Cp - C), (0, Cp - C)))  # (3, 3, Cp, Cp)
        w = w.reshape(3, 3 * Cp, Cp).astype(compute_dtype)          # per-dh, rows = (dw, ci)
        b = jnp.pad(b, (0, Cp - C)).reshape(1, Cp).astype(jnp.float32)
        return w, b

    w1, b1 = fold(params["w1"], params["g1"], params["beta1"], params["m1"], params["v1"])
    w2, b2 = fold(params["w2"], params["g2"], params["beta2"], params["m2"], params["v2"])

    # VMEM limit: ~75% of physical capacity, capped at 96 MB (v5e/v6e have 128 MiB);
    # 48 MB fallback is safe on v7x's 64 MiB per-TensorCore VMEM.
    vmem_limit = 48 * 1024 * 1024
    try:
        cap = int(pltpu.get_tpu_info().vmem_capacity_bytes)
        vmem_limit = max(vmem_limit, min(96 * 1024 * 1024, (cap * 3) // 4))
    except Exception:
        pass

    kernel = functools.partial(basic_block_kernel, W=W)

    out = pl.pallas_call(
        kernel,
        out_shape=jax.ShapeDtypeStruct((N, H, Wi, Cp), compute_dtype),
        grid_spec=pltpu.PrefetchScalarGridSpec(
            num_scalar_prefetch=0,
            grid=(N, n_tiles),   # batch x row tiles; every step fully independent
            in_specs=[
                # Full padded image per batch element (block index ignores t, so it
                # is DMA'd once per image per core); row tiles window it with pl.ds.
                # TODO(synk): a zero-copy overlapping-row BlockSpec via pl.Element on
                # the H axis would also pipeline the *input* DMA per row tile.
                pl.BlockSpec((1, H + 4, Wp, Cp), lambda b, t: (b, 0, 0, 0)),
                # TODO(synk): on v7x with Cp>=512, single-buffer these constant blocks
                # (pipeline_mode=pl.Buffered(1)) to free ~9 MB of VMEM.
                pl.BlockSpec((3, 3 * Cp, Cp), lambda b, t: (0, 0, 0)),
                pl.BlockSpec((1, Cp), lambda b, t: (0, 0)),
                pl.BlockSpec((3, 3 * Cp, Cp), lambda b, t: (0, 0, 0)),
                pl.BlockSpec((1, Cp), lambda b, t: (0, 0)),
            ],
            out_specs=pl.BlockSpec((1, TH, Wi, Cp), lambda b, t: (b, t, 0, 0)),
            scratch_shapes=[pltpu.VMEM((TH + 2, Wp, Cp), compute_dtype)],
        ),
        compiler_params=pltpu.CompilerParams(
            dimension_semantics=("parallel", "parallel"),
            vmem_limit_bytes=vmem_limit,
        ),
    )(xp, w1, b1, w2, b2)

    out = out[:, :, :W, :C].astype(jnp.float32)   # drop width/channel padding, f32 once
    return jnp.transpose(out, (0, 3, 1, 2))       # back to NCHW


def basic_block_reference(x_nchw, params):
    """Plain-JAX f32 reference (inference-mode BatchNorm), for verification."""
    x = jnp.transpose(x_nchw, (0, 2, 3, 1)).astype(jnp.float32)
    dn = ("NHWC", "HWIO", "NHWC")
    y = lax.conv_general_dilated(x, params["w1"], (1, 1), "SAME", dimension_numbers=dn)
    y = (y - params["m1"]) / jnp.sqrt(params["v1"] + BN_EPS) * params["g1"] + params["beta1"]
    y = jnp.maximum(y, 0.0)
    y = lax.conv_general_dilated(y, params["w2"], (1, 1), "SAME", dimension_numbers=dn)
    y = (y - params["m2"]) / jnp.sqrt(params["v2"] + BN_EPS) * params["g2"] + params["beta2"]
    y = jnp.maximum(y + x, 0.0)
    return jnp.transpose(y, (0, 3, 1, 2))


def _make_params(key, C):
    ks = jax.random.split(key, 7)
    # TODO(synk): PyTorch BatchNorm2d in training mode uses batch statistics and
    # updates running stats; this kernel implements eval-mode BN folded into the conv.
    return {
        "w1": jax.random.normal(ks[0], (3, 3, C, C), jnp.float32) * 0.1,
        "g1": 1.0 + 0.1 * jax.random.normal(ks[1], (C,), jnp.float32),
        "beta1": 0.1 * jax.random.normal(ks[2], (C,), jnp.float32),
        "m1": 0.05 * jax.random.normal(ks[3], (C,), jnp.float32),
        "v1": 1.0 + 0.1 * jnp.abs(jax.random.normal(ks[4], (C,), jnp.float32)),
        "w2": jax.random.normal(ks[5], (3, 3, C, C), jnp.float32) * 0.1,
        "g2": 1.0 + 0.05 * jax.random.normal(ks[6], (C,), jnp.float32),
        "beta2": jnp.linspace(-0.1, 0.1, C, dtype=jnp.float32),
        "m2": jnp.linspace(-0.05, 0.05, C, dtype=jnp.float32),
        "v2": jnp.linspace(0.9, 1.1, C, dtype=jnp.float32),
    }


if __name__ == "__main__":
    root = jax.random.PRNGKey(0)
    k_x1, k_p1, k_x2, k_p2 = jax.random.split(root, 4)

    # Case 1: W multiple of 8, two row tiles (exercises the tile-boundary halo logic).
    N, C, H, W = 2, 4, 16, 16
    x1 = jax.random.normal(k_x1, (N, C, H, W), jnp.float32)
    p1 = _make_params(k_p1, C)
    out1 = jax.block_until_ready(basic_block_forward(x1, p1, row_tile=8))
    ref1 = basic_block_reference(x1, p1)
    assert out1.shape == (N, C, H, W), out1.shape
    err1 = float(jnp.max(jnp.abs(out1 - ref1)))
    assert jnp.allclose(out1, ref1, atol=7e-2, rtol=7e-2), err1

    # Case 2: W not a multiple of 8 (width padding path) and an interior row tile.
    N2, C2, H2, W2 = 1, 4, 12, 12
    x2 = jax.random.normal(k_x2, (N2, C2, H2, W2), jnp.float32)
    p2 = _make_params(k_p2, C2)
    out2 = jax.block_until_ready(basic_block_forward(x2, p2, row_tile=4))
    ref2 = basic_block_reference(x2, p2)
    assert out2.shape == (N2, C2, H2, W2), out2.shape
    err2 = float(jnp.max(jnp.abs(out2 - ref2)))
    assert jnp.allclose(out2, ref2, atol=7e-2, rtol=7e-2), err2

    print("KERNEL_OK")
</pallas_src>

<mosaic_0001>
module attributes {stable_mosaic.version = 11 : i64} {
  func.func @basic_block_kernel(%arg0: i32, %arg1: i32, %arg2: memref<1x20x32x128xbf16, #tpu.memory_space<vmem>>, %arg3: memref<3x384x128xbf16, #tpu.memory_space<vmem>>, %arg4: memref<1x128xf32, #tpu.memory_space<vmem>>, %arg5: memref<3x384x128xbf16, #tpu.memory_space<vmem>>, %arg6: memref<1x128xf32, #tpu.memory_space<vmem>>, %arg7: memref<1x8x16x128xbf16, #tpu.memory_space<vmem>>, %arg8: memref<10x32x128xbf16, #tpu.memory_space<vmem>>) attributes {dimension_semantics = [#tpu.dimension_semantics<parallel>, #tpu.dimension_semantics<parallel>], iteration_bounds = array<i64: 2, 2>, scalar_prefetch = 0 : i64, scratch_operands = 1 : i64, tpu.core_type = #tpu.core_type<tc>, window_params = [{transform_indices = @transform_0, window_bounds = array<i64: 1, 20, 32, 128>}, {pipeline_mode = #tpu.pipeline_mode<synchronous>, transform_indices = @transform_1, window_bounds = array<i64: 3, 384, 128>}, {pipeline_mode = #tpu.pipeline_mode<synchronous>, transform_indices = @transform_2, window_bounds = array<i64: 1, 128>}, {pipeline_mode = #tpu.pipeline_mode<synchronous>, transform_indices = @transform_3, window_bounds = array<i64: 3, 384, 128>}, {pipeline_mode = #tpu.pipeline_mode<synchronous>, transform_indices = @transform_4, window_bounds = array<i64: 1, 128>}, {transform_indices = @transform_5, window_bounds = array<i64: 1, 8, 16, 128>}]} {
    %c8_i32 = arith.constant 8 : i32
    %0 = arith.muli %arg1, %c8_i32 : i32
    %c0 = arith.constant 0 : index
    %1 = arith.index_cast %0 : i32 to index
    %c7 = arith.constant 7 : index
    %c0_0 = arith.constant 0 : index
    %2 = vector.load %arg2[%c0, %1, %c7, %c0_0] : memref<1x20x32x128xbf16, #tpu.memory_space<vmem>>, vector<1x12x16x128xbf16>
    %3 = vector.shape_cast %2 : vector<1x12x16x128xbf16> to vector<12x16x128xbf16>
    %c0_1 = arith.constant 0 : index
    %4 = arith.index_cast %0 : i32 to index
    %c8 = arith.constant 8 : index
    %c0_2 = arith.constant 0 : index
    %5 = vector.load %arg2[%c0_1, %4, %c8, %c0_2] : memref<1x20x32x128xbf16, #tpu.memory_space<vmem>>, vector<1x12x16x128xbf16>
    %6 = vector.shape_cast %5 : vector<1x12x16x128xbf16> to vector<12x16x128xbf16>
    %c0_3 = arith.constant 0 : index
    %7 = arith.index_cast %0 : i32 to index
    %c9 = arith.constant 9 : index
    %c0_4 = arith.constant 0 : index
    %8 = vector.load %arg2[%c0_3, %7, %c9, %c0_4] : memref<1x20x32x128xbf16, #tpu.memory_space<vmem>>, vector<1x12x16x128xbf16>
    %9 = vector.shape_cast %8 : vector<1x12x16x128xbf16> to vector<12x16x128xbf16>
    %10 = tpu.concatenate %3, %6, %9 in 2 : vector<12x16x128xbf16>, vector<12x16x128xbf16>, vector<12x16x128xbf16> -> vector<12x16x384xbf16>
    %11 = vector.extract_strided_slice %10 {offsets = [0, 0, 0], sizes = [10, 16, 384], strides = [1, 1, 1]} : vector<12x16x384xbf16> to vector<10x16x384xbf16>
    %12 = vector.shape_cast %11 : vector<10x16x384xbf16> to vector<160x384xbf16>
    %c0_5 = arith.constant 0 : index
    %c0_6 = arith.constant 0 : index
    %c0_7 = arith.constant 0 : index
    %13 = vector.load %arg3[%c0_5, %c0_6, %c0_7] : memref<3x384x128xbf16, #tpu.memory_space<vmem>>, vector<1x384x128xbf16>
    %14 = vector.shape_cast %13 : vector<1x384x128xbf16> to vector<384x128xbf16>
    %cst = arith.constant dense<0.000000e+00> : vector<160x128xf32>
    %15 = tpu.matmul %12, %14, %cst {dimension_numbers = #tpu.dot_dimension_numbers<[1], [0], [0], [1], [0, 0, 1, 1], [], []>} : vector<160x384xbf16>, vector<384x128xbf16>, vector<160x128xf32> -> vector<160x128xf32>
    %16 = vector.extract_strided_slice %10 {offsets = [1, 0, 0], sizes = [10, 16, 384], strides = [1, 1, 1]} : vector<12x16x384xbf16> to vector<10x16x384xbf16>
    %17 = vector.shape_cast %16 : vector<10x16x384xbf16> to vector<160x384xbf16>
    %c1 = arith.constant 1 : index
    %c0_8 = arith.constant 0 : index
    %c0_9 = arith.constant 0 : index
    %18 = vector.load %arg3[%c1, %c0_8, %c0_9] : memref<3x384x128xbf16, #tpu.memory_space<vmem>>, vector<1x384x128xbf16>
    %19 = vector.shape_cast %18 : vector<1x384x128xbf16> to vector<384x128xbf16>
    %cst_10 = arith.constant dense<0.000000e+00> : vector<160x128xf32>
    %20 = tpu.matmul %17, %19, %cst_10 {dimension_numbers = #tpu.dot_dimension_numbers<[1], [0], [0], [1], [0, 0, 1, 1], [], []>} : vector<160x384xbf16>, vector<384x128xbf16>, vector<160x128xf32> -> vector<160x128xf32>
    %21 = arith.addf %15, %20 : vector<160x128xf32>
    %22 = vector.extract_strided_slice %10 {offsets = [2, 0, 0], sizes = [10, 16, 384], strides = [1, 1, 1]} : vector<12x16x384xbf16> to vector<10x16x384xbf16>
    %23 = vector.shape_cast %22 : vector<10x16x384xbf16> to vector<160x384xbf16>
    %c2 = arith.constant 2 : index
    %c0_11 = arith.constant 0 : index
    %c0_12 = arith.constant 0 : index
    %24 = vector.load %arg3[%c2, %c0_11, %c0_12] : memref<3x384x128xbf16, #tpu.memory_space<vmem>>, vector<1x384x128xbf16>
    %25 = vector.shape_cast %24 : vector<1x384x128xbf16> to vector<384x128xbf16>
    %cst_13 = arith.constant dense<0.000000e+00> : vector<160x128xf32>
    %26 = tpu.matmul %23, %25, %cst_13 {dimension_numbers = #tpu.dot_dimension_numbers<[1], [0], [0], [1], [0, 0, 1, 1], [], []>} : vector<160x384xbf16>, vector<384x128xbf16>, vector<160x128xf32> -> vector<160x128xf32>
    %27 = arith.addf %21, %26 : vector<160x128xf32>
    %c0_14 = arith.constant 0 : index
    %c0_15 = arith.constant 0 : index
    %28 = vector.load %arg4[%c0_14, %c0_15] : memref<1x128xf32, #tpu.memory_space<vmem>>, vector<1x128xf32>
    %29 = vector.broadcast %28 : vector<1x128xf32> to vector<160x128xf32>
    %30 = arith.addf %27, %29 : vector<160x128xf32>
    %cst_16 = arith.constant 0.000000e+00 : f32
    %31 = vector.broadcast %cst_16 : f32 to vector<160x128xf32>
    %32 = arith.maximumf %30, %31 : vector<160x128xf32>
    %33 = vector.shape_cast %32 : vector<160x128xf32> to vector<10x16x128xf32>
    %34 = arith.truncf %33 : vector<10x16x128xf32> to vector<10x16x128xbf16>
    %c0_17 = arith.constant 0 : index
    %c8_18 = arith.constant 8 : index
    %c0_19 = arith.constant 0 : index
    %35 = vector.load %arg8[%c0_17, %c8_18, %c0_19] : memref<10x32x128xbf16, #tpu.memory_space<vmem>>, vector<10x16x128xbf16>
    tpu.vector_store %arg8[%c0_17, %c8_18, %c0_19], %34 {strides = array<i32>} : memref<10x32x128xbf16, #tpu.memory_space<vmem>>, vector<10x16x128xbf16>,
    %cst_20 = arith.constant 0.000000e+00 : bf16
    %36 = vector.broadcast %cst_20 : bf16 to vector<10x8x128xbf16>
    %c0_21 = arith.constant 0 : index
    %c0_22 = arith.constant 0 : index
    %c0_23 = arith.constant 0 : index
    %37 = vector.load %arg8[%c0_21, %c0_22, %c0_23] : memref<10x32x128xbf16, #tpu.memory_space<vmem>>, vector<10x8x128xbf16>
    tpu.vector_store %arg8[%c0_21, %c0_22, %c0_23], %36 {strides = array<i32>} : memref<10x32x128xbf16, #tpu.memory_space<vmem>>, vector<10x8x128xbf16>,
    %c0_24 = arith.constant 0 : index
    %c24 = arith.constant 24 : index
    %c0_25 = arith.constant 0 : index
    %38 = vector.load %arg8[%c0_24, %c24, %c0_25] : memref<10x32x128xbf16, #tpu.memory_space<vmem>>, vector<10x8x128xbf16>
    tpu.vector_store %arg8[%c0_24, %c24, %c0_25], %36 {strides = array<i32>} : memref<10x32x128xbf16, #tpu.memory_space<vmem>>, vector<10x8x128xbf16>,
    %cst_26 = arith.constant 0.000000e+00 : bf16
    %39 = vector.broadcast %cst_26 : bf16 to vector<1x32x128xbf16>
    %c0_i32 = arith.constant 0 : i32
    %40 = arith.cmpi eq, %arg1, %c0_i32 : i32
    %41 = arith.extui %40 : i1 to i32
    %c0_i32_27 = arith.constant 0 : i32
    %42 = arith.cmpi ne, %41, %c0_i32_27 : i32
    scf.if %42 {
      %c0_60 = arith.constant 0 : index
      %c0_61 = arith.constant 0 : index
      %c0_62 = arith.constant 0 : index
      %84 = vector.load %arg8[%c0_60, %c0_61, %c0_62] : memref<10x32x128xbf16, #tpu.memory_space<vmem>>, vector<1x32x128xbf16>
      tpu.vector_store %arg8[%c0_60, %c0_61, %c0_62], %39 {strides = array<i32>} : memref<10x32x128xbf16, #tpu.memory_space<vmem>>, vector<1x32x128xbf16>,
    } else {
    }
    %c1_i32 = arith.constant 1 : i32
    %43 = arith.cmpi eq, %arg1, %c1_i32 : i32
    %44 = arith.extui %43 : i1 to i32
    %c0_i32_28 = arith.constant 0 : i32
    %45 = arith.cmpi ne, %44, %c0_i32_28 : i32
    scf.if %45 {
      %c9_60 = arith.constant 9 : index
      %c0_61 = arith.constant 0 : index
      %c0_62 = arith.constant 0 : index
      %84 = vector.load %arg8[%c9_60, %c0_61, %c0_62] : memref<10x32x128xbf16, #tpu.memory_space<vmem>>, vector<1x32x128xbf16>
      tpu.vector_store %arg8[%c9_60, %c0_61, %c0_62], %39 {strides = array<i32>} : memref<10x32x128xbf16, #tpu.memory_space<vmem>>, vector<1x32x128xbf16>,
    } else {
    }
    %c0_29 = arith.constant 0 : index
    %c7_30 = arith.constant 7 : index
    %c0_31 = arith.constant 0 : index
    %46 = vector.load %arg8[%c0_29, %c7_30, %c0_31] : memref<10x32x128xbf16, #tpu.memory_space<vmem>>, vector<10x16x128xbf16>
    %c0_32 = arith.constant 0 : index
    %c8_33 = arith.constant 8 : index
    %c0_34 = arith.constant 0 : index
    %47 = vector.load %arg8[%c0_32, %c8_33, %c0_34] : memref<10x32x128xbf16, #tpu.memory_space<vmem>>, vector<10x16x128xbf16>
    %c0_35 = arith.constant 0 : index
    %c9_36 = arith.constant 9 : index
    %c0_37 = arith.constant 0 : index
    %48 = vector.load %arg8[%c0_35, %c9_36, %c0_37] : memref<10x32x128xbf16, #tpu.memory_space<vmem>>, vector<10x16x128xbf16>
    %49 = tpu.concatenate %46, %47, %48 in 2 : vector<10x16x128xbf16>, vector<10x16x128xbf16>, vector<10x16x128xbf16> -> vector<10x16x384xbf16>
    %50 = vector.extract_strided_slice %49 {offsets = [0, 0, 0], sizes = [8, 16, 384], strides = [1, 1, 1]} : vector<10x16x384xbf16> to vector<8x16x384xbf16>
    %51 = vector.shape_cast %50 : vector<8x16x384xbf16> to vector<128x384xbf16>
    %c0_38 = arith.constant 0 : index
    %c0_39 = arith.constant 0 : index
    %c0_40 = arith.constant 0 : index
    %52 = vector.load %arg5[%c0_38, %c0_39, %c0_40] : memref<3x384x128xbf16, #tpu.memory_space<vmem>>, vector<1x384x128xbf16>
    %53 = vector.shape_cast %52 : vector<1x384x128xbf16> to vector<384x128xbf16>
    %cst_41 = arith.constant dense<0.000000e+00> : vector<128x128xf32>
    %54 = tpu.matmul %51, %53, %cst_41 {dimension_numbers = #tpu.dot_dimension_numbers<[1], [0], [0], [1], [0, 0, 1, 1], [], []>} : vector<128x384xbf16>, vector<384x128xbf16>, vector<128x128xf32> -> vector<128x128xf32>
    %55 = vector.extract_strided_slice %49 {offsets = [1, 0, 0], sizes = [8, 16, 384], strides = [1, 1, 1]} : vector<10x16x384xbf16> to vector<8x16x384xbf16>
    %56 = vector.shape_cast %55 : vector<8x16x384xbf16> to vector<128x384xbf16>
    %c1_42 = arith.constant 1 : index
    %c0_43 = arith.constant 0 : index
    %c0_44 = arith.constant 0 : index
    %57 = vector.load %arg5[%c1_42, %c0_43, %c0_44] : memref<3x384x128xbf16, #tpu.memory_space<vmem>>, vector<1x384x128xbf16>
    %58 = vector.shape_cast %57 : vector<1x384x128xbf16> to vector<384x128xbf16>
    %cst_45 = arith.constant dense<0.000000e+00> : vector<128x128xf32>
    %59 = tpu.matmul %56, %58, %cst_45 {dimension_numbers = #tpu.dot_dimension_numbers<[1], [0], [0], [1], [0, 0, 1, 1], [], []>} : vector<128x384xbf16>, vector<384x128xbf16>, vector<128x128xf32> -> vector<128x128xf32>
    %60 = arith.addf %54, %59 : vector<128x128xf32>
    %61 = vector.extract_strided_slice %49 {offsets = [2, 0, 0], sizes = [8, 16, 384], strides = [1, 1, 1]} : vector<10x16x384xbf16> to vector<8x16x384xbf16>
    %62 = vector.shape_cast %61 : vector<8x16x384xbf16> to vector<128x384xbf16>
    %c2_46 = arith.constant 2 : index
    %c0_47 = arith.constant 0 : index
    %c0_48 = arith.constant 0 : index
    %63 = vector.load %arg5[%c2_46, %c0_47, %c0_48] : memref<3x384x128xbf16, #tpu.memory_space<vmem>>, vector<1x384x128xbf16>
    %64 = vector.shape_cast %63 : vector<1x384x128xbf16> to vector<384x128xbf16>
    %cst_49 = arith.constant dense<0.000000e+00> : vector<128x128xf32>
    %65 = tpu.matmul %62, %64, %cst_49 {dimension_numbers = #tpu.dot_dimension_numbers<[1], [0], [0], [1], [0, 0, 1, 1], [], []>} : vector<128x384xbf16>, vector<384x128xbf16>, vector<128x128xf32> -> vector<128x128xf32>
    %66 = arith.addf %60, %65 : vector<128x128xf32>
    %c0_50 = arith.constant 0 : index
    %c0_51 = arith.constant 0 : index
    %67 = vector.load %arg6[%c0_50, %c0_51] : memref<1x128xf32, #tpu.memory_space<vmem>>, vector<1x128xf32>
    %68 = vector.broadcast %67 : vector<1x128xf32> to vector<128x128xf32>
    %69 = arith.addf %66, %68 : vector<128x128xf32>
    %c2_i32 = arith.constant 2 : i32
    %70 = arith.addi %0, %c2_i32 : i32
    %c0_52 = arith.constant 0 : index
    %71 = arith.index_cast %70 : i32 to index
    %c8_53 = arith.constant 8 : index
    %c0_54 = arith.constant 0 : index
    %72 = vector.load %arg2[%c0_52, %71, %c8_53, %c0_54] : memref<1x20x32x128xbf16, #tpu.memory_space<vmem>>, vector<1x8x16x128xbf16>
    %73 = vector.shape_cast %72 : vector<1x8x16x128xbf16> to vector<8x16x128xbf16>
    %74 = arith.extf %73 : vector<8x16x128xbf16> to vector<8x16x128xf32>
    %75 = vector.shape_cast %74 : vector<8x16x128xf32> to vector<128x128xf32>
    %76 = arith.addf %69, %75 : vector<128x128xf32>
    %cst_55 = arith.constant 0.000000e+00 : f32
    %77 = vector.broadcast %cst_55 : f32 to vector<128x128xf32>
    %78 = arith.maximumf %76, %77 : vector<128x128xf32>
    %79 = vector.shape_cast %78 : vector<128x128xf32> to vector<8x16x128xf32>
    %80 = arith.truncf %79 : vector<8x16x128xf32> to vector<8x16x128xbf16>
    %c0_56 = arith.constant 0 : index
    %c0_57 = arith.constant 0 : index
    %c0_58 = arith.constant 0 : index
    %c0_59 = arith.constant 0 : index
    %81 = vector.load %arg7[%c0_56, %c0_57, %c0_58, %c0_59] : memref<1x8x16x128xbf16, #tpu.memory_space<vmem>>, vector<1x8x16x128xbf16>
    %82 = vector.shape_cast %81 : vector<1x8x16x128xbf16> to vector<8x16x128xbf16>
    %83 = vector.shape_cast %80 : vector<8x16x128xbf16> to vector<1x8x16x128xbf16>
    tpu.vector_store %arg7[%c0_56, %c0_57, %c0_58, %c0_59], %83 {strides = array<i32>} : memref<1x8x16x128xbf16, #tpu.memory_space<vmem>>, vector<1x8x16x128xbf16>,
    return
  }
  func.func @transform_0(%arg0: i32, %arg1: i32) -> (i32, i32, i32, i32) {
    %c0_i32 = arith.constant 0 : i32
    %c0_i32_0 = arith.constant 0 : i32
    %c0_i32_1 = arith.constant 0 : i32
    %c0_i32_2 = arith.constant 0 : i32
    return %arg0, %c0_i32, %c0_i32_0, %c0_i32_1 : i32, i32, i32, i32
  }
  func.func @transform_1(%arg0: i32, %arg1: i32) -> (i32, i32, i32) {
    %c0_i32 = arith.constant 0 : i32
    %c0_i32_0 = arith.constant 0 : i32
    %c0_i32_1 = arith.constant 0 : i32
    %c0_i32_2 = arith.constant 0 : i32
    return %c0_i32, %c0_i32_0, %c0_i32_1 : i32, i32, i32
  }
  func.func @transform_2(%arg0: i32, %arg1: i32) -> (i32, i32) {
    %c0_i32 = arith.constant 0 : i32
    %c0_i32_0 = arith.constant 0 : i32
    %c0_i32_1 = arith.constant 0 : i32
    return %c0_i32, %c0_i32_0 : i32, i32
  }
  func.func @transform_3(%arg0: i32, %arg1: i32) -> (i32, i32, i32) {
    %c0_i32 = arith.constant 0 : i32
    %c0_i32_0 = arith.constant 0 : i32
    %c0_i32_1 = arith.constant 0 : i32
    %c0_i32_2 = arith.constant 0 : i32
    return %c0_i32, %c0_i32_0, %c0_i32_1 : i32, i32, i32
  }
  func.func @transform_4(%arg0: i32, %arg1: i32) -> (i32, i32) {
    %c0_i32 = arith.constant 0 : i32
    %c0_i32_0 = arith.constant 0 : i32
    %c0_i32_1 = arith.constant 0 : i32
    return %c0_i32, %c0_i32_0 : i32, i32
  }
  func.func @transform_5(%arg0: i32, %arg1: i32) -> (i32, i32, i32, i32) {
    %c0_i32 = arith.constant 0 : i32
    %c0_i32_0 = arith.constant 0 : i32
    %c0_i32_1 = arith.constant 0 : i32
    return %arg0, %arg1, %c0_i32, %c0_i32_0 : i32, i32, i32, i32
  }
}

</mosaic_0001>

<llo_original>
// kernel: tpu_custom_call.1
$region0: #{tpu_custom_call.1}
  #allocation0 [shape = 'u32[]', space=smem, size = 0x4, offset = 0x4, fixed_abs, tag = 'smem constant byte address 0x4 - core index']
  #allocation1 [shape = 'u32[144,128]{1,0:T(1,128)}', space=vmem, size = 0x12000, scoped, tag = 'internal scratch']
  #allocation2 [shape = 'bf16[10,32,128]{2,1,0:T(16,128)(2,1)}', space=vmem, size = 0x14000, scoped, tag = 'scratch operand']
  %s0 = inlined_call_operand.hbm [shape: bf16[2,20,32,128], index: 0, kind: input, shape index: {}]
  %s1 = inlined_call_operand.hbm [shape: bf16[3,384,128], index: 1, kind: input, shape index: {}]
  %s2 = inlined_call_operand.vmem [shape: f32[1,128], index: 2, kind: input, shape index: {}]
  %s3 = inlined_call_operand.hbm [shape: bf16[3,384,128], index: 3, kind: input, shape index: {}]
  %s4 = inlined_call_operand.vmem [shape: f32[1,128], index: 4, kind: input, shape index: {}]
  %s5 = inlined_call_operand.hbm [shape: bf16[2,16,16,128], index: 5, kind: output, shape index: {}]
  %s6 = sld [smem:[#allocation0]]
  $region73: #{tpu_custom_call.1} parent=0
    _
  %s8 = ssub.s32 1, %s6
  %s9 = scalar_select 0, %s8, %s6
  $region1: #{tpu_custom_call.1} parent=0
    #allocation3 [shape = 'u8[327680]{0}', space=vmem, size = 0x50000, scoped, tag = 'input window, operand 0']
    #allocation4 [shape = 's32[2]{0}', space=sflag, size = 0x8, scoped, tag = 'scoped memory for tpu_custom_call.1']
    #allocation5 [shape = 's32[2]{0}', space=sflag, size = 0x8, scoped, tag = 'scoped memory for tpu_custom_call.1']
    #allocation6 [shape = 'u8[294912]{0}', space=vmem, size = 0x48000, scoped, tag = 'input window, operand 1, single buffered']
    #allocation7 [shape = 's32[1]{0}', space=sflag, size = 0x4, scoped, tag = 'scoped memory for tpu_custom_call.1']
    #allocation8 [shape = 'u8[294912]{0}', space=vmem, size = 0x48000, scoped, tag = 'input window, operand 3, single buffered']
    #allocation9 [shape = 'u8[65536]{0}', space=vmem, size = 0x10000, scoped, tag = 'output window, operand 0']
    %10 = vsyncpa [#allocation4], 0
    %s11 = scalar_lea.sflag [#allocation4], 1
    %12 = vsyncpa %s11, 0
    %13 = vsyncpa [#allocation7], 0
    %14 = vsyncpa [#allocation5], 0
    %s15 = scalar_lea.sflag [#allocation5], 1
    %16 = vsyncpa %s15, 0
    loop: start=0, step=1, limit=6
    $region2: #{tpu_custom_call.1} parent=1 // loop_pre_header
      _
    $region3: #{tpu_custom_call.1} parent=1 // loop_header
      %s18 = sphi 0, %s22
      %p19 = scmp.ge.s32.totalorder %s18, 6
      %s25 = sphi 0, %s37
      %s26 = sphi 0, %s33
      %s27 = sphi 0, %s25
      %s28 = sphi 0, %s26
      %s29 = sphi 0, %s27
      %s30 = sphi 0, %s28
      %s40 = sphi 0, %s42
      %s43 = sphi 0, %s40
      %s44 = sphi 0, %s43
      %s60 = sphi 0, %s44
      %s64 = sphi 0, %s64
      %s66 = sphi 0, %s64
      %s67 = sphi 0, %s66
      %s81 = sphi 0, %s67
      %s85 = sphi 0, %s85
      %s87 = sphi 0, %s85
      %s88 = sphi 0, %s87
      %s102 = sphi 0, %s88
      %s106 = sphi 0, %s106
      %s108 = sphi 0, %s106
      %s109 = sphi 0, %s108
      %s123 = sphi 0, %s109
      %s127 = sphi 0, %s127
      %s129 = sphi 0, %s127
      %s130 = sphi 0, %s129
      %s144 = sphi 0, %s130
      %s152 = sphi 0, %s154
      %s155 = sphi 0, %s152
      %s156 = sphi 0, %s155
      %s172 = sphi 0, %s156
    $region4: #{tpu_custom_call.1} parent=1 // loop_header_branch
      %21 = sbr.rel (%p19) target = $region8
    $region5: #{tpu_custom_call.1} parent=1 // loop_body
      %s23 = ssub.s32 %s18, 1
      %s24 = ssub.s32 %s18, 2
      %s31 = sadd.s32 1, %s26
      %p32 = scmp.ge.s32.totalorder %s31, 2
      %s33 = scalar_select %p32, 0, %s31
      %s34 = sadd.s32 1, %s25
      %s35 = scalar_select %p32, %s34, %s25
      %p36 = scmp.ge.s32.totalorder %s35, 2
      %s37 = scalar_select %p36, 0, %s35
      %s38 = ssub.s32 %s25, %s37
      %p39 = scmp.eq.s32.totalorder %s38, 0
      %s41 = sadd.s32 %s40, 1
      %s42 = scalar_select %p39, %s40, %s41
      %p45 = pneg %p39
      %p46 = scmp.eq.s32.totalorder %s18, 3
      %p47 = por %p45, %p46
      %p48 = scmp.ne.s32.totalorder %s40, %s43
      %p49 = scmp.eq.s32.totalorder %s18, 0
      %p50 = por %p48, %p49
      %p51 = scmp.ne.s32.totalorder %s40, %s43
      %p52 = scmp.eq.s32.totalorder %s23, 3
      %p53 = por %p51, %p52
      %p54 = scmp.ne.s32.totalorder %s43, %s44
      %p55 = scmp.eq.s32.totalorder %s23, 0
      %p56 = por %p54, %p55
      %p57 = scmp.ne.s32.totalorder %s43, %s44
      %p58 = scmp.eq.s32.totalorder %s24, 3
      %p59 = por %p57, %p58
      %p61 = scmp.ne.s32.totalorder %s44, %s60
      %p62 = scmp.eq.s32.totalorder %s24, 0
      %p63 = por %p61, %p62
      %s65 = sadd.s32 %s64, 1
      %p68 = scmp.eq.s32.totalorder %s18, 3
      %p69 = scmp.ne.s32.totalorder %s64, %s66
      %p70 = scmp.eq.s32.totalorder %s18, 0
      %p71 = por %p69, %p70
      %p72 = scmp.ne.s32.totalorder %s64, %s66
      %p73 = scmp.eq.s32.totalorder %s23, 3
      %p74 = por %p72, %p73
      %p75 = scmp.ne.s32.totalorder %s66, %s67
      %p76 = scmp.eq.s32.totalorder %s23, 0
      %p77 = por %p75, %p76
      %p78 = scmp.ne.s32.totalorder %s66, %s67
      %p79 = scmp.eq.s32.totalorder %s24, 3
      %p80 = por %p78, %p79
      %p82 = scmp.ne.s32.totalorder %s67, %s81
      %p83 = scmp.eq.s32.totalorder %s24, 0
      %p84 = por %p82, %p83
      %s86 = sadd.s32 %s85, 1
      %p89 = scmp.eq.s32.totalorder %s18, 3
      %p90 = scmp.ne.s32.totalorder %s85, %s87
      %p91 = scmp.eq.s32.totalorder %s18, 0
      %p92 = por %p90, %p91
      %p93 = scmp.ne.s32.totalorder %s85, %s87
      %p94 = scmp.eq.s32.totalorder %s23, 3
      %p95 = por %p93, %p94
      %p96 = scmp.ne.s32.totalorder %s87, %s88
      %p97 = scmp.eq.s32.totalorder %s23, 0
      %p98 = por %p96, %p97
      %p99 = scmp.ne.s32.totalorder %s87, %s88
      %p100 = scmp.eq.s32.totalorder %s24, 3
      %p101 = por %p99, %p100
      %p103 = scmp.ne.s32.totalorder %s88, %s102
      %p104 = scmp.eq.s32.totalorder %s24, 0
      %p105 = por %p103, %p104
      %s107 = sadd.s32 %s106, 1
      %p110 = scmp.eq.s32.totalorder %s18, 3
      %p111 = scmp.ne.s32.totalorder %s106, %s108
      %p112 = scmp.eq.s32.totalorder %s18, 0
      %p113 = por %p111, %p112
      %p114 = scmp.ne.s32.totalorder %s106, %s108
      %p115 = scmp.eq.s32.totalorder %s23, 3
      %p116 = por %p114, %p115
      %p117 = scmp.ne.s32.totalorder %s108, %s109
      %p118 = scmp.eq.s32.totalorder %s23, 0
      %p119 = por %p117, %p118
      %p120 = scmp.ne.s32.totalorder %s108, %s109
      %p121 = scmp.eq.s32.totalorder %s24, 3
      %p122 = por %p120, %p121
      %p124 = scmp.ne.s32.totalorder %s109, %s123
      %p125 = scmp.eq.s32.totalorder %s24, 0
      %p126 = por %p124, %p125
      %s128 = sadd.s32 %s127, 1
      %p131 = scmp.eq.s32.totalorder %s18, 3
      %p132 = scmp.ne.s32.totalorder %s127, %s129
      %p133 = scmp.eq.s32.totalorder %s18, 0
      %p134 = por %p132, %p133
      %p135 = scmp.ne.s32.totalorder %s127, %s129
      %p136 = scmp.eq.s32.totalorder %s23, 3
      %p137 = por %p135, %p136
      %p138 = scmp.ne.s32.totalorder %s129, %s130
      %p139 = scmp.eq.s32.totalorder %s23, 0
      %p140 = por %p138, %p139
      %p141 = scmp.ne.s32.totalorder %s129, %s130
      %p142 = scmp.eq.s32.totalorder %s24, 3
      %p143 = por %p141, %p142
      %p145 = scmp.ne.s32.totalorder %s130, %s144
      %p146 = scmp.eq.s32.totalorder %s24, 0
      %p147 = por %p145, %p146
      %s148 = ssub.s32 %s25, %s37
      %s149 = ssub.s32 %s26, %s33
      %s150 = sor.u32 %s148, %s149
      %p151 = scmp.eq.s32.totalorder %s150, 0
      %s153 = sadd.s32 %s152, 1
      %s154 = scalar_select %p151, %s152, %s153
      %p157 = pneg %p151
      %p158 = scmp.eq.s32.totalorder %s18, 3
      %p159 = por %p157, %p158
      %p160 = scmp.ne.s32.totalorder %s152, %s155
      %p161 = scmp.eq.s32.totalorder %s18, 0
      %p162 = por %p160, %p161
      %p163 = scmp.ne.s32.totalorder %s152, %s155
      %p164 = scmp.eq.s32.totalorder %s23, 3
      %p165 = por %p163, %p164
      %p166 = scmp.ne.s32.totalorder %s155, %s156
      %p167 = scmp.eq.s32.totalorder %s23, 0
      %p168 = por %p166, %p167
      %p169 = scmp.ne.s32.totalorder %s155, %s156
      %p170 = scmp.eq.s32.totalorder %s24, 3
      %p171 = por %p169, %p170
      %p173 = scmp.ne.s32.totalorder %s156, %s172
      %p174 = scmp.eq.s32.totalorder %s24, 0
      %p175 = por %p173, %p174
      %p176 = scmp.le.s32.totalorder 1, %s18
      %p177 = scmp.lt.s32.totalorder %s18, 5
      %p178 = pnand %p176, %p177
      %p179 = pneg %p178
      // Predicated region
      $region9: #{tpu_custom_call.1} parent=5 // pred_check
        _
      $region10: #{tpu_custom_call.1} parent=5 // pred_check_branch
        %181 = sbr.rel (%p178) target = $region12
      $region11: #{tpu_custom_call.1} parent=5 // pred_region
        %s182 = ssub.s32 %s18, 1
        // Predicated region
        $region13: #{tpu_custom_call.1} parent=11 // pred_check
          %p183 = pneg %p77
        $region14: #{tpu_custom_call.1} parent=11 // pred_check_branch
          %185 = sbr.rel (%p183) target = $region16
        $region15: #{tpu_custom_call.1} parent=11 // pred_region
          %s187 = ssub.s32 9216, 9216
          %188 = vsyncadd [#allocation7], %s187
          %s189 = sshll.u32 [#allocation6], 4
          %s190 = int_to_ptr.vmem [resolvable:$true] %s189
          %195 = dma.hbm_to_vmem [thread:$0]  %s1, 9216, %s190, [#allocation7], 64, 64, 4
        $region16: #{tpu_custom_call.1} parent=11 // pred_fallthru
          _
        // Predicated region
        $region17: #{tpu_custom_call.1} parent=11 // pred_check
          %p196 = pneg %p98
        $region18: #{tpu_custom_call.1} parent=11 // pred_check_branch
          %198 = sbr.rel (%p196) target = $region20
        $region19: #{tpu_custom_call.1} parent=11 // pred_region
          _
        $region20: #{tpu_custom_call.1} parent=11 // pred_fallthru
          _
        // Predicated region
        $region21: #{tpu_custom_call.1} parent=11 // pred_check
          %p199 = pneg %p119
        $region22: #{tpu_custom_call.1} parent=11 // pred_check_branch
          %201 = sbr.rel (%p199) target = $region24
        $region23: #{tpu_custom_call.1} parent=11 // pred_region
          %s203 = ssub.s32 9216, 9216
          %204 = vsyncadd [#allocation7], %s203
          %s205 = sshll.u32 [#allocation8], 4
          %s206 = int_to_ptr.vmem [resolvable:$true] %s205
          %211 = dma.hbm_to_vmem [thread:$0]  %s3, 9216, %s206, [#allocation7], 64, 64, 4
        $region24: #{tpu_custom_call.1} parent=11 // pred_fallthru
          _
        // Predicated region
        $region25: #{tpu_custom_call.1} parent=11 // pred_check
          %p212 = pneg %p140
        $region26: #{tpu_custom_call.1} parent=11 // pred_check_branch
          %214 = sbr.rel (%p212) target = $region28
        $region27: #{tpu_custom_call.1} parent=11 // pred_region
          _
        $region28: #{tpu_custom_call.1} parent=11 // pred_fallthru
          _
      $region12: #{tpu_custom_call.1} parent=5 // pred_fallthru
        _
      %p215 = scmp.lt.s32.totalorder %s18, 4
      // Predicated region
      $region29: #{tpu_custom_call.1} parent=5 // pred_check
        %p216 = pneg %p215
      $region30: #{tpu_custom_call.1} parent=5 // pred_check_branch
        %218 = sbr.rel (%p216) target = $region32
      $region31: #{tpu_custom_call.1} parent=5 // pred_region
        // Predicated region
        $region33: #{tpu_custom_call.1} parent=31 // pred_check
          %p219 = pneg %p50
        $region34: #{tpu_custom_call.1} parent=31 // pred_check_branch
          %221 = sbr.rel (%p219) target = $region36
        $region35: #{tpu_custom_call.1} parent=31 // pred_region
          %s222 = sand.u32 %s40, 1
          %s223 = scalar_lea.sflag [#allocation4], %s222
          %s224 = sand.u32 %s40, 1
          %s225 = smul.addr %s224, 320
          %s226 = scalar_lea.vmem [#allocation3], %s225
          %s228 = ssub.s32 5120, 5120
          %229 = vsyncadd %s223, %s228
          %s230 = smul.addr %s25, 80
          %s231 = smul.addr %s230, 64
          %s232 = scalar_lea.hbm %s0, %s231
          %s233 = sshll.u32 %s226, 4
          %s234 = int_to_ptr.vmem [resolvable:$true] %s233
          %239 = dma.hbm_to_vmem [thread:$0]  %s232, 5120, %s234, %s223, 64, 64, 4
        $region36: #{tpu_custom_call.1} parent=31 // pred_fallthru
          _
      $region32: #{tpu_custom_call.1} parent=5 // pred_fallthru
        _
      %p240 = scmp.le.s32.totalorder 1, %s18
      %p241 = scmp.lt.s32.totalorder %s18, 5
      %p242 = pnand %p240, %p241
      %p243 = pneg %p242
      // Predicated region
      $region37: #{tpu_custom_call.1} parent=5 // pred_check
        _
      $region38: #{tpu_custom_call.1} parent=5 // pred_check_branch
        %245 = sbr.rel (%p242) target = $region40
      $region39: #{tpu_custom_call.1} parent=5 // pred_region
        %s246 = ssub.s32 %s18, 1
        %s247 = sand.u32 %s43, 1
        %s248 = scalar_lea.sflag [#allocation4], %s247
        %s249 = sand.u32 %s43, 1
        %s250 = smul.addr %s249, 320
        %s251 = scalar_lea.vmem [#allocation3], %s250
        // Predicated region
        $region41: #{tpu_custom_call.1} parent=39 // pred_check
          %p252 = pneg %p56
        $region42: #{tpu_custom_call.1} parent=39 // pred_check_branch
          %254 = sbr.rel (%p252) target = $region44
        $region43: #{tpu_custom_call.1} parent=39 // pred_region
          %255 = dma.done %s248, 5120
        $region44: #{tpu_custom_call.1} parent=39 // pred_fallthru
          _
        // Predicated region
        $region45: #{tpu_custom_call.1} parent=39 // pred_check
          %p256 = pneg %p77
        $region46: #{tpu_custom_call.1} parent=39 // pred_check_branch
          %258 = sbr.rel (%p256) target = $region48
        $region47: #{tpu_custom_call.1} parent=39 // pred_region
          %259 = dma.done [#allocation7], 9216
        $region48: #{tpu_custom_call.1} parent=39 // pred_fallthru
          _
        // Predicated region
        $region49: #{tpu_custom_call.1} parent=39 // pred_check
          %p260 = pneg %p119
        $region50: #{tpu_custom_call.1} parent=39 // pred_check_branch
          %262 = sbr.rel (%p260) target = $region52
        $region51: #{tpu_custom_call.1} parent=39 // pred_region
          %263 = dma.done [#allocation7], 9216
        $region52: #{tpu_custom_call.1} parent=39 // pred_fallthru
          _
        %s264 = sand.u32 %s43, 1
        %s265 = scalar_lea.sflag [#allocation4], %s264
        %s266 = sand.u32 %s43, 1
        %s267 = smul.addr %s266, 320
        %s268 = scalar_lea.vmem [#allocation3], %s267
        %p269 = pneg %p56
        %p270 = pneg %p53
        %p271 = pneg %p77
        %p272 = pneg %p74
        %p273 = pneg %p98
        %p274 = pneg %p95
        %p275 = pneg %p119
        %p276 = pneg %p116
        %p277 = pneg %p140
        %p278 = pneg %p137
        %p279 = pneg %p168
        %p280 = pneg %p165
        %s281 = sand.u32 %s155, 1
        %s282 = scalar_lea.sflag [#allocation5], %s281
        %s283 = sand.u32 %s155, 1
        %s284 = smul.addr %s283, 64
        %s285 = scalar_lea.vmem [#allocation9], %s284
        %s286 = smul.u32 8, %s28
        %s288 = smul.u32 %s28, 8
        %s289 = smul.u32 %s288, 4
        %s290 = smul.addr %s289, 4
        %s291 = scalar_lea.vmem %s251, %s290 [#allocation3]
        %v292 = vld [vmem:[%s291] sm:$0x8]
        %v293 = vld [vmem:[%s291 + $0x4] sm:$0xf]
        %v294 = vld [vmem:[%s291 + $0x8] sm:$0xf]
        %v295 = vld [vmem:[%s291 + $0x10] sm:$0x8]
        %v296 = vld [vmem:[%s291 + $0x14] sm:$0xf]
        %v297 = vld [vmem:[%s291 + $0x18] sm:$0xf]
        %v298 = vld [vmem:[%s291 + $0x20] sm:$0x8]
        %v299 = vld [vmem:[%s291 + $0x24] sm:$0xf]
        %v300 = vld [vmem:[%s291 + $0x28] sm:$0xf]
        %v301 = vld [vmem:[%s291 + $0x30] sm:$0x8]
        %v302 = vld [vmem:[%s291 + $0x34] sm:$0xf]
        %v303 = vld [vmem:[%s291 + $0x38] sm:$0xf]
        %v304 = vld [vmem:[%s291 + $0x40] sm:$0x8]
        %v305 = vld [vmem:[%s291 + $0x44] sm:$0xf]
        %v306 = vld [vmem:[%s291 + $0x48] sm:$0xf]
        %v307 = vld [vmem:[%s291 + $0x50] sm:$0x8]
        %v308 = vld [vmem:[%s291 + $0x54] sm:$0xf]
        %v309 = vld [vmem:[%s291 + $0x58] sm:$0xf]
        %v310 = vld [vmem:[%s291 + $0x60] sm:$0x8]
        %v311 = vld [vmem:[%s291 + $0x64] sm:$0xf]
        %v312 = vld [vmem:[%s291 + $0x68] sm:$0xf]
        %v313 = vld [vmem:[%s291 + $0x70] sm:$0x8]
        %v314 = vld [vmem:[%s291 + $0x74] sm:$0xf]
        %v315 = vld [vmem:[%s291 + $0x78] sm:$0xf]
        %v316 = vld [vmem:[%s291 + $0x80] sm:$0x8]
        %v317 = vld [vmem:[%s291 + $0x84] sm:$0xf]
        %v318 = vld [vmem:[%s291 + $0x88] sm:$0xf]
        %v319 = vld [vmem:[%s291 + $0x90] sm:$0x8]
        %v320 = vld [vmem:[%s291 + $0x94] sm:$0xf]
        %v321 = vld [vmem:[%s291 + $0x98] sm:$0xf]
        %v322 = vld [vmem:[%s291 + $0xa0] sm:$0x8]
        %v323 = vld [vmem:[%s291 + $0xa4] sm:$0xf]
        %v324 = vld [vmem:[%s291 + $0xa8] sm:$0xf]
        %v325 = vld [vmem:[%s291 + $0xb0] sm:$0x8]
        %v326 = vld [vmem:[%s291 + $0xb4] sm:$0xf]
        %v327 = vld [vmem:[%s291 + $0xb8] sm:$0xf]
        %v328 = vld [vmem:[%s291 + $0xc] sm:$0x1]
        %v329 = vld [vmem:[%s291 + $0x1c] sm:$0x1]
        %v330 = vld [vmem:[%s291 + $0x2c] sm:$0x1]
        %v331 = vld [vmem:[%s291 + $0x3c] sm:$0x1]
        %v332 = vld [vmem:[%s291 + $0x4c] sm:$0x1]
        %v333 = vld [vmem:[%s291 + $0x5c] sm:$0x1]
        %v334 = vld [vmem:[%s291 + $0x6c] sm:$0x1]
        %v335 = vld [vmem:[%s291 + $0x7c] sm:$0x1]
        %v336 = vld [vmem:[%s291 + $0x8c] sm:$0x1]
        %v337 = vld [vmem:[%s291 + $0x9c] sm:$0x1]
        %v338 = vld [vmem:[%s291 + $0xac] sm:$0x1]
        %v339 = vld [vmem:[%s291 + $0xbc] sm:$0x1]
        %v376 = vunpack.c.l.b16 %v292
        %v377 = vunpack.c.l.b16 %v293
        %v378 = vunpack.c.l.b16 %v294
        %v379 = vunpack.c.l.b16 %v295
        %v380 = vunpack.c.l.b16 %v296
        %v381 = vunpack.c.l.b16 %v297
        %v382 = vunpack.c.l.b16 %v298
        %v383 = vunpack.c.l.b16 %v299
        %v384 = vunpack.c.l.b16 %v300
        %v385 = vunpack.c.l.b16 %v301
        %v386 = vunpack.c.l.b16 %v302
        %v387 = vunpack.c.l.b16 %v303
        %v388 = vunpack.c.l.b16 %v304
        %v389 = vunpack.c.l.b16 %v305
        %v390 = vunpack.c.l.b16 %v306
        %v391 = vunpack.c.l.b16 %v307
        %v392 = vunpack.c.l.b16 %v308
        %v393 = vunpack.c.l.b16 %v309
        %v394 = vunpack.c.l.b16 %v310
        %v395 = vunpack.c.l.b16 %v311
        %v396 = vunpack.c.l.b16 %v312
        %v397 = vunpack.c.l.b16 %v313
        %v398 = vunpack.c.l.b16 %v314
        %v399 = vunpack.c.l.b16 %v315
        %v400 = vunpack.c.l.b16 %v316
        %v401 = vunpack.c.l.b16 %v317
        %v402 = vunpack.c.l.b16 %v318
        %v403 = vunpack.c.l.b16 %v319
        %v404 = vunpack.c.l.b16 %v320
        %v405 = vunpack.c.l.b16 %v321
        %v406 = vunpack.c.l.b16 %v322
        %v407 = vunpack.c.l.b16 %v323
        %v408 = vunpack.c.l.b16 %v324
        %v409 = vunpack.c.l.b16 %v325
        %v410 = vunpack.c.l.b16 %v326
        %v411 = vunpack.c.l.b16 %v327
        %v412 = vpack.c.b16 %v377, %v376
        %v413 = vpack.c.b16 %v378, %v378
        %v414 = vpack.c.b16 %v380, %v379
        %v415 = vpack.c.b16 %v381, %v381
        %v416 = vpack.c.b16 %v383, %v382
        %v417 = vpack.c.b16 %v384, %v384
        %v418 = vpack.c.b16 %v386, %v385
        %v419 = vpack.c.b16 %v387, %v387
        %v420 = vpack.c.b16 %v389, %v388
        %v421 = vpack.c.b16 %v390, %v390
        %v422 = vpack.c.b16 %v392, %v391
        %v423 = vpack.c.b16 %v393, %v393
        %v424 = vpack.c.b16 %v395, %v394
        %v425 = vpack.c.b16 %v396, %v396
        %v426 = vpack.c.b16 %v398, %v397
        %v427 = vpack.c.b16 %v399, %v399
        %v428 = vpack.c.b16 %v401, %v400
        %v429 = vpack.c.b16 %v402, %v402
        %v430 = vpack.c.b16 %v404, %v403
        %v431 = vpack.c.b16 %v405, %v405
        %v432 = vpack.c.b16 %v407, %v406
        %v433 = vpack.c.b16 %v408, %v408
        %v434 = vpack.c.b16 %v410, %v409
        %v435 = vpack.c.b16 %v411, %v411
        %v436 = vpack.c.b16 %v378, %v377
        %v437 = vpack.c.b16 %v381, %v380
        %v438 = vpack.c.b16 %v384, %v383
        %v439 = vpack.c.b16 %v387, %v386
        %v440 = vpack.c.b16 %v390, %v389
        %v441 = vpack.c.b16 %v393, %v392
        %v442 = vpack.c.b16 %v396, %v395
        %v443 = vpack.c.b16 %v399, %v398
        %v444 = vpack.c.b16 %v402, %v401
        %v445 = vpack.c.b16 %v405, %v404
        %v446 = vpack.c.b16 %v408, %v407
        %v447 = vpack.c.b16 %v411, %v410
        %v449 = vshrl.u32 %v436, 16
        %v451 = vrot.slane %v449, 4
        %v452 = vshll.u32 %v436, 16
        %v454 = vrot.slane %v452, 5
        %v455 = vor.u32 %v451, %v454
        %v457 = vshrl.u32 %v437, 16
        %v459 = vrot.slane %v457, 4
        %v460 = vshll.u32 %v437, 16
        %v462 = vrot.slane %v460, 5
        %v463 = vor.u32 %v459, %v462
        %v465 = vshrl.u32 %v438, 16
        %v467 = vrot.slane %v465, 4
        %v468 = vshll.u32 %v438, 16
        %v470 = vrot.slane %v468, 5
        %v471 = vor.u32 %v467, %v470
        %v473 = vshrl.u32 %v439, 16
        %v475 = vrot.slane %v473, 4
        %v476 = vshll.u32 %v439, 16
        %v478 = vrot.slane %v476, 5
        %v479 = vor.u32 %v475, %v478
        %v481 = vshrl.u32 %v440, 16
        %v483 = vrot.slane %v481, 4
        %v484 = vshll.u32 %v440, 16
        %v486 = vrot.slane %v484, 5
        %v487 = vor.u32 %v483, %v486
        %v489 = vshrl.u32 %v441, 16
        %v491 = vrot.slane %v489, 4
        %v492 = vshll.u32 %v441, 16
        %v494 = vrot.slane %v492, 5
        %v495 = vor.u32 %v491, %v494
        %v497 = vshrl.u32 %v442, 16
        %v499 = vrot.slane %v497, 4
        %v500 = vshll.u32 %v442, 16
        %v502 = vrot.slane %v500, 5
        %v503 = vor.u32 %v499, %v502
        %v505 = vshrl.u32 %v443, 16
        %v507 = vrot.slane %v505, 4
        %v508 = vshll.u32 %v443, 16
        %v510 = vrot.slane %v508, 5
        %v511 = vor.u32 %v507, %v510
        %v513 = vshrl.u32 %v444, 16
        %v515 = vrot.slane %v513, 4
        %v516 = vshll.u32 %v444, 16
        %v518 = vrot.slane %v516, 5
        %v519 = vor.u32 %v515, %v518
        %v521 = vshrl.u32 %v445, 16
        %v523 = vrot.slane %v521, 4
        %v524 = vshll.u32 %v445, 16
        %v526 = vrot.slane %v524, 5
        %v527 = vor.u32 %v523, %v526
        %v529 = vshrl.u32 %v446, 16
        %v531 = vrot.slane %v529, 4
        %v532 = vshll.u32 %v446, 16
        %v534 = vrot.slane %v532, 5
        %v535 = vor.u32 %v531, %v534
        %v537 = vshrl.u32 %v447, 16
        %v539 = vrot.slane %v537, 4
        %v540 = vshll.u32 %v447, 16
        %v542 = vrot.slane %v540, 5
        %v543 = vor.u32 %v539, %v542
        %v556 = vunpack.c.l.b16 %v328
        %v557 = vunpack.c.l.b16 %v329
        %v558 = vunpack.c.l.b16 %v330
        %v559 = vunpack.c.l.b16 %v331
        %v560 = vunpack.c.l.b16 %v332
        %v561 = vunpack.c.l.b16 %v333
        %v562 = vunpack.c.l.b16 %v334
        %v563 = vunpack.c.l.b16 %v335
        %v564 = vunpack.c.l.b16 %v336
        %v565 = vunpack.c.l.b16 %v337
        %v566 = vunpack.c.l.b16 %v338
        %v567 = vunpack.c.l.b16 %v339
        %v568 = vpack.c.b16 %v556, %v556
        %v569 = vpack.c.b16 %v557, %v557
        %v570 = vpack.c.b16 %v558, %v558
        %v571 = vpack.c.b16 %v559, %v559
        %v572 = vpack.c.b16 %v560, %v560
        %v573 = vpack.c.b16 %v561, %v561
        %v574 = vpack.c.b16 %v562, %v562
        %v575 = vpack.c.b16 %v563, %v563
        %v576 = vpack.c.b16 %v564, %v564
        %v577 = vpack.c.b16 %v565, %v565
        %v578 = vpack.c.b16 %v566, %v566
        %v579 = vpack.c.b16 %v567, %v567
        %vm580 = vcmask 1042432
        %v581 = vrot.slane %v436, 5
        %v582 = vrot.slane %v568, 5
        %v583 = vsel %vm580, %v581, %v582
        %v584 = vrot.slane %v437, 5
        %v585 = vrot.slane %v569, 5
        %v586 = vsel %vm580, %v584, %v585
        %v587 = vrot.slane %v438, 5
        %v588 = vrot.slane %v570, 5
        %v589 = vsel %vm580, %v587, %v588
        %v590 = vrot.slane %v439, 5
        %v591 = vrot.slane %v571, 5
        %v592 = vsel %vm580, %v590, %v591
        %v593 = vrot.slane %v440, 5
        %v594 = vrot.slane %v572, 5
        %v595 = vsel %vm580, %v593, %v594
        %v596 = vrot.slane %v441, 5
        %v597 = vrot.slane %v573, 5
        %v598 = vsel %vm580, %v596, %v597
        %v599 = vrot.slane %v442, 5
        %v600 = vrot.slane %v574, 5
        %v601 = vsel %vm580, %v599, %v600
        %v602 = vrot.slane %v443, 5
        %v603 = vrot.slane %v575, 5
        %v604 = vsel %vm580, %v602, %v603
        %v605 = vrot.slane %v444, 5
        %v606 = vrot.slane %v576, 5
        %v607 = vsel %vm580, %v605, %v606
        %v608 = vrot.slane %v445, 5
        %v609 = vrot.slane %v577, 5
        %v610 = vsel %vm580, %v608, %v609
        %v611 = vrot.slane %v446, 5
        %v612 = vrot.slane %v578, 5
        %v613 = vsel %vm580, %v611, %v612
        %v614 = vrot.slane %v447, 5
        %v615 = vrot.slane %v579, 5
        %v616 = vsel %vm580, %v614, %v615
        %vm617 = vsmask.f32 4352
        %v619 = vshrl.u32 %v412, 16
        %v621 = vrot.slane %v619, 3
        %v622 = vshll.u32 %v412, 16
        %v624 = vrot.slane %v622, 4
        %v625 = vor.u32 %v621, %v624
        %v627 = vshrl.u32 %v413, 16
        %v629 = vrot.slane %v627, 3
        %v630 = vshll.u32 %v413, 16
        %v632 = vrot.slane %v630, 4
        %v633 = vor.u32 %v629, %v632
        %v634 = vsel %vm617, %v625, %v633
        %v636 = vshrl.u32 %v455, 16
        %v638 = vrot.slane %v636, 3
        %v639 = vshll.u32 %v455, 16
        %v641 = vrot.slane %v639, 4
        %v642 = vor.u32 %v638, %v641
        %v643 = vsel %vm617, %v642, %v642
        %v645 = vshrl.u32 %v581, 16
        %v647 = vrot.slane %v645, 3
        %v648 = vshll.u32 %v581, 16
        %v650 = vrot.slane %v648, 4
        %v651 = vor.u32 %v647, %v650
        %v653 = vshrl.u32 %v583, 16
        %v655 = vrot.slane %v653, 3
        %v656 = vshll.u32 %v583, 16
        %v658 = vrot.slane %v656, 4
        %v659 = vor.u32 %v655, %v658
        %v660 = vsel %vm617, %v651, %v659
        %v662 = vshrl.u32 %v414, 16
        %v664 = vrot.slane %v662, 3
        %v665 = vshll.u32 %v414, 16
        %v667 = vrot.slane %v665, 4
        %v668 = vor.u32 %v664, %v667
        %v670 = vshrl.u32 %v415, 16
        %v672 = vrot.slane %v670, 3
        %v673 = vshll.u32 %v415, 16
        %v675 = vrot.slane %v673, 4
        %v676 = vor.u32 %v672, %v675
        %v677 = vsel %vm617, %v668, %v676
        %v679 = vshrl.u32 %v463, 16
        %v681 = vrot.slane %v679, 3
        %v682 = vshll.u32 %v463, 16
        %v684 = vrot.slane %v682, 4
        %v685 = vor.u32 %v681, %v684
        %v686 = vsel %vm617, %v685, %v685
        %v688 = vshrl.u32 %v584, 16
        %v690 = vrot.slane %v688, 3
        %v691 = vshll.u32 %v584, 16
        %v693 = vrot.slane %v691, 4
        %v694 = vor.u32 %v690, %v693
        %v696 = vshrl.u32 %v586, 16
        %v698 = vrot.slane %v696, 3
        %v699 = vshll.u32 %v586, 16
        %v701 = vrot.slane %v699, 4
        %v702 = vor.u32 %v698, %v701
        %v703 = vsel %vm617, %v694, %v702
        %v705 = vshrl.u32 %v416, 16
        %v707 = vrot.slane %v705, 3
        %v708 = vshll.u32 %v416, 16
        %v710 = vrot.slane %v708, 4
        %v711 = vor.u32 %v707, %v710
        %v713 = vshrl.u32 %v417, 16
        %v715 = vrot.slane %v713, 3
        %v716 = vshll.u32 %v417, 16
        %v718 = vrot.slane %v716, 4
        %v719 = vor.u32 %v715, %v718
        %v720 = vsel %vm617, %v711, %v719
        %v722 = vshrl.u32 %v471, 16
        %v724 = vrot.slane %v722, 3
        %v725 = vshll.u32 %v471, 16
        %v727 = vrot.slane %v725, 4
        %v728 = vor.u32 %v724, %v727
        %v729 = vsel %vm617, %v728, %v728
        %v731 = vshrl.u32 %v587, 16
        %v733 = vrot.slane %v731, 3
        %v734 = vshll.u32 %v587, 16
        %v736 = vrot.slane %v734, 4
        %v737 = vor.u32 %v733, %v736
        %v739 = vshrl.u32 %v589, 16
        %v741 = vrot.slane %v739, 3
        %v742 = vshll.u32 %v589, 16
        %v744 = vrot.slane %v742, 4
        %v745 = vor.u32 %v741, %v744
        %v746 = vsel %vm617, %v737, %v745
        %v748 = vshrl.u32 %v418, 16
        %v750 = vrot.slane %v748, 3
        %v751 = vshll.u32 %v418, 16
        %v753 = vrot.slane %v751, 4
        %v754 = vor.u32 %v750, %v753
        %v756 = vshrl.u32 %v419, 16
        %v758 = vrot.slane %v756, 3
        %v759 = vshll.u32 %v419, 16
        %v761 = vrot.slane %v759, 4
        %v762 = vor.u32 %v758, %v761
        %v763 = vsel %vm617, %v754, %v762
        %v765 = vshrl.u32 %v479, 16
        %v767 = vrot.slane %v765, 3
        %v768 = vshll.u32 %v479, 16
        %v770 = vrot.slane %v768, 4
        %v771 = vor.u32 %v767, %v770
        %v772 = vsel %vm617, %v771, %v771
        %v774 = vshrl.u32 %v590, 16
        %v776 = vrot.slane %v774, 3
        %v777 = vshll.u32 %v590, 16
        %v779 = vrot.slane %v777, 4
        %v780 = vor.u32 %v776, %v779
        %v782 = vshrl.u32 %v592, 16
        %v784 = vrot.slane %v782, 3
        %v785 = vshll.u32 %v592, 16
        %v787 = vrot.slane %v785, 4
        %v788 = vor.u32 %v784, %v787
        %v789 = vsel %vm617, %v780, %v788
        %v791 = vshrl.u32 %v420, 16
        %v793 = vrot.slane %v791, 3
        %v794 = vshll.u32 %v420, 16
        %v796 = vrot.slane %v794, 4
        %v797 = vor.u32 %v793, %v796
        %v799 = vshrl.u32 %v421, 16
        %v801 = vrot.slane %v799, 3
        %v802 = vshll.u32 %v421, 16
        %v804 = vrot.slane %v802, 4
        %v805 = vor.u32 %v801, %v804
        %v806 = vsel %vm617, %v797, %v805
        %v808 = vshrl.u32 %v487, 16
        %v810 = vrot.slane %v808, 3
        %v811 = vshll.u32 %v487, 16
        %v813 = vrot.slane %v811, 4
        %v814 = vor.u32 %v810, %v813
        %v815 = vsel %vm617, %v814, %v814
        %v817 = vshrl.u32 %v593, 16
        %v819 = vrot.slane %v817, 3
        %v820 = vshll.u32 %v593, 16
        %v822 = vrot.slane %v820, 4
        %v823 = vor.u32 %v819, %v822
        %v825 = vshrl.u32 %v595, 16
        %v827 = vrot.slane %v825, 3
        %v828 = vshll.u32 %v595, 16
        %v830 = vrot.slane %v828, 4
        %v831 = vor.u32 %v827, %v830
        %v832 = vsel %vm617, %v823, %v831
        %v834 = vshrl.u32 %v422, 16
        %v836 = vrot.slane %v834, 3
        %v837 = vshll.u32 %v422, 16
        %v839 = vrot.slane %v837, 4
        %v840 = vor.u32 %v836, %v839
        %v842 = vshrl.u32 %v423, 16
        %v844 = vrot.slane %v842, 3
        %v845 = vshll.u32 %v423, 16
        %v847 = vrot.slane %v845, 4
        %v848 = vor.u32 %v844, %v847
        %v849 = vsel %vm617, %v840, %v848
        %v851 = vshrl.u32 %v495, 16
        %v853 = vrot.slane %v851, 3
        %v854 = vshll.u32 %v495, 16
        %v856 = vrot.slane %v854, 4
        %v857 = vor.u32 %v853, %v856
        %v858 = vsel %vm617, %v857, %v857
        %v860 = vshrl.u32 %v596, 16
        %v862 = vrot.slane %v860, 3
        %v863 = vshll.u32 %v596, 16
        %v865 = vrot.slane %v863, 4
        %v866 = vor.u32 %v862, %v865
        %v868 = vshrl.u32 %v598, 16
        %v870 = vrot.slane %v868, 3
        %v871 = vshll.u32 %v598, 16
        %v873 = vrot.slane %v871, 4
        %v874 = vor.u32 %v870, %v873
        %v875 = vsel %vm617, %v866, %v874
        %v877 = vshrl.u32 %v424, 16
        %v879 = vrot.slane %v877, 3
        %v880 = vshll.u32 %v424, 16
        %v882 = vrot.slane %v880, 4
        %v883 = vor.u32 %v879, %v882
        %v885 = vshrl.u32 %v425, 16
        %v887 = vrot.slane %v885, 3
        %v888 = vshll.u32 %v425, 16
        %v890 = vrot.slane %v888, 4
        %v891 = vor.u32 %v887, %v890
        %v892 = vsel %vm617, %v883, %v891
        %v894 = vshrl.u32 %v503, 16
        %v896 = vrot.slane %v894, 3
        %v897 = vshll.u32 %v503, 16
        %v899 = vrot.slane %v897, 4
        %v900 = vor.u32 %v896, %v899
        %v901 = vsel %vm617, %v900, %v900
        %v903 = vshrl.u32 %v599, 16
        %v905 = vrot.slane %v903, 3
        %v906 = vshll.u32 %v599, 16
        %v908 = vrot.slane %v906, 4
        %v909 = vor.u32 %v905, %v908
        %v911 = vshrl.u32 %v601, 16
        %v913 = vrot.slane %v911, 3
        %v914 = vshll.u32 %v601, 16
        %v916 = vrot.slane %v914, 4
        %v917 = vor.u32 %v913, %v916
        %v918 = vsel %vm617, %v909, %v917
        %v920 = vshrl.u32 %v426, 16
        %v922 = vrot.slane %v920, 3
        %v923 = vshll.u32 %v426, 16
        %v925 = vrot.slane %v923, 4
        %v926 = vor.u32 %v922, %v925
        %v928 = vshrl.u32 %v427, 16
        %v930 = vrot.slane %v928, 3
        %v931 = vshll.u32 %v427, 16
        %v933 = vrot.slane %v931, 4
        %v934 = vor.u32 %v930, %v933
        %v935 = vsel %vm617, %v926, %v934
        %v937 = vshrl.u32 %v511, 16
        %v939 = vrot.slane %v937, 3
        %v940 = vshll.u32 %v511, 16
        %v942 = vrot.slane %v940, 4
        %v943 = vor.u32 %v939, %v942
        %v944 = vsel %vm617, %v943, %v943
        %v946 = vshrl.u32 %v602, 16
        %v948 = vrot.slane %v946, 3
        %v949 = vshll.u32 %v602, 16
        %v951 = vrot.slane %v949, 4
        %v952 = vor.u32 %v948, %v951
        %v954 = vshrl.u32 %v604, 16
        %v956 = vrot.slane %v954, 3
        %v957 = vshll.u32 %v604, 16
        %v959 = vrot.slane %v957, 4
        %v960 = vor.u32 %v956, %v959
        %v961 = vsel %vm617, %v952, %v960
        %v963 = vshrl.u32 %v428, 16
        %v965 = vrot.slane %v963, 3
        %v966 = vshll.u32 %v428, 16
        %v968 = vrot.slane %v966, 4
        %v969 = vor.u32 %v965, %v968
        %v971 = vshrl.u32 %v429, 16
        %v973 = vrot.slane %v971, 3
        %v974 = vshll.u32 %v429, 16
        %v976 = vrot.slane %v974, 4
        %v977 = vor.u32 %v973, %v976
        %v978 = vsel %vm617, %v969, %v977
        %v980 = vshrl.u32 %v519, 16
        %v982 = vrot.slane %v980, 3
        %v983 = vshll.u32 %v519, 16
        %v985 = vrot.slane %v983, 4
        %v986 = vor.u32 %v982, %v985
        %v987 = vsel %vm617, %v986, %v986
        %v989 = vshrl.u32 %v605, 16
        %v991 = vrot.slane %v989, 3
        %v992 = vshll.u32 %v605, 16
        %v994 = vrot.slane %v992, 4
        %v995 = vor.u32 %v991, %v994
        %v997 = vshrl.u32 %v607, 16
        %v999 = vrot.slane %v997, 3
        %v1000 = vshll.u32 %v607, 16
        %v1002 = vrot.slane %v1000, 4
        %v1003 = vor.u32 %v999, %v1002
        %v1004 = vsel %vm617, %v995, %v1003
        %v1006 = vshrl.u32 %v430, 16
        %v1008 = vrot.slane %v1006, 3
        %v1009 = vshll.u32 %v430, 16
        %v1011 = vrot.slane %v1009, 4
        %v1012 = vor.u32 %v1008, %v1011
        %v1014 = vshrl.u32 %v431, 16
        %v1016 = vrot.slane %v1014, 3
        %v1017 = vshll.u32 %v431, 16
        %v1019 = vrot.slane %v1017, 4
        %v1020 = vor.u32 %v1016, %v1019
        %v1021 = vsel %vm617, %v1012, %v1020
        %v1023 = vshrl.u32 %v527, 16
        %v1025 = vrot.slane %v1023, 3
        %v1026 = vshll.u32 %v527, 16
        %v1028 = vrot.slane %v1026, 4
        %v1029 = vor.u32 %v1025, %v1028
        %v1030 = vsel %vm617, %v1029, %v1029
        %v1032 = vshrl.u32 %v608, 16
        %v1034 = vrot.slane %v1032, 3
        %v1035 = vshll.u32 %v608, 16
        %v1037 = vrot.slane %v1035, 4
        %v1038 = vor.u32 %v1034, %v1037
        %v1040 = vshrl.u32 %v610, 16
        %v1042 = vrot.slane %v1040, 3
        %v1043 = vshll.u32 %v610, 16
        %v1045 = vrot.slane %v1043, 4
        %v1046 = vor.u32 %v1042, %v1045
        %v1047 = vsel %vm617, %v1038, %v1046
        %v1078 = vld [vmem:[#allocation6] sm:$0xf]
        %v1079 = vld [vmem:[#allocation6 + $0x4] sm:$0xf]
        %v1080 = vld [vmem:[#allocation6 + $0x8] sm:$0xf]
        %v1081 = vld [vmem:[#allocation6 + $0xc] sm:$0xf]
        %v1082 = vld [vmem:[#allocation6 + $0x10] sm:$0xf]
        %v1083 = vld [vmem:[#allocation6 + $0x14] sm:$0xf]
        %v1084 = vld [vmem:[#allocation6 + $0x18] sm:$0xf]
        %v1085 = vld [vmem:[#allocation6 + $0x1c] sm:$0xf]
        %v1086 = vld [vmem:[#allocation6 + $0x20] sm:$0xf]
        %v1087 = vld [vmem:[#allocation6 + $0x24] sm:$0xf]
        %v1088 = vld [vmem:[#allocation6 + $0x28] sm:$0xf]
        %v1089 = vld [vmem:[#allocation6 + $0x2c] sm:$0xf]
        %v1090 = vld [vmem:[#allocation6 + $0x30] sm:$0xf]
        %v1091 = vld [vmem:[#allocation6 + $0x34] sm:$0xf]
        %v1092 = vld [vmem:[#allocation6 + $0x38] sm:$0xf]
        %v1093 = vld [vmem:[#allocation6 + $0x3c] sm:$0xf]
        %v1094 = vld [vmem:[#allocation6 + $0x40] sm:$0xf]
        %v1095 = vld [vmem:[#allocation6 + $0x44] sm:$0xf]
        %v1096 = vld [vmem:[#allocation6 + $0x48] sm:$0xf]
        %v1097 = vld [vmem:[#allocation6 + $0x4c] sm:$0xf]
        %v1098 = vld [vmem:[#allocation6 + $0x50] sm:$0xf]
        %v1099 = vld [vmem:[#allocation6 + $0x54] sm:$0xf]
        %v1100 = vld [vmem:[#allocation6 + $0x58] sm:$0xf]
        %v1101 = vld [vmem:[#allocation6 + $0x5c] sm:$0xf]
        %v1102 = vld [vmem:[#allocation6 + $0x60] sm:$0xf]
        %v1103 = vld [vmem:[#allocation6 + $0x64] sm:$0xf]
        %v1104 = vld [vmem:[#allocation6 + $0x68] sm:$0xf]
        %v1105 = vld [vmem:[#allocation6 + $0x6c] sm:$0xf]
        %v1106 = vld [vmem:[#allocation6 + $0x70] sm:$0xf]
        %v1107 = vld [vmem:[#allocation6 + $0x74] sm:$0xf]
        %v1108 = vld [vmem:[#allocation6 + $0x78] sm:$0xf]
        %v1109 = vld [vmem:[#allocation6 + $0x7c] sm:$0xf]
        %v1110 = vld [vmem:[#allocation6 + $0x80] sm:$0xf]
        %v1111 = vld [vmem:[#allocation6 + $0x84] sm:$0xf]
        %v1112 = vld [vmem:[#allocation6 + $0x88] sm:$0xf]
        %v1113 = vld [vmem:[#allocation6 + $0x8c] sm:$0xf]
        %v1114 = vld [vmem:[#allocation6 + $0x90] sm:$0xf]
        %v1115 = vld [vmem:[#allocation6 + $0x94] sm:$0xf]
        %v1116 = vld [vmem:[#allocation6 + $0x98] sm:$0xf]
        %v1117 = vld [vmem:[#allocation6 + $0x9c] sm:$0xf]
        %v1118 = vld [vmem:[#allocation6 + $0xa0] sm:$0xf]
        %v1119 = vld [vmem:[#allocation6 + $0xa4] sm:$0xf]
        %v1120 = vld [vmem:[#allocation6 + $0xa8] sm:$0xf]
        %v1121 = vld [vmem:[#allocation6 + $0xac] sm:$0xf]
        %v1122 = vld [vmem:[#allocation6 + $0xb0] sm:$0xf]
        %v1123 = vld [vmem:[#allocation6 + $0xb4] sm:$0xf]
        %v1124 = vld [vmem:[#allocation6 + $0xb8] sm:$0xf]
        %v1125 = vld [vmem:[#allocation6 + $0xbc] sm:$0xf]
        %v1127 = vshrl.u32 %v432, 16
        %v1129 = vrot.slane %v1127, 3
        %v1130 = vshll.u32 %v432, 16
        %v1132 = vrot.slane %v1130, 4
        %v1133 = vor.u32 %v1129, %v1132
        %v1135 = vshrl.u32 %v433, 16
        %v1137 = vrot.slane %v1135, 3
        %v1138 = vshll.u32 %v433, 16
        %v1140 = vrot.slane %v1138, 4
        %v1141 = vor.u32 %v1137, %v1140
        %v1142 = vsel %vm617, %v1133, %v1141
        %v1144 = vshrl.u32 %v535, 16
        %v1146 = vrot.slane %v1144, 3
        %v1147 = vshll.u32 %v535, 16
        %v1149 = vrot.slane %v1147, 4
        %v1150 = vor.u32 %v1146, %v1149
        %v1151 = vsel %vm617, %v1150, %v1150
        %v1153 = vshrl.u32 %v611, 16
        %v1155 = vrot.slane %v1153, 3
        %v1156 = vshll.u32 %v611, 16
        %v1158 = vrot.slane %v1156, 4
        %v1159 = vor.u32 %v1155, %v1158
        %v1161 = vshrl.u32 %v613, 16
        %v1163 = vrot.slane %v1161, 3
        %v1164 = vshll.u32 %v613, 16
        %v1166 = vrot.slane %v1164, 4
        %v1167 = vor.u32 %v1163, %v1166
        %v1168 = vsel %vm617, %v1159, %v1167
        %s1172 = scalar_lea.vmem [#allocation6], 192
        %v1173 = vld [vmem:[%s1172] sm:$0xf]
        %v1174 = vld [vmem:[%s1172 + $0x4] sm:$0xf]
        %v1175 = vld [vmem:[%s1172 + $0x8] sm:$0xf]
        %v1176 = vld [vmem:[%s1172 + $0xc] sm:$0xf]
        %v1177 = vld [vmem:[%s1172 + $0x10] sm:$0xf]
        %v1178 = vld [vmem:[%s1172 + $0x14] sm:$0xf]
        %v1179 = vld [vmem:[%s1172 + $0x18] sm:$0xf]
        %v1180 = vld [vmem:[%s1172 + $0x1c] sm:$0xf]
        %v1181 = vld [vmem:[%s1172 + $0x20] sm:$0xf]
        %v1182 = vld [vmem:[%s1172 + $0x24] sm:$0xf]
        %v1183 = vld [vmem:[%s1172 + $0x28] sm:$0xf]
        %v1184 = vld [vmem:[%s1172 + $0x2c] sm:$0xf]
        %v1185 = vld [vmem:[%s1172 + $0x30] sm:$0xf]
        %v1186 = vld [vmem:[%s1172 + $0x34] sm:$0xf]
        %v1187 = vld [vmem:[%s1172 + $0x38] sm:$0xf]
        %v1188 = vld [vmem:[%s1172 + $0x3c] sm:$0xf]
        %v1189 = vld [vmem:[%s1172 + $0x40] sm:$0xf]
        %v1190 = vld [vmem:[%s1172 + $0x44] sm:$0xf]
        %v1191 = vld [vmem:[%s1172 + $0x48] sm:$0xf]
        %v1192 = vld [vmem:[%s1172 + $0x4c] sm:$0xf]
        %v1193 = vld [vmem:[%s1172 + $0x50] sm:$0xf]
        %v1194 = vld [vmem:[%s1172 + $0x54] sm:$0xf]
        %v1195 = vld [vmem:[%s1172 + $0x58] sm:$0xf]
        %v1196 = vld [vmem:[%s1172 + $0x5c] sm:$0xf]
        %v1197 = vld [vmem:[%s1172 + $0x60] sm:$0xf]
        %v1198 = vld [vmem:[%s1172 + $0x64] sm:$0xf]
        %v1199 = vld [vmem:[%s1172 + $0x68] sm:$0xf]
        %v1200 = vld [vmem:[%s1172 + $0x6c] sm:$0xf]
        %v1201 = vld [vmem:[%s1172 + $0x70] sm:$0xf]
        %v1202 = vld [vmem:[%s1172 + $0x74] sm:$0xf]
        %v1203 = vld [vmem:[%s1172 + $0x78] sm:$0xf]
        %v1204 = vld [vmem:[%s1172 + $0x7c] sm:$0xf]
        %v1205 = vld [vmem:[%s1172 + $0x80] sm:$0xf]
        %v1206 = vld [vmem:[%s1172 + $0x84] sm:$0xf]
        %v1207 = vld [vmem:[%s1172 + $0x88] sm:$0xf]
        %v1208 = vld [vmem:[%s1172 + $0x8c] sm:$0xf]
        %v1209 = vld [vmem:[%s1172 + $0x90] sm:$0xf]
        %v1210 = vld [vmem:[%s1172 + $0x94] sm:$0xf]
        %v1211 = vld [vmem:[%s1172 + $0x98] sm:$0xf]
        %v1212 = vld [vmem:[%s1172 + $0x9c] sm:$0xf]
        %v1213 = vld [vmem:[%s1172 + $0xa0] sm:$0xf]
        %v1214 = vld [vmem:[%s1172 + $0xa4] sm:$0xf]
        %v1215 = vld [vmem:[%s1172 + $0xa8] sm:$0xf]
        %v1216 = vld [vmem:[%s1172 + $0xac] sm:$0xf]
        %v1217 = vld [vmem:[%s1172 + $0xb0] sm:$0xf]
        %v1218 = vld [vmem:[%s1172 + $0xb4] sm:$0xf]
        %v1219 = vld [vmem:[%s1172 + $0xb8] sm:$0xf]
        %v1220 = vld [vmem:[%s1172 + $0xbc] sm:$0xf]
        %v1269 = vunpack.c.l.b16 %v1173
        %v1270 = vunpack.c.l.b16 %v1174
        %v1271 = vunpack.c.l.b16 %v1175
        %v1272 = vunpack.c.l.b16 %v1176
        %v1273 = vunpack.c.l.b16 %v1177
        %v1274 = vunpack.c.l.b16 %v1178
        %v1275 = vunpack.c.l.b16 %v1179
        %v1276 = vunpack.c.l.b16 %v1180
        %v1277 = vunpack.c.l.b16 %v1181
        %v1278 = vunpack.c.l.b16 %v1182
        %v1279 = vunpack.c.l.b16 %v1183
        %v1280 = vunpack.c.l.b16 %v1184
        %v1281 = vunpack.c.l.b16 %v1185
        %v1282 = vunpack.c.l.b16 %v1186
        %v1283 = vunpack.c.l.b16 %v1187
        %v1284 = vunpack.c.l.b16 %v1188
        %v1285 = vunpack.c.l.b16 %v1189
        %v1286 = vunpack.c.l.b16 %v1190
        %v1287 = vunpack.c.l.b16 %v1191
        %v1288 = vunpack.c.l.b16 %v1192
        %v1289 = vunpack.c.l.b16 %v1193
        %v1290 = vunpack.c.l.b16 %v1194
        %v1291 = vunpack.c.l.b16 %v1195
        %v1292 = vunpack.c.l.b16 %v1196
        %v1293 = vunpack.c.l.b16 %v1197
        %v1294 = vunpack.c.l.b16 %v1198
        %v1295 = vunpack.c.l.b16 %v1199
        %v1296 = vunpack.c.l.b16 %v1200
        %v1297 = vunpack.c.l.b16 %v1201
        %v1298 = vunpack.c.l.b16 %v1202
        %v1299 = vunpack.c.l.b16 %v1203
        %v1300 = vunpack.c.l.b16 %v1204
        %v1301 = vunpack.c.l.b16 %v1205
        %v1302 = vunpack.c.l.b16 %v1206
        %v1303 = vunpack.c.l.b16 %v1207
        %v1304 = vunpack.c.l.b16 %v1208
        %v1305 = vunpack.c.l.b16 %v1209
        %v1306 = vunpack.c.l.b16 %v1210
        %v1307 = vunpack.c.l.b16 %v1211
        %v1308 = vunpack.c.l.b16 %v1212
        %v1309 = vunpack.c.l.b16 %v1213
        %v1310 = vunpack.c.l.b16 %v1214
        %v1311 = vunpack.c.l.b16 %v1215
        %v1312 = vunpack.c.l.b16 %v1216
        %v1313 = vunpack.c.l.b16 %v1217
        %v1314 = vunpack.c.l.b16 %v1218
        %v1315 = vunpack.c.l.b16 %v1219
        %v1316 = vunpack.c.l.b16 %v1220
        %v1317 = vpack.c.b16 %v1270, %v1269
        %v1318 = vpack.c.b16 %v1272, %v1271
        %v1319 = vpack.c.b16 %v1274, %v1273
        %v1320 = vpack.c.b16 %v1276, %v1275
        %v1321 = vpack.c.b16 %v1278, %v1277
        %v1322 = vpack.c.b16 %v1280, %v1279
        %v1323 = vpack.c.b16 %v1282, %v1281
        %v1324 = vpack.c.b16 %v1284, %v1283
        %v1325 = vpack.c.b16 %v1286, %v1285
        %v1326 = vpack.c.b16 %v1288, %v1287
        %v1327 = vpack.c.b16 %v1290, %v1289
        %v1328 = vpack.c.b16 %v1292, %v1291
        %v1329 = vpack.c.b16 %v1294, %v1293
        %v1330 = vpack.c.b16 %v1296, %v1295
        %v1331 = vpack.c.b16 %v1298, %v1297
        %v1332 = vpack.c.b16 %v1300, %v1299
        %v1333 = vpack.c.b16 %v1302, %v1301
        %v1334 = vpack.c.b16 %v1304, %v1303
        %v1335 = vpack.c.b16 %v1306, %v1305
        %v1336 = vpack.c.b16 %v1308, %v1307
        %v1337 = vpack.c.b16 %v1310, %v1309
        %v1338 = vpack.c.b16 %v1312, %v1311
        %v1339 = vpack.c.b16 %v1314, %v1313
        %v1340 = vpack.c.b16 %v1316, %v1315
        %1365 = vmatprep.subr.bf16.mxu0 0
        %1366 = vmatpush1.bf16.msra.mxu0 %v1317
        %1367 = vmatprep.subr.bf16.mxu0 0
        %1368 = vmatpush1.bf16.msra.mxu0 %v1318
        %1369 = vmatprep.subr.bf16.mxu0 0
        %1370 = vmatpush1.bf16.msra.mxu0 %v1319
        %1371 = vmatprep.subr.bf16.mxu0 0
        %1372 = vmatpush1.bf16.msra.mxu0 %v1320
        %1373 = vmatprep.subr.bf16.mxu0 0
        %1374 = vmatpush1.bf16.msra.mxu0 %v1321
        %1375 = vmatprep.subr.bf16.mxu0 0
        %1376 = vmatpush1.bf16.msra.mxu0 %v1322
        %1377 = vmatprep.subr.bf16.mxu0 0
        %1378 = vmatpush1.bf16.msra.mxu0 %v1323
        %1379 = vmatprep.subr.bf16.mxu0 0
        %1380 = vmatpush1.bf16.msra.mxu0 %v1324
        %1381 = vmatprep.subr.bf16.mxu0 0
        %1382 = vmatpush1.bf16.msra.mxu0 %v1325
        %1383 = vmatprep.subr.bf16.mxu0 0
        %1384 = vmatpush1.bf16.msra.mxu0 %v1326
        %1385 = vmatprep.subr.bf16.mxu0 0
        %1386 = vmatpush1.bf16.msra.mxu0 %v1327
        %1387 = vmatprep.subr.bf16.mxu0 0
        %1388 = vmatpush1.bf16.msra.mxu0 %v1328
        %1389 = vmatprep.subr.bf16.mxu0 0
        %1390 = vmatpush1.bf16.msra.mxu0 %v1329
        %1391 = vmatprep.subr.bf16.mxu0 0
        %1392 = vmatpush1.bf16.msra.mxu0 %v1330
        %1393 = vmatprep.subr.bf16.mxu0 0
        %1394 = vmatpush1.bf16.msra.mxu0 %v1331
        %1395 = vmatprep.subr.bf16.mxu0 0
        %1396 = vmatpush1.bf16.msra.mxu0 %v1332
        %1397 = vmatprep.mubr.bf16.mxu0 %v686
        %1398 = vmatmul.mubr.bf16.gmra.mrb[0].mxu0 %v677
        %v1399 = vpop.f32.mrb[0].mxu0
        %v1400 = vadd.f32 0.0, %v1399
        %v1401 = vpop.f32.mrb[0].mxu0
        %v1402 = vpop.f32.mrb[0].mxu0
        %v1403 = vadd.f32 0.0, %v1402
        %v1404 = vpop.f32.mrb[0].mxu0
        %1405 = vmatprep.mubr.bf16.mxu0 %v729
        %1406 = vmatmul.mubr.bf16.gmra.mrb[0].mxu0 %v720
        %v1407 = vpop.f32.mrb[0].mxu0
        %v1408 = vadd.f32 0.0, %v1407
        %v1409 = vpop.f32.mrb[0].mxu0
        %v1410 = vpop.f32.mrb[0].mxu0
        %v1411 = vadd.f32 0.0, %v1410
        %v1412 = vpop.f32.mrb[0].mxu0
        %1413 = vmatprep.mubr.bf16.mxu0 %v772
        %1414 = vmatmul.mubr.bf16.gmra.mrb[0].mxu0 %v763
        %v1415 = vpop.f32.mrb[0].mxu0
        %v1416 = vadd.f32 0.0, %v1415
        %v1417 = vpop.f32.mrb[0].mxu0
        %v1418 = vpop.f32.mrb[0].mxu0
        %v1419 = vadd.f32 0.0, %v1418
        %v1420 = vpop.f32.mrb[0].mxu0
        %1421 = vmatprep.mubr.bf16.mxu0 %v815
        %1422 = vmatmul.mubr.bf16.gmra.mrb[0].mxu0 %v806
        %v1423 = vpop.f32.mrb[0].mxu0
        %v1424 = vadd.f32 0.0, %v1423
        %v1425 = vpop.f32.mrb[0].mxu0
        %v1426 = vpop.f32.mrb[0].mxu0
        %v1427 = vadd.f32 0.0, %v1426
        %v1428 = vpop.f32.mrb[0].mxu0
        %1429 = vmatprep.mubr.bf16.mxu0 %v858
        %1430 = vmatmul.mubr.bf16.gmra.mrb[0].mxu0 %v849
        %v1431 = vpop.f32.mrb[0].mxu0
        %v1432 = vadd.f32 0.0, %v1431
        %v1433 = vpop.f32.mrb[0].mxu0
        %v1434 = vpop.f32.mrb[0].mxu0
        %v1435 = vadd.f32 0.0, %v1434
        %v1436 = vpop.f32.mrb[0].mxu0
        %1437 = vmatprep.mubr.bf16.mxu0 %v901
        %1438 = vmatmul.mubr.bf16.gmra.mrb[0].mxu0 %v892
        %v1439 = vpop.f32.mrb[0].mxu0
        %v1440 = vadd.f32 0.0, %v1439
        %v1441 = vpop.f32.mrb[0].mxu0
        %v1442 = vpop.f32.mrb[0].mxu0
        %v1443 = vadd.f32 0.0, %v1442
        %v1444 = vpop.f32.mrb[0].mxu0
        %1445 = vmatprep.mubr.bf16.mxu0 %v944
        %1446 = vmatmul.mubr.bf16.gmra.mrb[0].mxu0 %v935
        %v1447 = vpop.f32.mrb[0].mxu0
        %v1448 = vadd.f32 0.0, %v1447
        %v1449 = vpop.f32.mrb[0].mxu0
        %v1450 = vpop.f32.mrb[0].mxu0
        %v1451 = vadd.f32 0.0, %v1450
        %v1452 = vpop.f32.mrb[0].mxu0
        %1453 = vmatprep.mubr.bf16.mxu0 %v987
        %1454 = vmatmul.mubr.bf16.gmra.mrb[0].mxu0 %v978
        %v1455 = vpop.f32.mrb[0].mxu0
        %v1456 = vadd.f32 0.0, %v1455
        %v1457 = vpop.f32.mrb[0].mxu0
        %v1458 = vpop.f32.mrb[0].mxu0
        %v1459 = vadd.f32 0.0, %v1458
        %v1460 = vpop.f32.mrb[0].mxu0
        %1461 = vmatprep.mubr.bf16.mxu0 %v1030
        %1462 = vmatmul.mubr.bf16.gmra.mrb[0].mxu0 %v1021
        %v1463 = vpop.f32.mrb[0].mxu0
        %v1464 = vadd.f32 0.0, %v1463
        %v1465 = vpop.f32.mrb[0].mxu0
        %v1466 = vpop.f32.mrb[0].mxu0
        %v1467 = vadd.f32 0.0, %v1466
        %v1468 = vpop.f32.mrb[0].mxu0
        %1469 = vmatprep.mubr.bf16.mxu0 %v1151
        %1470 = vmatmul.mubr.bf16.gmra.mrb[0].mxu0 %v1142
        %v1471 = vpop.f32.mrb[0].mxu0
        %v1472 = vadd.f32 0.0, %v1471
        %v1473 = vpop.f32.mrb[0].mxu0
        %v1474 = vpop.f32.mrb[0].mxu0
        %v1475 = vadd.f32 0.0, %v1474
        %v1476 = vpop.f32.mrb[0].mxu0
        %1477 = vdwg.mxu0
        %1478 = vmatprep.subr.bf16.mxu0 0
        %1479 = vmatpush1.bf16.msra.mxu0 %v1333
        %1480 = vmatprep.subr.bf16.mxu0 0
        %1481 = vmatpush1.bf16.msra.mxu0 %v1334
        %1482 = vmatprep.subr.bf16.mxu0 0
        %1483 = vmatpush1.bf16.msra.mxu0 %v1335
        %1484 = vmatprep.subr.bf16.mxu0 0
        %1485 = vmatpush1.bf16.msra.mxu0 %v1336
        %1486 = vmatprep.subr.bf16.mxu0 0
        %1487 = vmatpush1.bf16.msra.mxu0 %v1337
        %1488 = vmatprep.subr.bf16.mxu0 0
        %1489 = vmatpush1.bf16.msra.mxu0 %v1338
        %1490 = vmatprep.subr.bf16.mxu0 0
        %1491 = vmatpush1.bf16.msra.mxu0 %v1339
        %1492 = vmatprep.subr.bf16.mxu0 0
        %1493 = vmatpush1.bf16.msra.mxu0 %v1340
        %1494 = vmatprep.subr.bf16.mxu0 0
        %1495 = vmatpush1.bf16.msra.mxu0 0
        %1496 = vmatprep.subr.bf16.mxu0 0
        %1497 = vmatpush1.bf16.msra.mxu0 0
        %1498 = vmatprep.subr.bf16.mxu0 0
        %1499 = vmatpush1.bf16.msra.mxu0 0
        %1500 = vmatprep.subr.bf16.mxu0 0
        %1501 = vmatpush1.bf16.msra.mxu0 0
        %1502 = vmatprep.subr.bf16.mxu0 0
        %1503 = vmatpush1.bf16.msra.mxu0 0
        %1504 = vmatprep.subr.bf16.mxu0 0
        %1505 = vmatpush1.bf16.msra.mxu0 0
        %1506 = vmatprep.subr.bf16.mxu0 0
        %1507 = vmatpush1.bf16.msra.mxu0 0
        %1508 = vmatprep.subr.bf16.mxu0 0
        %1509 = vmatpush1.bf16.msra.mxu0 0
        %1510 = vmatprep.mubr.bf16.mxu0 0
        %1511 = vmatmul.mubr.bf16.gmra.mrb[0].mxu0 %v703
        %v1512 = vpop.f32.mrb[0].mxu0
        %v1513 = vadd.f32 %v1400, %v1512
        %v1514 = vpop.f32.mrb[0].mxu0
        %v1515 = vpop.f32.mrb[0].mxu0
        %v1516 = vadd.f32 %v1403, %v1515
        %v1517 = vpop.f32.mrb[0].mxu0
        %1518 = vmatprep.mubr.bf16.mxu0 0
        %1519 = vmatmul.mubr.bf16.gmra.mrb[0].mxu0 %v746
        %v1520 = vpop.f32.mrb[0].mxu0
        %v1521 = vadd.f32 %v1408, %v1520
        %v1522 = vpop.f32.mrb[0].mxu0
        %v1523 = vpop.f32.mrb[0].mxu0
        %v1524 = vadd.f32 %v1411, %v1523
        %v1525 = vpop.f32.mrb[0].mxu0
        %1526 = vmatprep.mubr.bf16.mxu0 0
        %1527 = vmatmul.mubr.bf16.gmra.mrb[0].mxu0 %v789
        %v1528 = vpop.f32.mrb[0].mxu0
        %v1529 = vadd.f32 %v1416, %v1528
        %v1530 = vpop.f32.mrb[0].mxu0
        %v1531 = vpop.f32.mrb[0].mxu0
        %v1532 = vadd.f32 %v1419, %v1531
        %v1533 = vpop.f32.mrb[0].mxu0
        %1534 = vmatprep.mubr.bf16.mxu0 0
        %1535 = vmatmul.mubr.bf16.gmra.mrb[0].mxu0 %v832
        %v1536 = vpop.f32.mrb[0].mxu0
        %v1537 = vadd.f32 %v1424, %v1536
        %v1538 = vpop.f32.mrb[0].mxu0
        %v1539 = vpop.f32.mrb[0].mxu0
        %v1540 = vadd.f32 %v1427, %v1539
        %v1541 = vpop.f32.mrb[0].mxu0
        %1542 = vmatprep.mubr.bf16.mxu0 0
        %1543 = vmatmul.mubr.bf16.gmra.mrb[0].mxu0 %v875
        %v1544 = vpop.f32.mrb[0].mxu0
        %v1545 = vadd.f32 %v1432, %v1544
        %v1546 = vpop.f32.mrb[0].mxu0
        %v1547 = vpop.f32.mrb[0].mxu0
        %v1548 = vadd.f32 %v1435, %v1547
        %v1549 = vpop.f32.mrb[0].mxu0
        %1550 = vmatprep.mubr.bf16.mxu0 0
        %1551 = vmatmul.mubr.bf16.gmra.mrb[0].mxu0 %v918
        %v1552 = vpop.f32.mrb[0].mxu0
        %v1553 = vadd.f32 %v1440, %v1552
        %v1554 = vpop.f32.mrb[0].mxu0
        %v1555 = vpop.f32.mrb[0].mxu0
        %v1556 = vadd.f32 %v1443, %v1555
        %v1557 = vpop.f32.mrb[0].mxu0
        %1558 = vmatprep.mubr.bf16.mxu0 0
        %1559 = vmatmul.mubr.bf16.gmra.mrb[0].mxu0 %v961
        %v1560 = vpop.f32.mrb[0].mxu0
        %v1561 = vadd.f32 %v1448, %v1560
        %v1562 = vpop.f32.mrb[0].mxu0
        %v1563 = vpop.f32.mrb[0].mxu0
        %v1564 = vadd.f32 %v1451, %v1563
        %v1565 = vpop.f32.mrb[0].mxu0
        %1566 = vmatprep.mubr.bf16.mxu0 0
        %1567 = vmatmul.mubr.bf16.gmra.mrb[0].mxu0 %v1004
        %v1568 = vpop.f32.mrb[0].mxu0
        %v1569 = vadd.f32 %v1456, %v1568
        %v1570 = vpop.f32.mrb[0].mxu0
        %v1571 = vpop.f32.mrb[0].mxu0
        %v1572 = vadd.f32 %v1459, %v1571
        %v1573 = vpop.f32.mrb[0].mxu0
        %1574 = vmatprep.mubr.bf16.mxu0 0
        %1575 = vmatmul.mubr.bf16.gmra.mrb[0].mxu0 %v1047
        %v1576 = vpop.f32.mrb[0].mxu0
        %v1577 = vadd.f32 %v1464, %v1576
        %v1578 = vpop.f32.mrb[0].mxu0
        %v1579 = vpop.f32.mrb[0].mxu0
        %v1580 = vadd.f32 %v1467, %v1579
        %v1581 = vpop.f32.mrb[0].mxu0
        %1582 = vmatprep.mubr.bf16.mxu0 0
        %1583 = vmatmul.mubr.bf16.gmra.mrb[0].mxu0 %v1168
        %v1584 = vpop.f32.mrb[0].mxu0
        %v1585 = vadd.f32 %v1472, %v1584
        %v1586 = vpop.f32.mrb[0].mxu0
        %v1587 = vpop.f32.mrb[0].mxu0
        %v1588 = vadd.f32 %v1475, %v1587
        %v1589 = vpop.f32.mrb[0].mxu0
        %1590 = vdwg.mxu0
        %v1639 = vunpack.c.l.b16 %v1078
        %v1640 = vunpack.c.l.b16 %v1079
        %v1641 = vunpack.c.l.b16 %v1080
        %v1642 = vunpack.c.l.b16 %v1081
        %v1643 = vunpack.c.l.b16 %v1082
        %v1644 = vunpack.c.l.b16 %v1083
        %v1645 = vunpack.c.l.b16 %v1084
        %v1646 = vunpack.c.l.b16 %v1085
        %v1647 = vunpack.c.l.b16 %v1086
        %v1648 = vunpack.c.l.b16 %v1087
        %v1649 = vunpack.c.l.b16 %v1088
        %v1650 = vunpack.c.l.b16 %v1089
        %v1651 = vunpack.c.l.b16 %v1090
        %v1652 = vunpack.c.l.b16 %v1091
        %v1653 = vunpack.c.l.b16 %v1092
        %v1654 = vunpack.c.l.b16 %v1093
        %v1655 = vunpack.c.l.b16 %v1094
        %v1656 = vunpack.c.l.b16 %v1095
        %v1657 = vunpack.c.l.b16 %v1096
        %v1658 = vunpack.c.l.b16 %v1097
        %v1659 = vunpack.c.l.b16 %v1098
        %v1660 = vunpack.c.l.b16 %v1099
        %v1661 = vunpack.c.l.b16 %v1100
        %v1662 = vunpack.c.l.b16 %v1101
        %v1663 = vunpack.c.l.b16 %v1102
        %v1664 = vunpack.c.l.b16 %v1103
        %v1665 = vunpack.c.l.b16 %v1104
        %v1666 = vunpack.c.l.b16 %v1105
        %v1667 = vunpack.c.l.b16 %v1106
        %v1668 = vunpack.c.l.b16 %v1107
        %v1669 = vunpack.c.l.b16 %v1108
        %v1670 = vunpack.c.l.b16 %v1109
        %v1671 = vunpack.c.l.b16 %v1110
        %v1672 = vunpack.c.l.b16 %v1111
        %v1673 = vunpack.c.l.b16 %v1112
        %v1674 = vunpack.c.l.b16 %v1113
        %v1675 = vunpack.c.l.b16 %v1114
        %v1676 = vunpack.c.l.b16 %v1115
        %v1677 = vunpack.c.l.b16 %v1116
        %v1678 = vunpack.c.l.b16 %v1117
        %v1679 = vunpack.c.l.b16 %v1118
        %v1680 = vunpack.c.l.b16 %v1119
        %v1681 = vunpack.c.l.b16 %v1120
        %v1682 = vunpack.c.l.b16 %v1121
        %v1683 = vunpack.c.l.b16 %v1122
        %v1684 = vunpack.c.l.b16 %v1123
        %v1685 = vunpack.c.l.b16 %v1124
        %v1686 = vunpack.c.l.b16 %v1125
        %v1687 = vpack.c.b16 %v1640, %v1639
        %v1688 = vpack.c.b16 %v1642, %v1641
        %v1689 = vpack.c.b16 %v1644, %v1643
        %v1690 = vpack.c.b16 %v1646, %v1645
        %v1691 = vpack.c.b16 %v1648, %v1647
        %v1692 = vpack.c.b16 %v1650, %v1649
        %v1693 = vpack.c.b16 %v1652, %v1651
        %v1694 = vpack.c.b16 %v1654, %v1653
        %v1695 = vpack.c.b16 %v1656, %v1655
        %v1696 = vpack.c.b16 %v1658, %v1657
        %v1697 = vpack.c.b16 %v1660, %v1659
        %v1698 = vpack.c.b16 %v1662, %v1661
        %v1699 = vpack.c.b16 %v1664, %v1663
        %v1700 = vpack.c.b16 %v1666, %v1665
        %v1701 = vpack.c.b16 %v1668, %v1667
        %v1702 = vpack.c.b16 %v1670, %v1669
        %v1703 = vpack.c.b16 %v1672, %v1671
        %v1704 = vpack.c.b16 %v1674, %v1673
        %v1705 = vpack.c.b16 %v1676, %v1675
        %v1706 = vpack.c.b16 %v1678, %v1677
        %v1707 = vpack.c.b16 %v1680, %v1679
        %v1708 = vpack.c.b16 %v1682, %v1681
        %v1709 = vpack.c.b16 %v1684, %v1683
        %v1710 = vpack.c.b16 %v1686, %v1685
        %1735 = vmatprep.subr.bf16.mxu0 0
        %1736 = vmatpush1.bf16.msra.mxu0 %v1687
        %1737 = vmatprep.subr.bf16.mxu0 0
        %1738 = vmatpush1.bf16.msra.mxu0 %v1688
        %1739 = vmatprep.subr.bf16.mxu0 0
        %1740 = vmatpush1.bf16.msra.mxu0 %v1689
        %1741 = vmatprep.subr.bf16.mxu0 0
        %1742 = vmatpush1.bf16.msra.mxu0 %v1690
        %1743 = vmatprep.subr.bf16.mxu0 0
        %1744 = vmatpush1.bf16.msra.mxu0 %v1691
        %1745 = vmatprep.subr.bf16.mxu0 0
        %1746 = vmatpush1.bf16.msra.mxu0 %v1692
        %1747 = vmatprep.subr.bf16.mxu0 0
        %1748 = vmatpush1.bf16.msra.mxu0 %v1693
        %1749 = vmatprep.subr.bf16.mxu0 0
        %1750 = vmatpush1.bf16.msra.mxu0 %v1694
        %1751 = vmatprep.subr.bf16.mxu0 0
        %1752 = vmatpush1.bf16.msra.mxu0 %v1695
        %1753 = vmatprep.subr.bf16.mxu0 0
        %1754 = vmatpush1.bf16.msra.mxu0 %v1696
        %1755 = vmatprep.subr.bf16.mxu0 0
        %1756 = vmatpush1.bf16.msra.mxu0 %v1697
        %1757 = vmatprep.subr.bf16.mxu0 0
        %1758 = vmatpush1.bf16.msra.mxu0 %v1698
        %1759 = vmatprep.subr.bf16.mxu0 0
        %1760 = vmatpush1.bf16.msra.mxu0 %v1699
        %1761 = vmatprep.subr.bf16.mxu0 0
        %1762 = vmatpush1.bf16.msra.mxu0 %v1700
        %1763 = vmatprep.subr.bf16.mxu0 0
        %1764 = vmatpush1.bf16.msra.mxu0 %v1701
        %1765 = vmatprep.subr.bf16.mxu0 0
        %1766 = vmatpush1.bf16.msra.mxu0 %v1702
        %1767 = vmatprep.mubr.bf16.mxu0 %v643
        %1768 = vmatmul.mubr.bf16.gmra.mrb[0].mxu0 %v634
        %v1769 = vpop.f32.mrb[0].mxu0
        %v1770 = vadd.f32 %v1513, %v1769
        %v1771 = vpop.f32.mrb[0].mxu0
        %v1772 = vpop.f32.mrb[0].mxu0
        %v1773 = vadd.f32 %v1516, %v1772
        %v1774 = vpop.f32.mrb[0].mxu0
        %1775 = vmatprep.mubr.bf16.mxu0 %v686
        %1776 = vmatmul.mubr.bf16.gmra.mrb[0].mxu0 %v677
        %v1777 = vpop.f32.mrb[0].mxu0
        %v1778 = vadd.f32 %v1521, %v1777
        %v1779 = vpop.f32.mrb[0].mxu0
        %v1780 = vpop.f32.mrb[0].mxu0
        %v1781 = vadd.f32 %v1524, %v1780
        %v1782 = vpop.f32.mrb[0].mxu0
        %1783 = vmatprep.mubr.bf16.mxu0 %v729
        %1784 = vmatmul.mubr.bf16.gmra.mrb[0].mxu0 %v720
        %v1785 = vpop.f32.mrb[0].mxu0
        %v1786 = vadd.f32 %v1529, %v1785
        %v1787 = vpop.f32.mrb[0].mxu0
        %v1788 = vpop.f32.mrb[0].mxu0
        %v1789 = vadd.f32 %v1532, %v1788
        %v1790 = vpop.f32.mrb[0].mxu0
        %1791 = vmatprep.mubr.bf16.mxu0 %v772
        %1792 = vmatmul.mubr.bf16.gmra.mrb[0].mxu0 %v763
        %v1793 = vpop.f32.mrb[0].mxu0
        %v1794 = vadd.f32 %v1537, %v1793
        %v1795 = vpop.f32.mrb[0].mxu0
        %v1796 = vpop.f32.mrb[0].mxu0
        %v1797 = vadd.f32 %v1540, %v1796
        %v1798 = vpop.f32.mrb[0].mxu0
        %1799 = vmatprep.mubr.bf16.mxu0 %v815
        %1800 = vmatmul.mubr.bf16.gmra.mrb[0].mxu0 %v806
        %v1801 = vpop.f32.mrb[0].mxu0
        %v1802 = vadd.f32 %v1545, %v1801
        %v1803 = vpop.f32.mrb[0].mxu0
        %v1804 = vpop.f32.mrb[0].mxu0
        %v1805 = vadd.f32 %v1548, %v1804
        %v1806 = vpop.f32.mrb[0].mxu0
        %1807 = vmatprep.mubr.bf16.mxu0 %v858
        %1808 = vmatmul.mubr.bf16.gmra.mrb[0].mxu0 %v849
        %v1809 = vpop.f32.mrb[0].mxu0
        %v1810 = vadd.f32 %v1553, %v1809
        %v1811 = vpop.f32.mrb[0].mxu0
        %v1812 = vpop.f32.mrb[0].mxu0
        %v1813 = vadd.f32 %v1556, %v1812
        %v1814 = vpop.f32.mrb[0].mxu0
        %1815 = vmatprep.mubr.bf16.mxu0 %v901
        %1816 = vmatmul.mubr.bf16.gmra.mrb[0].mxu0 %v892
        %v1817 = vpop.f32.mrb[0].mxu0
        %v1818 = vadd.f32 %v1561, %v1817
        %v1819 = vpop.f32.mrb[0].mxu0
        %v1820 = vpop.f32.mrb[0].mxu0
        %v1821 = vadd.f32 %v1564, %v1820
        %v1822 = vpop.f32.mrb[0].mxu0
        %1823 = vmatprep.mubr.bf16.mxu0 %v944
        %1824 = vmatmul.mubr.bf16.gmra.mrb[0].mxu0 %v935
        %v1825 = vpop.f32.mrb[0].mxu0
        %v1826 = vadd.f32 %v1569, %v1825
        %v1827 = vpop.f32.mrb[0].mxu0
        %v1828 = vpop.f32.mrb[0].mxu0
        %v1829 = vadd.f32 %v1572, %v1828
        %v1830 = vpop.f32.mrb[0].mxu0
        %1831 = vmatprep.mubr.bf16.mxu0 %v987
        %1832 = vmatmul.mubr.bf16.gmra.mrb[0].mxu0 %v978
        %v1833 = vpop.f32.mrb[0].mxu0
        %v1834 = vadd.f32 %v1577, %v1833
        %v1835 = vpop.f32.mrb[0].mxu0
        %v1836 = vpop.f32.mrb[0].mxu0
        %v1837 = vadd.f32 %v1580, %v1836
        %v1838 = vpop.f32.mrb[0].mxu0
        %1839 = vmatprep.mubr.bf16.mxu0 %v1030
        %1840 = vmatmul.mubr.bf16.gmra.mrb[0].mxu0 %v1021
        %v1841 = vpop.f32.mrb[0].mxu0
        %v1842 = vadd.f32 %v1585, %v1841
        %v1843 = vpop.f32.mrb[0].mxu0
        %v1844 = vpop.f32.mrb[0].mxu0
        %v1845 = vadd.f32 %v1588, %v1844
        %v1846 = vpop.f32.mrb[0].mxu0
        %1847 = vdwg.mxu0
        %1848 = vmatprep.subr.bf16.mxu0 0
        %1849 = vmatpush1.bf16.msra.mxu0 %v1703
        %1850 = vmatprep.subr.bf16.mxu0 0
        %1851 = vmatpush1.bf16.msra.mxu0 %v1704
        %1852 = vmatprep.subr.bf16.mxu0 0
        %1853 = vmatpush1.bf16.msra.mxu0 %v1705
        %1854 = vmatprep.subr.bf16.mxu0 0
        %1855 = vmatpush1.bf16.msra.mxu0 %v1706
        %1856 = vmatprep.subr.bf16.mxu0 0
        %1857 = vmatpush1.bf16.msra.mxu0 %v1707
        %1858 = vmatprep.subr.bf16.mxu0 0
        %1859 = vmatpush1.bf16.msra.mxu0 %v1708
        %1860 = vmatprep.subr.bf16.mxu0 0
        %1861 = vmatpush1.bf16.msra.mxu0 %v1709
        %1862 = vmatprep.subr.bf16.mxu0 0
        %1863 = vmatpush1.bf16.msra.mxu0 %v1710
        %1864 = vmatprep.subr.bf16.mxu0 0
        %1865 = vmatpush1.bf16.msra.mxu0 0
        %1866 = vmatprep.subr.bf16.mxu0 0
        %1867 = vmatpush1.bf16.msra.mxu0 0
        %1868 = vmatprep.subr.bf16.mxu0 0
        %1869 = vmatpush1.bf16.msra.mxu0 0
        %1870 = vmatprep.subr.bf16.mxu0 0
        %1871 = vmatpush1.bf16.msra.mxu0 0
        %1872 = vmatprep.subr.bf16.mxu0 0
        %1873 = vmatpush1.bf16.msra.mxu0 0
        %1874 = vmatprep.subr.bf16.mxu0 0
        %1875 = vmatpush1.bf16.msra.mxu0 0
        %1876 = vmatprep.subr.bf16.mxu0 0
        %1877 = vmatpush1.bf16.msra.mxu0 0
        %1878 = vmatprep.subr.bf16.mxu0 0
        %1879 = vmatpush1.bf16.msra.mxu0 0
        %1880 = vmatprep.mubr.bf16.mxu0 0
        %1881 = vmatmul.mubr.bf16.gmra.mrb[0].mxu0 %v660
        %v1882 = vpop.f32.mrb[0].mxu0
        %v1883 = vadd.f32 %v1770, %v1882
        %v1884 = vpop.f32.mrb[0].mxu0
        %v1885 = vpop.f32.mrb[0].mxu0
        %v1886 = vadd.f32 %v1773, %v1885
        %v1887 = vpop.f32.mrb[0].mxu0
        %1888 = vmatprep.mubr.bf16.mxu0 0
        %1889 = vmatmul.mubr.bf16.gmra.mrb[0].mxu0 %v703
        %v1890 = vpop.f32.mrb[0].mxu0
        %v1891 = vadd.f32 %v1778, %v1890
        %v1892 = vpop.f32.mrb[0].mxu0
        %v1893 = vpop.f32.mrb[0].mxu0
        %v1894 = vadd.f32 %v1781, %v1893
        %v1895 = vpop.f32.mrb[0].mxu0
        %1896 = vmatprep.mubr.bf16.mxu0 0
        %1897 = vmatmul.mubr.bf16.gmra.mrb[0].mxu0 %v746
        %v1898 = vpop.f32.mrb[0].mxu0
        %v1899 = vadd.f32 %v1786, %v1898
        %v1900 = vpop.f32.mrb[0].mxu0
        %v1901 = vpop.f32.mrb[0].mxu0
        %v1902 = vadd.f32 %v1789, %v1901
        %v1903 = vpop.f32.mrb[0].mxu0
        %1904 = vmatprep.mubr.bf16.mxu0 0
        %1905 = vmatmul.mubr.bf16.gmra.mrb[0].mxu0 %v789
        %v1906 = vpop.f32.mrb[0].mxu0
        %v1907 = vadd.f32 %v1794, %v1906
        %v1908 = vpop.f32.mrb[0].mxu0
        %v1909 = vpop.f32.mrb[0].mxu0
        %v1910 = vadd.f32 %v1797, %v1909
        %v1911 = vpop.f32.mrb[0].mxu0
        %1912 = vmatprep.mubr.bf16.mxu0 0
        %1913 = vmatmul.mubr.bf16.gmra.mrb[0].mxu0 %v832
        %v1914 = vpop.f32.mrb[0].mxu0
        %v1915 = vadd.f32 %v1802, %v1914
        %v1916 = vpop.f32.mrb[0].mxu0
        %v1917 = vpop.f32.mrb[0].mxu0
        %v1918 = vadd.f32 %v1805, %v1917
        %v1919 = vpop.f32.mrb[0].mxu0
        %1920 = vmatprep.mubr.bf16.mxu0 0
        %1921 = vmatmul.mubr.bf16.gmra.mrb[0].mxu0 %v875
        %v1922 = vpop.f32.mrb[0].mxu0
        %v1923 = vadd.f32 %v1810, %v1922
        %v1924 = vpop.f32.mrb[0].mxu0
        %v1925 = vpop.f32.mrb[0].mxu0
        %v1926 = vadd.f32 %v1813, %v1925
        %v1927 = vpop.f32.mrb[0].mxu0
        %1928 = vmatprep.mubr.bf16.mxu0 0
        %1929 = vmatmul.mubr.bf16.gmra.mrb[0].mxu0 %v918
        %v1930 = vpop.f32.mrb[0].mxu0
        %v1931 = vadd.f32 %v1818, %v1930
        %v1932 = vpop.f32.mrb[0].mxu0
        %v1933 = vpop.f32.mrb[0].mxu0
        %v1934 = vadd.f32 %v1821, %v1933
        %v1935 = vpop.f32.mrb[0].mxu0
        %1936 = vmatprep.mubr.bf16.mxu0 0
        %1937 = vmatmul.mubr.bf16.gmra.mrb[0].mxu0 %v961
        %v1938 = vpop.f32.mrb[0].mxu0
        %v1939 = vadd.f32 %v1826, %v1938
        %v1940 = vpop.f32.mrb[0].mxu0
        %v1941 = vpop.f32.mrb[0].mxu0
        %v1942 = vadd.f32 %v1829, %v1941
        %v1943 = vpop.f32.mrb[0].mxu0
        %1944 = vmatprep.mubr.bf16.mxu0 0
        %1945 = vmatmul.mubr.bf16.gmra.mrb[0].mxu0 %v1004
        %v1946 = vpop.f32.mrb[0].mxu0
        %v1947 = vadd.f32 %v1834, %v1946
        %v1948 = vpop.f32.mrb[0].mxu0
        %v1949 = vpop.f32.mrb[0].mxu0
        %v1950 = vadd.f32 %v1837, %v1949
        %v1951 = vpop.f32.mrb[0].mxu0
        %1952 = vmatprep.mubr.bf16.mxu0 0
        %1953 = vmatmul.mubr.bf16.gmra.mrb[0].mxu0 %v1047
        %v1954 = vpop.f32.mrb[0].mxu0
        %v1955 = vadd.f32 %v1842, %v1954
        %v1956 = vpop.f32.mrb[0].mxu0
        %v1957 = vpop.f32.mrb[0].mxu0
        %v1958 = vadd.f32 %v1845, %v1957
        %v1959 = vpop.f32.mrb[0].mxu0
        %1960 = vdwg.mxu0
        %v1962 = vshrl.u32 %v434, 16
        %v1964 = vrot.slane %v1962, 3
        %v1965 = vshll.u32 %v434, 16
        %v1967 = vrot.slane %v1965, 4
        %v1968 = vor.u32 %v1964, %v1967
        %v1970 = vshrl.u32 %v435, 16
        %v1972 = vrot.slane %v1970, 3
        %v1973 = vshll.u32 %v435, 16
        %v1975 = vrot.slane %v1973, 4
        %v1976 = vor.u32 %v1972, %v1975
        %v1977 = vsel %vm617, %v1968, %v1976
        %v1979 = vshrl.u32 %v543, 16
        %v1981 = vrot.slane %v1979, 3
        %v1982 = vshll.u32 %v543, 16
        %v1984 = vrot.slane %v1982, 4
        %v1985 = vor.u32 %v1981, %v1984
        %v1986 = vsel %vm617, %v1985, %v1985
        %v1988 = vshrl.u32 %v614, 16
        %v1990 = vrot.slane %v1988, 3
        %v1991 = vshll.u32 %v614, 16
        %v1993 = vrot.slane %v1991, 4
        %v1994 = vor.u32 %v1990, %v1993
        %v1996 = vshrl.u32 %v616, 16
        %v1998 = vrot.slane %v1996, 3
        %v1999 = vshll.u32 %v616, 16
        %v2001 = vrot.slane %v1999, 4
        %v2002 = vor.u32 %v1998, %v2001
        %v2003 = vsel %vm617, %v1994, %v2002
        %s2007 = scalar_lea.vmem [#allocation6], 384
        %v2008 = vld [vmem:[%s2007] sm:$0xf]
        %v2009 = vld [vmem:[%s2007 + $0x4] sm:$0xf]
        %v2010 = vld [vmem:[%s2007 + $0x8] sm:$0xf]
        %v2011 = vld [vmem:[%s2007 + $0xc] sm:$0xf]
        %v2012 = vld [vmem:[%s2007 + $0x10] sm:$0xf]
        %v2013 = vld [vmem:[%s2007 + $0x14] sm:$0xf]
        %v2014 = vld [vmem:[%s2007 + $0x18] sm:$0xf]
        %v2015 = vld [vmem:[%s2007 + $0x1c] sm:$0xf]
        %v2016 = vld [vmem:[%s2007 + $0x20] sm:$0xf]
        %v2017 = vld [vmem:[%s2007 + $0x24] sm:$0xf]
        %v2018 = vld [vmem:[%s2007 + $0x28] sm:$0xf]
        %v2019 = vld [vmem:[%s2007 + $0x2c] sm:$0xf]
        %v2020 = vld [vmem:[%s2007 + $0x30] sm:$0xf]
        %v2021 = vld [vmem:[%s2007 + $0x34] sm:$0xf]
        %v2022 = vld [vmem:[%s2007 + $0x38] sm:$0xf]
        %v2023 = vld [vmem:[%s2007 + $0x3c] sm:$0xf]
        %v2024 = vld [vmem:[%s2007 + $0x40] sm:$0xf]
        %v2025 = vld [vmem:[%s2007 + $0x44] sm:$0xf]
        %v2026 = vld [vmem:[%s2007 + $0x48] sm:$0xf]
        %v2027 = vld [vmem:[%s2007 + $0x4c] sm:$0xf]
        %v2028 = vld [vmem:[%s2007 + $0x50] sm:$0xf]
        %v2029 = vld [vmem:[%s2007 + $0x54] sm:$0xf]
        %v2030 = vld [vmem:[%s2007 + $0x58] sm:$0xf]
        %v2031 = vld [vmem:[%s2007 + $0x5c] sm:$0xf]
        %v2032 = vld [vmem:[%s2007 + $0x60] sm:$0xf]
        %v2033 = vld [vmem:[%s2007 + $0x64] sm:$0xf]
        %v2034 = vld [vmem:[%s2007 + $0x68] sm:$0xf]
        %v2035 = vld [vmem:[%s2007 + $0x6c] sm:$0xf]
        %v2036 = vld [vmem:[%s2007 + $0x70] sm:$0xf]
        %v2037 = vld [vmem:[%s2007 + $0x74] sm:$0xf]
        %v2038 = vld [vmem:[%s2007 + $0x78] sm:$0xf]
        %v2039 = vld [vmem:[%s2007 + $0x7c] sm:$0xf]
        %v2040 = vld [vmem:[%s2007 + $0x80] sm:$0xf]
        %v2041 = vld [vmem:[%s2007 + $0x84] sm:$0xf]
        %v2042 = vld [vmem:[%s2007 + $0x88] sm:$0xf]
        %v2043 = vld [vmem:[%s2007 + $0x8c] sm:$0xf]
        %v2044 = vld [vmem:[%s2007 + $0x90] sm:$0xf]
        %v2045 = vld [vmem:[%s2007 + $0x94] sm:$0xf]
        %v2046 = vld [vmem:[%s2007 + $0x98] sm:$0xf]
        %v2047 = vld [vmem:[%s2007 + $0x9c] sm:$0xf]
        %v2048 = vld [vmem:[%s2007 + $0xa0] sm:$0xf]
        %v2049 = vld [vmem:[%s2007 + $0xa4] sm:$0xf]
        %v2050 = vld [vmem:[%s2007 + $0xa8] sm:$0xf]
        %v2051 = vld [vmem:[%s2007 + $0xac] sm:$0xf]
        %v2052 = vld [vmem:[%s2007 + $0xb0] sm:$0xf]
        %v2053 = vld [vmem:[%s2007 + $0xb4] sm:$0xf]
        %v2054 = vld [vmem:[%s2007 + $0xb8] sm:$0xf]
        %v2055 = vld [vmem:[%s2007 + $0xbc] sm:$0xf]
        %v2104 = vunpack.c.l.b16 %v2008
        %v2105 = vunpack.c.l.b16 %v2009
        %v2106 = vunpack.c.l.b16 %v2010
        %v2107 = vunpack.c.l.b16 %v2011
        %v2108 = vunpack.c.l.b16 %v2012
        %v2109 = vunpack.c.l.b16 %v2013
        %v2110 = vunpack.c.l.b16 %v2014
        %v2111 = vunpack.c.l.b16 %v2015
        %v2112 = vunpack.c.l.b16 %v2016
        %v2113 = vunpack.c.l.b16 %v2017
        %v2114 = vunpack.c.l.b16 %v2018
        %v2115 = vunpack.c.l.b16 %v2019
        %v2116 = vunpack.c.l.b16 %v2020
        %v2117 = vunpack.c.l.b16 %v2021
        %v2118 = vunpack.c.l.b16 %v2022
        %v2119 = vunpack.c.l.b16 %v2023
        %v2120 = vunpack.c.l.b16 %v2024
        %v2121 = vunpack.c.l.b16 %v2025
        %v2122 = vunpack.c.l.b16 %v2026
        %v2123 = vunpack.c.l.b16 %v2027
        %v2124 = vunpack.c.l.b16 %v2028
        %v2125 = vunpack.c.l.b16 %v2029
        %v2126 = vunpack.c.l.b16 %v2030
        %v2127 = vunpack.c.l.b16 %v2031
        %v2128 = vunpack.c.l.b16 %v2032
        %v2129 = vunpack.c.l.b16 %v2033
        %v2130 = vunpack.c.l.b16 %v2034
        %v2131 = vunpack.c.l.b16 %v2035
        %v2132 = vunpack.c.l.b16 %v2036
        %v2133 = vunpack.c.l.b16 %v2037
        %v2134 = vunpack.c.l.b16 %v2038
        %v2135 = vunpack.c.l.b16 %v2039
        %v2136 = vunpack.c.l.b16 %v2040
        %v2137 = vunpack.c.l.b16 %v2041
        %v2138 = vunpack.c.l.b16 %v2042
        %v2139 = vunpack.c.l.b16 %v2043
        %v2140 = vunpack.c.l.b16 %v2044
        %v2141 = vunpack.c.l.b16 %v2045
        %v2142 = vunpack.c.l.b16 %v2046
        %v2143 = vunpack.c.l.b16 %v2047
        %v2144 = vunpack.c.l.b16 %v2048
        %v2145 = vunpack.c.l.b16 %v2049
        %v2146 = vunpack.c.l.b16 %v2050
        %v2147 = vunpack.c.l.b16 %v2051
        %v2148 = vunpack.c.l.b16 %v2052
        %v2149 = vunpack.c.l.b16 %v2053
        %v2150 = vunpack.c.l.b16 %v2054
        %v2151 = vunpack.c.l.b16 %v2055
        %v2152 = vpack.c.b16 %v2105, %v2104
        %v2153 = vpack.c.b16 %v2107, %v2106
        %v2154 = vpack.c.b16 %v2109, %v2108
        %v2155 = vpack.c.b16 %v2111, %v2110
        %v2156 = vpack.c.b16 %v2113, %v2112
        %v2157 = vpack.c.b16 %v2115, %v2114
        %v2158 = vpack.c.b16 %v2117, %v2116
        %v2159 = vpack.c.b16 %v2119, %v2118
        %v2160 = vpack.c.b16 %v2121, %v2120
        %v2161 = vpack.c.b16 %v2123, %v2122
        %v2162 = vpack.c.b16 %v2125, %v2124
        %v2163 = vpack.c.b16 %v2127, %v2126
        %v2164 = vpack.c.b16 %v2129, %v2128
        %v2165 = vpack.c.b16 %v2131, %v2130
        %v2166 = vpack.c.b16 %v2133, %v2132
        %v2167 = vpack.c.b16 %v2135, %v2134
        %v2168 = vpack.c.b16 %v2137, %v2136
        %v2169 = vpack.c.b16 %v2139, %v2138
        %v2170 = vpack.c.b16 %v2141, %v2140
        %v2171 = vpack.c.b16 %v2143, %v2142
        %v2172 = vpack.c.b16 %v2145, %v2144
        %v2173 = vpack.c.b16 %v2147, %v2146
        %v2174 = vpack.c.b16 %v2149, %v2148
        %v2175 = vpack.c.b16 %v2151, %v2150
        %2200 = vmatprep.subr.bf16.mxu0 0
        %2201 = vmatpush1.bf16.msra.mxu0 %v2152
        %2202 = vmatprep.subr.bf16.mxu0 0
        %2203 = vmatpush1.bf16.msra.mxu0 %v2153
        %2204 = vmatprep.subr.bf16.mxu0 0
        %2205 = vmatpush1.bf16.msra.mxu0 %v2154
        %2206 = vmatprep.subr.bf16.mxu0 0
        %2207 = vmatpush1.bf16.msra.mxu0 %v2155
        %2208 = vmatprep.subr.bf16.mxu0 0
        %2209 = vmatpush1.bf16.msra.mxu0 %v2156
        %2210 = vmatprep.subr.bf16.mxu0 0
        %2211 = vmatpush1.bf16.msra.mxu0 %v2157
        %2212 = vmatprep.subr.bf16.mxu0 0
        %2213 = vmatpush1.bf16.msra.mxu0 %v2158
        %2214 = vmatprep.subr.bf16.mxu0 0
        %2215 = vmatpush1.bf16.msra.mxu0 %v2159
        %2216 = vmatprep.subr.bf16.mxu0 0
        %2217 = vmatpush1.bf16.msra.mxu0 %v2160
        %2218 = vmatprep.subr.bf16.mxu0 0
        %2219 = vmatpush1.bf16.msra.mxu0 %v2161
        %2220 = vmatprep.subr.bf16.mxu0 0
        %2221 = vmatpush1.bf16.msra.mxu0 %v2162
        %2222 = vmatprep.subr.bf16.mxu0 0
        %2223 = vmatpush1.bf16.msra.mxu0 %v2163
        %2224 = vmatprep.subr.bf16.mxu0 0
        %2225 = vmatpush1.bf16.msra.mxu0 %v2164
        %2226 = vmatprep.subr.bf16.mxu0 0
        %2227 = vmatpush1.bf16.msra.mxu0 %v2165
        %2228 = vmatprep.subr.bf16.mxu0 0
        %2229 = vmatpush1.bf16.msra.mxu0 %v2166
        %2230 = vmatprep.subr.bf16.mxu0 0
        %2231 = vmatpush1.bf16.msra.mxu0 %v2167
        %2232 = vmatprep.mubr.bf16.mxu0 %v729
        %2233 = vmatmul.mubr.bf16.gmra.mrb[0].mxu0 %v720
        %v2234 = vpop.f32.mrb[0].mxu0
        %v2235 = vadd.f32 0.0, %v2234
        %v2236 = vpop.f32.mrb[0].mxu0
        %v2237 = vpop.f32.mrb[0].mxu0
        %v2238 = vadd.f32 0.0, %v2237
        %v2239 = vpop.f32.mrb[0].mxu0
        %2240 = vmatprep.mubr.bf16.mxu0 %v772
        %2241 = vmatmul.mubr.bf16.gmra.mrb[0].mxu0 %v763
        %v2242 = vpop.f32.mrb[0].mxu0
        %v2243 = vadd.f32 0.0, %v2242
        %v2244 = vpop.f32.mrb[0].mxu0
        %v2245 = vpop.f32.mrb[0].mxu0
        %v2246 = vadd.f32 0.0, %v2245
        %v2247 = vpop.f32.mrb[0].mxu0
        %2248 = vmatprep.mubr.bf16.mxu0 %v815
        %2249 = vmatmul.mubr.bf16.gmra.mrb[0].mxu0 %v806
        %v2250 = vpop.f32.mrb[0].mxu0
        %v2251 = vadd.f32 0.0, %v2250
        %v2252 = vpop.f32.mrb[0].mxu0
        %v2253 = vpop.f32.mrb[0].mxu0
        %v2254 = vadd.f32 0.0, %v2253
        %v2255 = vpop.f32.mrb[0].mxu0
        %2256 = vmatprep.mubr.bf16.mxu0 %v858
        %2257 = vmatmul.mubr.bf16.gmra.mrb[0].mxu0 %v849
        %v2258 = vpop.f32.mrb[0].mxu0
        %v2259 = vadd.f32 0.0, %v2258
        %v2260 = vpop.f32.mrb[0].mxu0
        %v2261 = vpop.f32.mrb[0].mxu0
        %v2262 = vadd.f32 0.0, %v2261
        %v2263 = vpop.f32.mrb[0].mxu0
        %2264 = vmatprep.mubr.bf16.mxu0 %v901
        %2265 = vmatmul.mubr.bf16.gmra.mrb[0].mxu0 %v892
        %v2266 = vpop.f32.mrb[0].mxu0
        %v2267 = vadd.f32 0.0, %v2266
        %v2268 = vpop.f32.mrb[0].mxu0
        %v2269 = vpop.f32.mrb[0].mxu0
        %v2270 = vadd.f32 0.0, %v2269
        %v2271 = vpop.f32.mrb[0].mxu0
        %2272 = vmatprep.mubr.bf16.mxu0 %v944
        %2273 = vmatmul.mubr.bf16.gmra.mrb[0].mxu0 %v935
        %v2274 = vpop.f32.mrb[0].mxu0
        %v2275 = vadd.f32 0.0, %v2274
        %v2276 = vpop.f32.mrb[0].mxu0
        %v2277 = vpop.f32.mrb[0].mxu0
        %v2278 = vadd.f32 0.0, %v2277
        %v2279 = vpop.f32.mrb[0].mxu0
        %2280 = vmatprep.mubr.bf16.mxu0 %v987
        %2281 = vmatmul.mubr.bf16.gmra.mrb[0].mxu0 %v978
        %v2282 = vpop.f32.mrb[0].mxu0
        %v2283 = vadd.f32 0.0, %v2282
        %v2284 = vpop.f32.mrb[0].mxu0
        %v2285 = vpop.f32.mrb[0].mxu0
        %v2286 = vadd.f32 0.0, %v2285
        %v2287 = vpop.f32.mrb[0].mxu0
        %2288 = vmatprep.mubr.bf16.mxu0 %v1030
        %2289 = vmatmul.mubr.bf16.gmra.mrb[0].mxu0 %v1021
        %v2290 = vpop.f32.mrb[0].mxu0
        %v2291 = vadd.f32 0.0, %v2290
        %v2292 = vpop.f32.mrb[0].mxu0
        %v2293 = vpop.f32.mrb[0].mxu0
        %v2294 = vadd.f32 0.0, %v2293
        %v2295 = vpop.f32.mrb[0].mxu0
        %2296 = vmatprep.mubr.bf16.mxu0 %v1151
        %2297 = vmatmul.mubr.bf16.gmra.mrb[0].mxu0 %v1142
        %v2298 = vpop.f32.mrb[0].mxu0
        %v2299 = vadd.f32 0.0, %v2298
        %v2300 = vpop.f32.mrb[0].mxu0
        %v2301 = vpop.f32.mrb[0].mxu0
        %v2302 = vadd.f32 0.0, %v2301
        %v2303 = vpop.f32.mrb[0].mxu0
        %2304 = vmatprep.mubr.bf16.mxu0 %v1986
        %2305 = vmatmul.mubr.bf16.gmra.mrb[0].mxu0 %v1977
        %v2306 = vpop.f32.mrb[0].mxu0
        %v2307 = vadd.f32 0.0, %v2306
        %v2308 = vpop.f32.mrb[0].mxu0
        %v2309 = vpop.f32.mrb[0].mxu0
        %v2310 = vadd.f32 0.0, %v2309
        %v2311 = vpop.f32.mrb[0].mxu0
        %2312 = vdwg.mxu0
        %2313 = vmatprep.subr.bf16.mxu0 0
        %2314 = vmatpush1.bf16.msra.mxu0 %v2168
        %2315 = vmatprep.subr.bf16.mxu0 0
        %2316 = vmatpush1.bf16.msra.mxu0 %v2169
        %2317 = vmatprep.subr.bf16.mxu0 0
        %2318 = vmatpush1.bf16.msra.mxu0 %v2170
        %2319 = vmatprep.subr.bf16.mxu0 0
        %2320 = vmatpush1.bf16.msra.mxu0 %v2171
        %2321 = vmatprep.subr.bf16.mxu0 0
        %2322 = vmatpush1.bf16.msra.mxu0 %v2172
        %2323 = vmatprep.subr.bf16.mxu0 0
        %2324 = vmatpush1.bf16.msra.mxu0 %v2173
        %2325 = vmatprep.subr.bf16.mxu0 0
        %2326 = vmatpush1.bf16.msra.mxu0 %v2174
        %2327 = vmatprep.subr.bf16.mxu0 0
        %2328 = vmatpush1.bf16.msra.mxu0 %v2175
        %2329 = vmatprep.subr.bf16.mxu0 0
        %2330 = vmatpush1.bf16.msra.mxu0 0
        %2331 = vmatprep.subr.bf16.mxu0 0
        %2332 = vmatpush1.bf16.msra.mxu0 0
        %2333 = vmatprep.subr.bf16.mxu0 0
        %2334 = vmatpush1.bf16.msra.mxu0 0
        %2335 = vmatprep.subr.bf16.mxu0 0
        %2336 = vmatpush1.bf16.msra.mxu0 0
        %2337 = vmatprep.subr.bf16.mxu0 0
        %2338 = vmatpush1.bf16.msra.mxu0 0
        %2339 = vmatprep.subr.bf16.mxu0 0
        %2340 = vmatpush1.bf16.msra.mxu0 0
        %2341 = vmatprep.subr.bf16.mxu0 0
        %2342 = vmatpush1.bf16.msra.mxu0 0
        %2343 = vmatprep.subr.bf16.mxu0 0
        %2344 = vmatpush1.bf16.msra.mxu0 0
        %2345 = vmatprep.mubr.bf16.mxu0 0
        %2346 = vmatmul.mubr.bf16.gmra.mrb[0].mxu0 %v746
        %v2347 = vpop.f32.mrb[0].mxu0
        %v2348 = vadd.f32 %v2235, %v2347
        %v2349 = vpop.f32.mrb[0].mxu0
        %v2350 = vpop.f32.mrb[0].mxu0
        %v2351 = vadd.f32 %v2238, %v2350
        %v2352 = vpop.f32.mrb[0].mxu0
        %2353 = vmatprep.mubr.bf16.mxu0 0
        %2354 = vmatmul.mubr.bf16.gmra.mrb[0].mxu0 %v789
        %v2355 = vpop.f32.mrb[0].mxu0
        %v2356 = vadd.f32 %v2243, %v2355
        %v2357 = vpop.f32.mrb[0].mxu0
        %v2358 = vpop.f32.mrb[0].mxu0
        %v2359 = vadd.f32 %v2246, %v2358
        %v2360 = vpop.f32.mrb[0].mxu0
        %2361 = vmatprep.mubr.bf16.mxu0 0
        %2362 = vmatmul.mubr.bf16.gmra.mrb[0].mxu0 %v832
        %v2363 = vpop.f32.mrb[0].mxu0
        %v2364 = vadd.f32 %v2251, %v2363
        %v2365 = vpop.f32.mrb[0].mxu0
        %v2366 = vpop.f32.mrb[0].mxu0
        %v2367 = vadd.f32 %v2254, %v2366
        %v2368 = vpop.f32.mrb[0].mxu0
        %2369 = vmatprep.mubr.bf16.mxu0 0
        %2370 = vmatmul.mubr.bf16.gmra.mrb[0].mxu0 %v875
        %v2371 = vpop.f32.mrb[0].mxu0
        %v2372 = vadd.f32 %v2259, %v2371
        %v2373 = vpop.f32.mrb[0].mxu0
        %v2374 = vpop.f32.mrb[0].mxu0
        %v2375 = vadd.f32 %v2262, %v2374
        %v2376 = vpop.f32.mrb[0].mxu0
        %2377 = vmatprep.mubr.bf16.mxu0 0
        %2378 = vmatmul.mubr.bf16.gmra.mrb[0].mxu0 %v918
        %v2379 = vpop.f32.mrb[0].mxu0
        %v2380 = vadd.f32 %v2267, %v2379
        %v2381 = vpop.f32.mrb[0].mxu0
        %v2382 = vpop.f32.mrb[0].mxu0
        %v2383 = vadd.f32 %v2270, %v2382
        %v2384 = vpop.f32.mrb[0].mxu0
        %2385 = vmatprep.mubr.bf16.mxu0 0
        %2386 = vmatmul.mubr.bf16.gmra.mrb[0].mxu0 %v961
        %v2387 = vpop.f32.mrb[0].mxu0
        %v2388 = vadd.f32 %v2275, %v2387
        %v2389 = vpop.f32.mrb[0].mxu0
        %v2390 = vpop.f32.mrb[0].mxu0
        %v2391 = vadd.f32 %v2278, %v2390
        %v2392 = vpop.f32.mrb[0].mxu0
        %2393 = vmatprep.mubr.bf16.mxu0 0
        %2394 = vmatmul.mubr.bf16.gmra.mrb[0].mxu0 %v1004
        %v2395 = vpop.f32.mrb[0].mxu0
        %v2396 = vadd.f32 %v2283, %v2395
        %v2397 = vpop.f32.mrb[0].mxu0
        %v2398 = vpop.f32.mrb[0].mxu0
        %v2399 = vadd.f32 %v2286, %v2398
        %v2400 = vpop.f32.mrb[0].mxu0
        %2401 = vmatprep.mubr.bf16.mxu0 0
        %2402 = vmatmul.mubr.bf16.gmra.mrb[0].mxu0 %v1047
        %v2403 = vpop.f32.mrb[0].mxu0
        %v2404 = vadd.f32 %v2291, %v2403
        %v2405 = vpop.f32.mrb[0].mxu0
        %v2406 = vpop.f32.mrb[0].mxu0
        %v2407 = vadd.f32 %v2294, %v2406
        %v2408 = vpop.f32.mrb[0].mxu0
        %2409 = vmatprep.mubr.bf16.mxu0 0
        %2410 = vmatmul.mubr.bf16.gmra.mrb[0].mxu0 %v1168
        %v2411 = vpop.f32.mrb[0].mxu0
        %v2412 = vadd.f32 %v2299, %v2411
        %v2413 = vpop.f32.mrb[0].mxu0
        %v2414 = vpop.f32.mrb[0].mxu0
        %v2415 = vadd.f32 %v2302, %v2414
        %v2416 = vpop.f32.mrb[0].mxu0
        %2417 = vmatprep.mubr.bf16.mxu0 0
        %2418 = vmatmul.mubr.bf16.gmra.mrb[0].mxu0 %v2003
        %v2419 = vpop.f32.mrb[0].mxu0
        %v2420 = vadd.f32 %v2307, %v2419
        %v2421 = vpop.f32.mrb[0].mxu0
        %v2422 = vpop.f32.mrb[0].mxu0
        %v2423 = vadd.f32 %v2310, %v2422
        %v2424 = vpop.f32.mrb[0].mxu0
        %2425 = vdwg.mxu0
        %v2426 = vadd.f32 %v1883, %v2348
        %v2427 = vadd.f32 %v1886, %v2351
        %v2428 = vadd.f32 %v1891, %v2356
        %v2429 = vadd.f32 %v1894, %v2359
        %v2430 = vadd.f32 %v1899, %v2364
        %v2431 = vadd.f32 %v1902, %v2367
        %v2432 = vadd.f32 %v1907, %v2372
        %v2433 = vadd.f32 %v1910, %v2375
        %v2434 = vadd.f32 %v1915, %v2380
        %v2435 = vadd.f32 %v1918, %v2383
        %v2436 = vadd.f32 %v1923, %v2388
        %v2437 = vadd.f32 %v1926, %v2391
        %v2438 = vadd.f32 %v1931, %v2396
        %v2439 = vadd.f32 %v1934, %v2399
        %v2440 = vadd.f32 %v1939, %v2404
        %v2441 = vadd.f32 %v1942, %v2407
        %v2442 = vadd.f32 %v1947, %v2412
        %v2443 = vadd.f32 %v1950, %v2415
        %v2444 = vadd.f32 %v1955, %v2420
        %v2445 = vadd.f32 %v1958, %v2423
        %v2446 = vld [vmem:[%s2] sm:$0x1]
        %v2448 = vlaneseq
        %v2449 = vshrl.u32 %v2448, 7
        %v2450 = vsub.s32 0, %v2449
        %v2451 = vrot.slane %v2446, %v2450
        %v2453 = vadd.f32 %v2426, %v2451
        %v2454 = vadd.f32 %v2427, %v2451
        %v2455 = vadd.f32 %v2428, %v2451
        %v2456 = vadd.f32 %v2429, %v2451
        %v2457 = vadd.f32 %v2430, %v2451
        %v2458 = vadd.f32 %v2431, %v2451
        %v2459 = vadd.f32 %v2432, %v2451
        %v2460 = vadd.f32 %v2433, %v2451
        %v2461 = vadd.f32 %v2434, %v2451
        %v2462 = vadd.f32 %v2435, %v2451
        %v2463 = vadd.f32 %v2436, %v2451
        %v2464 = vadd.f32 %v2437, %v2451
        %v2465 = vadd.f32 %v2438, %v2451
        %v2466 = vadd.f32 %v2439, %v2451
        %v2467 = vadd.f32 %v2440, %v2451
        %v2468 = vadd.f32 %v2441, %v2451
        %v2469 = vadd.f32 %v2442, %v2451
        %v2470 = vadd.f32 %v2443, %v2451
        %v2471 = vadd.f32 %v2444, %v2451
        %v2472 = vadd.f32 %v2445, %v2451
        %v2473 = vmax.f32 %v2453, 0.0
        %v2474 = vmax.f32 %v2454, 0.0
        %v2475 = vmax.f32 %v2455, 0.0
        %v2476 = vmax.f32 %v2456, 0.0
        %v2477 = vmax.f32 %v2457, 0.0
        %v2478 = vmax.f32 %v2458, 0.0
        %v2479 = vmax.f32 %v2459, 0.0
        %v2480 = vmax.f32 %v2460, 0.0
        %v2481 = vmax.f32 %v2461, 0.0
        %v2482 = vmax.f32 %v2462, 0.0
        %v2483 = vmax.f32 %v2463, 0.0
        %v2484 = vmax.f32 %v2464, 0.0
        %v2485 = vmax.f32 %v2465, 0.0
        %v2486 = vmax.f32 %v2466, 0.0
        %v2487 = vmax.f32 %v2467, 0.0
        %v2488 = vmax.f32 %v2468, 0.0
        %v2489 = vmax.f32 %v2469, 0.0
        %v2490 = vmax.f32 %v2470, 0.0
        %v2491 = vmax.f32 %v2471, 0.0
        %v2492 = vmax.f32 %v2472, 0.0
        %v2493 = vpack.c.bf16 %v2474, %v2473
        %v2494 = vpack.c.bf16 %v2476, %v2475
        %v2495 = vpack.c.bf16 %v2478, %v2477
        %v2496 = vpack.c.bf16 %v2480, %v2479
        %v2497 = vpack.c.bf16 %v2482, %v2481
        %v2498 = vpack.c.bf16 %v2484, %v2483
        %v2499 = vpack.c.bf16 %v2486, %v2485
        %v2500 = vpack.c.bf16 %v2488, %v2487
        %v2501 = vpack.c.bf16 %v2490, %v2489
        %v2502 = vpack.c.bf16 %v2492, %v2491
        %v2513 = vrot.slane %v2493, 4
        %v2514 = vrot.slane %v2494, 4
        %v2515 = vrot.slane %v2495, 4
        %v2516 = vrot.slane %v2496, 4
        %v2517 = vrot.slane %v2497, 4
        %v2518 = vrot.slane %v2498, 4
        %v2519 = vrot.slane %v2499, 4
        %v2520 = vrot.slane %v2500, 4
        %v2521 = vrot.slane %v2501, 4
        %v2522 = vrot.slane %v2502, 4
        %2533 = vst [vmem:[#allocation2] sm:$0xf0] %v2513
        %2534 = vst [vmem:[#allocation2 + $0x8] sm:$0xf] %v2513
        %2535 = vst [vmem:[#allocation2 + $0x10] sm:$0xf0] %v2514
        %2536 = vst [vmem:[#allocation2 + $0x18] sm:$0xf] %v2514
        %2537 = vst [vmem:[#allocation2 + $0x20] sm:$0xf0] %v2515
        %2538 = vst [vmem:[#allocation2 + $0x28] sm:$0xf] %v2515
        %2539 = vst [vmem:[#allocation2 + $0x30] sm:$0xf0] %v2516
        %2540 = vst [vmem:[#allocation2 + $0x38] sm:$0xf] %v2516
        %2541 = vst [vmem:[#allocation2 + $0x40] sm:$0xf0] %v2517
        %2542 = vst [vmem:[#allocation2 + $0x48] sm:$0xf] %v2517
        %2543 = vst [vmem:[#allocation2 + $0x50] sm:$0xf0] %v2518
        %2544 = vst [vmem:[#allocation2 + $0x58] sm:$0xf] %v2518
        %2545 = vst [vmem:[#allocation2 + $0x60] sm:$0xf0] %v2519
        %2546 = vst [vmem:[#allocation2 + $0x68] sm:$0xf] %v2519
        %2547 = vst [vmem:[#allocation2 + $0x70] sm:$0xf0] %v2520
        %2548 = vst [vmem:[#allocation2 + $0x78] sm:$0xf] %v2520
        %2549 = vst [vmem:[#allocation2 + $0x80] sm:$0xf0] %v2521
        %2550 = vst [vmem:[#allocation2 + $0x88] sm:$0xf] %v2521
        %2551 = vst [vmem:[#allocation2 + $0x90] sm:$0xf0] %v2522
        %2552 = vst [vmem:[#allocation2 + $0x98] sm:$0xf] %v2522
        %2553 = vst [vmem:[#allocation2] sm:$0xf] 0
        %2554 = vst [vmem:[#allocation2 + $0x10] sm:$0xf] 0
        %2555 = vst [vmem:[#allocation2 + $0x20] sm:$0xf] 0
        %2556 = vst [vmem:[#allocation2 + $0x30] sm:$0xf] 0
        %2557 = vst [vmem:[#allocation2 + $0x40] sm:$0xf] 0
        %2558 = vst [vmem:[#allocation2 + $0x50] sm:$0xf] 0
        %2559 = vst [vmem:[#allocation2 + $0x60] sm:$0xf] 0
        %2560 = vst [vmem:[#allocation2 + $0x70] sm:$0xf] 0
        %2561 = vst [vmem:[#allocation2 + $0x80] sm:$0xf] 0
        %2562 = vst [vmem:[#allocation2 + $0x90] sm:$0xf] 0
        %2563 = vst [vmem:[#allocation2 + $0x8] sm:$0xf0] 0
        %2564 = vst [vmem:[#allocation2 + $0x18] sm:$0xf0] 0
        %2565 = vst [vmem:[#allocation2 + $0x28] sm:$0xf0] 0
        %2566 = vst [vmem:[#allocation2 + $0x38] sm:$0xf0] 0
        %2567 = vst [vmem:[#allocation2 + $0x48] sm:$0xf0] 0
        %2568 = vst [vmem:[#allocation2 + $0x58] sm:$0xf0] 0
        %2569 = vst [vmem:[#allocation2 + $0x68] sm:$0xf0] 0
        %2570 = vst [vmem:[#allocation2 + $0x78] sm:$0xf0] 0
        %2571 = vst [vmem:[#allocation2 + $0x88] sm:$0xf0] 0
        %2572 = vst [vmem:[#allocation2 + $0x98] sm:$0xf0] 0
        %p2573 = scmp.eq.s32.totalorder %s28, 0
        // Predicated region
        $region53: #{tpu_custom_call.1} parent=39 // pred_check
          %p2574 = pneg %p2573
        $region54: #{tpu_custom_call.1} parent=39 // pred_check_branch
          %2576 = sbr.rel (%p2574) target = $region56
        $region55: #{tpu_custom_call.1} parent=39 // pred_region
          %2577 = vst [vmem:[#allocation2] sm:$0xff] 0
          %2578 = vst [vmem:[#allocation2 + $0x8] sm:$0xff] 0
        $region56: #{tpu_custom_call.1} parent=39 // pred_fallthru
          _
        %p2579 = scmp.eq.s32.totalorder %s28, 1
        // Predicated region
        $region57: #{tpu_custom_call.1} parent=39 // pred_check
          %p2580 = pneg %p2579
        $region58: #{tpu_custom_call.1} parent=39 // pred_check_branch
          %2582 = sbr.rel (%p2580) target = $region60
        $region59: #{tpu_custom_call.1} parent=39 // pred_region
          %s2583 = scalar_lea.vmem [#allocation2], 144
          %2584 = vst [vmem:[%s2583] sm:$0xff] 0
          %2585 = vst [vmem:[%s2583 + $0x8] sm:$0xff] 0
        $region60: #{tpu_custom_call.1} parent=39 // pred_fallthru
          _
        %v2586 = vld [vmem:[#allocation2] sm:$0xf8]
        %v2587 = vld [vmem:[#allocation2 + $0x8] sm:$0xf]
        %v2588 = vld [vmem:[#allocation2 + $0x10] sm:$0xf8]
        %v2589 = vld [vmem:[#allocation2 + $0x18] sm:$0xf]
        %v2590 = vld [vmem:[#allocation2 + $0x20] sm:$0xf8]
        %v2591 = vld [vmem:[#allocation2 + $0x28] sm:$0xf]
        %v2592 = vld [vmem:[#allocation2 + $0x30] sm:$0xf8]
        %v2593 = vld [vmem:[#allocation2 + $0x38] sm:$0xf]
        %v2594 = vld [vmem:[#allocation2 + $0x40] sm:$0xf8]
        %v2595 = vld [vmem:[#allocation2 + $0x48] sm:$0xf]
        %v2596 = vld [vmem:[#allocation2 + $0x50] sm:$0xf8]
        %v2597 = vld [vmem:[#allocation2 + $0x58] sm:$0xf]
        %v2598 = vld [vmem:[#allocation2 + $0x60] sm:$0xf8]
        %v2599 = vld [vmem:[#allocation2 + $0x68] sm:$0xf]
        %v2600 = vld [vmem:[#allocation2 + $0x70] sm:$0xf8]
        %v2601 = vld [vmem:[#allocation2 + $0x78] sm:$0xf]
        %v2602 = vld [vmem:[#allocation2 + $0x80] sm:$0xf8]
        %v2603 = vld [vmem:[#allocation2 + $0x88] sm:$0xf]
        %v2604 = vld [vmem:[#allocation2 + $0x90] sm:$0xf8]
        %v2605 = vld [vmem:[#allocation2 + $0x98] sm:$0xf]
        %v2606 = vld [vmem:[#allocation2] sm:$0xf0]
        %v2607 = vld [vmem:[#allocation2 + $0x10] sm:$0xf0]
        %v2608 = vld [vmem:[#allocation2 + $0x20] sm:$0xf0]
        %v2609 = vld [vmem:[#allocation2 + $0x30] sm:$0xf0]
        %v2610 = vld [vmem:[#allocation2 + $0x40] sm:$0xf0]
        %v2611 = vld [vmem:[#allocation2 + $0x50] sm:$0xf0]
        %v2612 = vld [vmem:[#allocation2 + $0x60] sm:$0xf0]
        %v2613 = vld [vmem:[#allocation2 + $0x70] sm:$0xf0]
        %v2614 = vld [vmem:[#allocation2 + $0x80] sm:$0xf0]
        %v2615 = vld [vmem:[#allocation2 + $0x90] sm:$0xf0]
        %v2616 = vld [vmem:[#allocation2 + $0x8] sm:$0x1f]
        %v2617 = vld [vmem:[#allocation2 + $0x18] sm:$0x1f]
        %v2618 = vld [vmem:[#allocation2 + $0x28] sm:$0x1f]
        %v2619 = vld [vmem:[#allocation2 + $0x38] sm:$0x1f]
        %v2620 = vld [vmem:[#allocation2 + $0x48] sm:$0x1f]
        %v2621 = vld [vmem:[#allocation2 + $0x58] sm:$0x1f]
        %v2622 = vld [vmem:[#allocation2 + $0x68] sm:$0x1f]
        %v2623 = vld [vmem:[#allocation2 + $0x78] sm:$0x1f]
        %v2624 = vld [vmem:[#allocation2 + $0x88] sm:$0x1f]
        %v2625 = vld [vmem:[#allocation2 + $0x98] sm:$0x1f]
        %vm2626 = vsmask.f32 7424
        %v2628 = vshrl.u32 %v2606, 16
        %v2630 = vshll.u32 %v2606, 16
        %v2632 = vrot.slane %v2630, 1
        %v2633 = vor.u32 %v2628, %v2632
        %v2635 = vshll.u32 %v2587, 16
        %v2637 = vrot.slane %v2635, 1
        %v2638 = vsel %vm2626, %v2633, %v2637
        %v2639 = vshrl.u32 %v2587, 16
        %v2641 = vor.u32 %v2639, %v2637
        %v2643 = vshrl.u32 %v2607, 16
        %v2645 = vshll.u32 %v2607, 16
        %v2647 = vrot.slane %v2645, 1
        %v2648 = vor.u32 %v2643, %v2647
        %v2650 = vshll.u32 %v2589, 16
        %v2652 = vrot.slane %v2650, 1
        %v2653 = vsel %vm2626, %v2648, %v2652
        %v2654 = vshrl.u32 %v2589, 16
        %v2656 = vor.u32 %v2654, %v2652
        %v2658 = vshrl.u32 %v2608, 16
        %v2660 = vshll.u32 %v2608, 16
        %v2662 = vrot.slane %v2660, 1
        %v2663 = vor.u32 %v2658, %v2662
        %v2665 = vshll.u32 %v2591, 16
        %v2667 = vrot.slane %v2665, 1
        %v2668 = vsel %vm2626, %v2663, %v2667
        %v2669 = vshrl.u32 %v2591, 16
        %v2671 = vor.u32 %v2669, %v2667
        %v2673 = vshrl.u32 %v2609, 16
        %v2675 = vshll.u32 %v2609, 16
        %v2677 = vrot.slane %v2675, 1
        %v2678 = vor.u32 %v2673, %v2677
        %v2680 = vshll.u32 %v2593, 16
        %v2682 = vrot.slane %v2680, 1
        %v2683 = vsel %vm2626, %v2678, %v2682
        %v2684 = vshrl.u32 %v2593, 16
        %v2686 = vor.u32 %v2684, %v2682
        %v2688 = vshrl.u32 %v2610, 16
        %v2690 = vshll.u32 %v2610, 16
        %v2692 = vrot.slane %v2690, 1
        %v2693 = vor.u32 %v2688, %v2692
        %v2695 = vshll.u32 %v2595, 16
        %v2697 = vrot.slane %v2695, 1
        %v2698 = vsel %vm2626, %v2693, %v2697
        %v2699 = vshrl.u32 %v2595, 16
        %v2701 = vor.u32 %v2699, %v2697
        %v2703 = vshrl.u32 %v2611, 16
        %v2705 = vshll.u32 %v2611, 16
        %v2707 = vrot.slane %v2705, 1
        %v2708 = vor.u32 %v2703, %v2707
        %v2710 = vshll.u32 %v2597, 16
        %v2712 = vrot.slane %v2710, 1
        %v2713 = vsel %vm2626, %v2708, %v2712
        %v2714 = vshrl.u32 %v2597, 16
        %v2716 = vor.u32 %v2714, %v2712
        %v2718 = vshrl.u32 %v2612, 16
        %v2720 = vshll.u32 %v2612, 16
        %v2722 = vrot.slane %v2720, 1
        %v2723 = vor.u32 %v2718, %v2722
        %v2725 = vshll.u32 %v2599, 16
        %v2727 = vrot.slane %v2725, 1
        %v2728 = vsel %vm2626, %v2723, %v2727
        %v2729 = vshrl.u32 %v2599, 16
        %v2731 = vor.u32 %v2729, %v2727
        %v2733 = vshrl.u32 %v2613, 16
        %v2735 = vshll.u32 %v2613, 16
        %v2737 = vrot.slane %v2735, 1
        %v2738 = vor.u32 %v2733, %v2737
        %v2740 = vshll.u32 %v2601, 16
        %v2742 = vrot.slane %v2740, 1
        %v2743 = vsel %vm2626, %v2738, %v2742
        %v2744 = vshrl.u32 %v2601, 16
        %v2746 = vor.u32 %v2744, %v2742
        %v2748 = vshrl.u32 %v2614, 16
        %v2750 = vshll.u32 %v2614, 16
        %v2752 = vrot.slane %v2750, 1
        %v2753 = vor.u32 %v2748, %v2752
        %v2755 = vshll.u32 %v2603, 16
        %v2757 = vrot.slane %v2755, 1
        %v2758 = vsel %vm2626, %v2753, %v2757
        %v2759 = vshrl.u32 %v2603, 16
        %v2761 = vor.u32 %v2759, %v2757
        %v2763 = vshrl.u32 %v2615, 16
        %v2765 = vshll.u32 %v2615, 16
        %v2767 = vrot.slane %v2765, 1
        %v2768 = vor.u32 %v2763, %v2767
        %v2770 = vshll.u32 %v2605, 16
        %v2772 = vrot.slane %v2770, 1
        %v2773 = vsel %vm2626, %v2768, %v2772
        %v2774 = vshrl.u32 %v2605, 16
        %v2776 = vor.u32 %v2774, %v2772
        %vm2797 = vcmask 1046528
        %v2798 = vrot.slane %v2606, 1
        %v2799 = vrot.slane %v2616, 1
        %v2800 = vsel %vm2797, %v2798, %v2799
        %v2801 = vrot.slane %v2607, 1
        %v2802 = vrot.slane %v2617, 1
        %v2803 = vsel %vm2797, %v2801, %v2802
        %v2804 = vrot.slane %v2608, 1
        %v2805 = vrot.slane %v2618, 1
        %v2806 = vsel %vm2797, %v2804, %v2805
        %v2807 = vrot.slane %v2609, 1
        %v2808 = vrot.slane %v2619, 1
        %v2809 = vsel %vm2797, %v2807, %v2808
        %v2810 = vrot.slane %v2610, 1
        %v2811 = vrot.slane %v2620, 1
        %v2812 = vsel %vm2797, %v2810, %v2811
        %v2813 = vrot.slane %v2611, 1
        %v2814 = vrot.slane %v2621, 1
        %v2815 = vsel %vm2797, %v2813, %v2814
        %v2816 = vrot.slane %v2612, 1
        %v2817 = vrot.slane %v2622, 1
        %v2818 = vsel %vm2797, %v2816, %v2817
        %v2819 = vrot.slane %v2613, 1
        %v2820 = vrot.slane %v2623, 1
        %v2821 = vsel %vm2797, %v2819, %v2820
        %v2822 = vrot.slane %v2614, 1
        %v2823 = vrot.slane %v2624, 1
        %v2824 = vsel %vm2797, %v2822, %v2823
        %v2825 = vrot.slane %v2615, 1
        %v2826 = vrot.slane %v2625, 1
        %v2827 = vsel %vm2797, %v2825, %v2826
        %v2829 = vshrl.u32 %v2586, 16
        %v2831 = vrot.slane %v2829, 3
        %v2832 = vshll.u32 %v2586, 16
        %v2834 = vrot.slane %v2832, 4
        %v2835 = vor.u32 %v2831, %v2834
        %v2836 = vrot.slane %v2639, 3
        %v2837 = vrot.slane %v2635, 4
        %v2838 = vor.u32 %v2836, %v2837
        %v2839 = vsel %vm617, %v2835, %v2838
        %v2841 = vshrl.u32 %v2638, 16
        %v2843 = vrot.slane %v2841, 3
        %v2844 = vshll.u32 %v2638, 16
        %v2846 = vrot.slane %v2844, 4
        %v2847 = vor.u32 %v2843, %v2846
        %v2849 = vshrl.u32 %v2641, 16
        %v2851 = vrot.slane %v2849, 3
        %v2852 = vshll.u32 %v2641, 16
        %v2854 = vrot.slane %v2852, 4
        %v2855 = vor.u32 %v2851, %v2854
        %v2856 = vsel %vm617, %v2847, %v2855
        %v2858 = vshrl.u32 %v2800, 16
        %v2860 = vrot.slane %v2858, 3
        %v2861 = vshll.u32 %v2800, 16
        %v2863 = vrot.slane %v2861, 4
        %v2864 = vor.u32 %v2860, %v2863
        %v2866 = vshrl.u32 %v2799, 16
        %v2868 = vrot.slane %v2866, 3
        %v2869 = vshll.u32 %v2799, 16
        %v2871 = vrot.slane %v2869, 4
        %v2872 = vor.u32 %v2868, %v2871
        %v2873 = vsel %vm617, %v2864, %v2872
        %v2875 = vshrl.u32 %v2588, 16
        %v2877 = vrot.slane %v2875, 3
        %v2878 = vshll.u32 %v2588, 16
        %v2880 = vrot.slane %v2878, 4
        %v2881 = vor.u32 %v2877, %v2880
        %v2882 = vrot.slane %v2654, 3
        %v2883 = vrot.slane %v2650, 4
        %v2884 = vor.u32 %v2882, %v2883
        %v2885 = vsel %vm617, %v2881, %v2884
        %v2887 = vshrl.u32 %v2653, 16
        %v2889 = vrot.slane %v2887, 3
        %v2890 = vshll.u32 %v2653, 16
        %v2892 = vrot.slane %v2890, 4
        %v2893 = vor.u32 %v2889, %v2892
        %v2895 = vshrl.u32 %v2656, 16
        %v2897 = vrot.slane %v2895, 3
        %v2898 = vshll.u32 %v2656, 16
        %v2900 = vrot.slane %v2898, 4
        %v2901 = vor.u32 %v2897, %v2900
        %v2902 = vsel %vm617, %v2893, %v2901
        %v2904 = vshrl.u32 %v2803, 16
        %v2906 = vrot.slane %v2904, 3
        %v2907 = vshll.u32 %v2803, 16
        %v2909 = vrot.slane %v2907, 4
        %v2910 = vor.u32 %v2906, %v2909
        %v2912 = vshrl.u32 %v2802, 16
        %v2914 = vrot.slane %v2912, 3
        %v2915 = vshll.u32 %v2802, 16
        %v2917 = vrot.slane %v2915, 4
        %v2918 = vor.u32 %v2914, %v2917
        %v2919 = vsel %vm617, %v2910, %v2918
        %v2921 = vshrl.u32 %v2590, 16
        %v2923 = vrot.slane %v2921, 3
        %v2924 = vshll.u32 %v2590, 16
        %v2926 = vrot.slane %v2924, 4
        %v2927 = vor.u32 %v2923, %v2926
        %v2928 = vrot.slane %v2669, 3
        %v2929 = vrot.slane %v2665, 4
        %v2930 = vor.u32 %v2928, %v2929
        %v2931 = vsel %vm617, %v2927, %v2930
        %v2933 = vshrl.u32 %v2668, 16
        %v2935 = vrot.slane %v2933, 3
        %v2936 = vshll.u32 %v2668, 16
        %v2938 = vrot.slane %v2936, 4
        %v2939 = vor.u32 %v2935, %v2938
        %v2941 = vshrl.u32 %v2671, 16
        %v2943 = vrot.slane %v2941, 3
        %v2944 = vshll.u32 %v2671, 16
        %v2946 = vrot.slane %v2944, 4
        %v2947 = vor.u32 %v2943, %v2946
        %v2948 = vsel %vm617, %v2939, %v2947
        %v2950 = vshrl.u32 %v2806, 16
        %v2952 = vrot.slane %v2950, 3
        %v2953 = vshll.u32 %v2806, 16
        %v2955 = vrot.slane %v2953, 4
        %v2956 = vor.u32 %v2952, %v2955
        %v2958 = vshrl.u32 %v2805, 16
        %v2960 = vrot.slane %v2958, 3
        %v2961 = vshll.u32 %v2805, 16
        %v2963 = vrot.slane %v2961, 4
        %v2964 = vor.u32 %v2960, %v2963
        %v2965 = vsel %vm617, %v2956, %v2964
        %v2967 = vshrl.u32 %v2592, 16
        %v2969 = vrot.slane %v2967, 3
        %v2970 = vshll.u32 %v2592, 16
        %v2972 = vrot.slane %v2970, 4
        %v2973 = vor.u32 %v2969, %v2972
        %v2974 = vrot.slane %v2684, 3
        %v2975 = vrot.slane %v2680, 4
        %v2976 = vor.u32 %v2974, %v2975
        %v2977 = vsel %vm617, %v2973, %v2976
        %v2979 = vshrl.u32 %v2683, 16
        %v2981 = vrot.slane %v2979, 3
        %v2982 = vshll.u32 %v2683, 16
        %v2984 = vrot.slane %v2982, 4
        %v2985 = vor.u32 %v2981, %v2984
        %v2987 = vshrl.u32 %v2686, 16
        %v2989 = vrot.slane %v2987, 3
        %v2990 = vshll.u32 %v2686, 16
        %v2992 = vrot.slane %v2990, 4
        %v2993 = vor.u32 %v2989, %v2992
        %v2994 = vsel %vm617, %v2985, %v2993
        %v2996 = vshrl.u32 %v2809, 16
        %v2998 = vrot.slane %v2996, 3
        %v2999 = vshll.u32 %v2809, 16
        %v3001 = vrot.slane %v2999, 4
        %v3002 = vor.u32 %v2998, %v3001
        %v3004 = vshrl.u32 %v2808, 16
        %v3006 = vrot.slane %v3004, 3
        %v3007 = vshll.u32 %v2808, 16
        %v3009 = vrot.slane %v3007, 4
        %v3010 = vor.u32 %v3006, %v3009
        %v3011 = vsel %vm617, %v3002, %v3010
        %v3013 = vshrl.u32 %v2594, 16
        %v3015 = vrot.slane %v3013, 3
        %v3016 = vshll.u32 %v2594, 16
        %v3018 = vrot.slane %v3016, 4
        %v3019 = vor.u32 %v3015, %v3018
        %v3020 = vrot.slane %v2699, 3
        %v3021 = vrot.slane %v2695, 4
        %v3022 = vor.u32 %v3020, %v3021
        %v3023 = vsel %vm617, %v3019, %v3022
        %v3025 = vshrl.u32 %v2698, 16
        %v3027 = vrot.slane %v3025, 3
        %v3028 = vshll.u32 %v2698, 16
        %v3030 = vrot.slane %v3028, 4
        %v3031 = vor.u32 %v3027, %v3030
        %v3033 = vshrl.u32 %v2701, 16
        %v3035 = vrot.slane %v3033, 3
        %v3036 = vshll.u32 %v2701, 16
        %v3038 = vrot.slane %v3036, 4
        %v3039 = vor.u32 %v3035, %v3038
        %v3040 = vsel %vm617, %v3031, %v3039
        %v3042 = vshrl.u32 %v2812, 16
        %v3044 = vrot.slane %v3042, 3
        %v3045 = vshll.u32 %v2812, 16
        %v3047 = vrot.slane %v3045, 4
        %v3048 = vor.u32 %v3044, %v3047
        %v3050 = vshrl.u32 %v2811, 16
        %v3052 = vrot.slane %v3050, 3
        %v3053 = vshll.u32 %v2811, 16
        %v3055 = vrot.slane %v3053, 4
        %v3056 = vor.u32 %v3052, %v3055
        %v3057 = vsel %vm617, %v3048, %v3056
        %v3059 = vshrl.u32 %v2596, 16
        %v3061 = vrot.slane %v3059, 3
        %v3062 = vshll.u32 %v2596, 16
        %v3064 = vrot.slane %v3062, 4
        %v3065 = vor.u32 %v3061, %v3064
        %v3066 = vrot.slane %v2714, 3
        %v3067 = vrot.slane %v2710, 4
        %v3068 = vor.u32 %v3066, %v3067
        %v3069 = vsel %vm617, %v3065, %v3068
        %v3071 = vshrl.u32 %v2713, 16
        %v3073 = vrot.slane %v3071, 3
        %v3074 = vshll.u32 %v2713, 16
        %v3076 = vrot.slane %v3074, 4
        %v3077 = vor.u32 %v3073, %v3076
        %v3079 = vshrl.u32 %v2716, 16
        %v3081 = vrot.slane %v3079, 3
        %v3082 = vshll.u32 %v2716, 16
        %v3084 = vrot.slane %v3082, 4
        %v3085 = vor.u32 %v3081, %v3084
        %v3086 = vsel %vm617, %v3077, %v3085
        %v3088 = vshrl.u32 %v2815, 16
        %v3090 = vrot.slane %v3088, 3
        %v3091 = vshll.u32 %v2815, 16
        %v3093 = vrot.slane %v3091, 4
        %v3094 = vor.u32 %v3090, %v3093
        %v3096 = vshrl.u32 %v2814, 16
        %v3098 = vrot.slane %v3096, 3
        %v3099 = vshll.u32 %v2814, 16
        %v3101 = vrot.slane %v3099, 4
        %v3102 = vor.u32 %v3098, %v3101
        %v3103 = vsel %vm617, %v3094, %v3102
        %v3105 = vshrl.u32 %v2598, 16
        %v3107 = vrot.slane %v3105, 3
        %v3108 = vshll.u32 %v2598, 16
        %v3110 = vrot.slane %v3108, 4
        %v3111 = vor.u32 %v3107, %v3110
        %v3112 = vrot.slane %v2729, 3
        %v3113 = vrot.slane %v2725, 4
        %v3114 = vor.u32 %v3112, %v3113
        %v3115 = vsel %vm617, %v3111, %v3114
        %v3117 = vshrl.u32 %v2728, 16
        %v3119 = vrot.slane %v3117, 3
        %v3120 = vshll.u32 %v2728, 16
        %v3122 = vrot.slane %v3120, 4
        %v3123 = vor.u32 %v3119, %v3122
        %v3125 = vshrl.u32 %v2731, 16
        %v3127 = vrot.slane %v3125, 3
        %v3128 = vshll.u32 %v2731, 16
        %v3130 = vrot.slane %v3128, 4
        %v3131 = vor.u32 %v3127, %v3130
        %v3132 = vsel %vm617, %v3123, %v3131
        %v3134 = vshrl.u32 %v2818, 16
        %v3136 = vrot.slane %v3134, 3
        %v3137 = vshll.u32 %v2818, 16
        %v3139 = vrot.slane %v3137, 4
        %v3140 = vor.u32 %v3136, %v3139
        %v3142 = vshrl.u32 %v2817, 16
        %v3144 = vrot.slane %v3142, 3
        %v3145 = vshll.u32 %v2817, 16
        %v3147 = vrot.slane %v3145, 4
        %v3148 = vor.u32 %v3144, %v3147
        %v3149 = vsel %vm617, %v3140, %v3148
        %v3151 = vshrl.u32 %v2600, 16
        %v3153 = vrot.slane %v3151, 3
        %v3154 = vshll.u32 %v2600, 16
        %v3156 = vrot.slane %v3154, 4
        %v3157 = vor.u32 %v3153, %v3156
        %v3158 = vrot.slane %v2744, 3
        %v3159 = vrot.slane %v2740, 4
        %v3160 = vor.u32 %v3158, %v3159
        %v3161 = vsel %vm617, %v3157, %v3160
        %v3163 = vshrl.u32 %v2743, 16
        %v3165 = vrot.slane %v3163, 3
        %v3166 = vshll.u32 %v2743, 16
        %v3168 = vrot.slane %v3166, 4
        %v3169 = vor.u32 %v3165, %v3168
        %v3171 = vshrl.u32 %v2746, 16
        %v3173 = vrot.slane %v3171, 3
        %v3174 = vshll.u32 %v2746, 16
        %v3176 = vrot.slane %v3174, 4
        %v3177 = vor.u32 %v3173, %v3176
        %v3178 = vsel %vm617, %v3169, %v3177
        %v3180 = vshrl.u32 %v2821, 16
        %v3182 = vrot.slane %v3180, 3
        %v3183 = vshll.u32 %v2821, 16
        %v3185 = vrot.slane %v3183, 4
        %v3186 = vor.u32 %v3182, %v3185
        %v3188 = vshrl.u32 %v2820, 16
        %v3190 = vrot.slane %v3188, 3
        %v3191 = vshll.u32 %v2820, 16
        %v3193 = vrot.slane %v3191, 4
        %v3194 = vor.u32 %v3190, %v3193
        %v3195 = vsel %vm617, %v3186, %v3194
        %v3220 = vld [vmem:[#allocation8] sm:$0xf]
        %v3221 = vld [vmem:[#allocation8 + $0x4] sm:$0xf]
        %v3222 = vld [vmem:[#allocation8 + $0x8] sm:$0xf]
        %v3223 = vld [vmem:[#allocation8 + $0xc] sm:$0xf]
        %v3224 = vld [vmem:[#allocation8 + $0x10] sm:$0xf]
        %v3225 = vld [vmem:[#allocation8 + $0x14] sm:$0xf]
        %v3226 = vld [vmem:[#allocation8 + $0x18] sm:$0xf]
        %v3227 = vld [vmem:[#allocation8 + $0x1c] sm:$0xf]
        %v3228 = vld [vmem:[#allocation8 + $0x20] sm:$0xf]
        %v3229 = vld [vmem:[#allocation8 + $0x24] sm:$0xf]
        %v3230 = vld [vmem:[#allocation8 + $0x28] sm:$0xf]
        %v3231 = vld [vmem:[#allocation8 + $0x2c] sm:$0xf]
        %v3232 = vld [vmem:[#allocation8 + $0x30] sm:$0xf]
        %v3233 = vld [vmem:[#allocation8 + $0x34] sm:$0xf]
        %v3234 = vld [vmem:[#allocation8 + $0x38] sm:$0xf]
        %v3235 = vld [vmem:[#allocation8 + $0x3c] sm:$0xf]
        %v3236 = vld [vmem:[#allocation8 + $0x40] sm:$0xf]
        %v3237 = vld [vmem:[#allocation8 + $0x44] sm:$0xf]
        %v3238 = vld [vmem:[#allocation8 + $0x48] sm:$0xf]
        %v3239 = vld [vmem:[#allocation8 + $0x4c] sm:$0xf]
        %v3240 = vld [vmem:[#allocation8 + $0x50] sm:$0xf]
        %v3241 = vld [vmem:[#allocation8 + $0x54] sm:$0xf]
        %v3242 = vld [vmem:[#allocation8 + $0x58] sm:$0xf]
        %v3243 = vld [vmem:[#allocation8 + $0x5c] sm:$0xf]
        %v3244 = vld [vmem:[#allocation8 + $0x60] sm:$0xf]
        %v3245 = vld [vmem:[#allocation8 + $0x64] sm:$0xf]
        %v3246 = vld [vmem:[#allocation8 + $0x68] sm:$0xf]
        %v3247 = vld [vmem:[#allocation8 + $0x6c] sm:$0xf]
        %v3248 = vld [vmem:[#allocation8 + $0x70] sm:$0xf]
        %v3249 = vld [vmem:[#allocation8 + $0x74] sm:$0xf]
        %v3250 = vld [vmem:[#allocation8 + $0x78] sm:$0xf]
        %v3251 = vld [vmem:[#allocation8 + $0x7c] sm:$0xf]
        %v3252 = vld [vmem:[#allocation8 + $0x80] sm:$0xf]
        %v3253 = vld [vmem:[#allocation8 + $0x84] sm:$0xf]
        %v3254 = vld [vmem:[#allocation8 + $0x88] sm:$0xf]
        %v3255 = vld [vmem:[#allocation8 + $0x8c] sm:$0xf]
        %v3256 = vld [vmem:[#allocation8 + $0x90] sm:$0xf]
        %v3257 = vld [vmem:[#allocation8 + $0x94] sm:$0xf]
        %v3258 = vld [vmem:[#allocation8 + $0x98] sm:$0xf]
        %v3259 = vld [vmem:[#allocation8 + $0x9c] sm:$0xf]
        %v3260 = vld [vmem:[#allocation8 + $0xa0] sm:$0xf]
        %v3261 = vld [vmem:[#allocation8 + $0xa4] sm:$0xf]
        %v3262 = vld [vmem:[#allocation8 + $0xa8] sm:$0xf]
        %v3263 = vld [vmem:[#allocation8 + $0xac] sm:$0xf]
        %v3264 = vld [vmem:[#allocation8 + $0xb0] sm:$0xf]
        %v3265 = vld [vmem:[#allocation8 + $0xb4] sm:$0xf]
        %v3266 = vld [vmem:[#allocation8 + $0xb8] sm:$0xf]
        %v3267 = vld [vmem:[#allocation8 + $0xbc] sm:$0xf]
        %v3269 = vshrl.u32 %v2602, 16
        %v3271 = vrot.slane %v3269, 3
        %v3272 = vshll.u32 %v2602, 16
        %v3274 = vrot.slane %v3272, 4
        %v3275 = vor.u32 %v3271, %v3274
        %v3276 = vrot.slane %v2759, 3
        %v3277 = vrot.slane %v2755, 4
        %v3278 = vor.u32 %v3276, %v3277
        %v3279 = vsel %vm617, %v3275, %v3278
        %v3281 = vshrl.u32 %v2758, 16
        %v3283 = vrot.slane %v3281, 3
        %v3284 = vshll.u32 %v2758, 16
        %v3286 = vrot.slane %v3284, 4
        %v3287 = vor.u32 %v3283, %v3286
        %v3289 = vshrl.u32 %v2761, 16
        %v3291 = vrot.slane %v3289, 3
        %v3292 = vshll.u32 %v2761, 16
        %v3294 = vrot.slane %v3292, 4
        %v3295 = vor.u32 %v3291, %v3294
        %v3296 = vsel %vm617, %v3287, %v3295
        %v3298 = vshrl.u32 %v2824, 16
        %v3300 = vrot.slane %v3298, 3
        %v3301 = vshll.u32 %v2824, 16
        %v3303 = vrot.slane %v3301, 4
        %v3304 = vor.u32 %v3300, %v3303
        %v3306 = vshrl.u32 %v2823, 16
        %v3308 = vrot.slane %v3306, 3
        %v3309 = vshll.u32 %v2823, 16
        %v3311 = vrot.slane %v3309, 4
        %v3312 = vor.u32 %v3308, %v3311
        %v3313 = vsel %vm617, %v3304, %v3312
        %s3317 = scalar_lea.vmem [#allocation8], 192
        %v3318 = vld [vmem:[%s3317] sm:$0xf]
        %v3319 = vld [vmem:[%s3317 + $0x4] sm:$0xf]
        %v3320 = vld [vmem:[%s3317 + $0x8] sm:$0xf]
        %v3321 = vld [vmem:[%s3317 + $0xc] sm:$0xf]
        %v3322 = vld [vmem:[%s3317 + $0x10] sm:$0xf]
        %v3323 = vld [vmem:[%s3317 + $0x14] sm:$0xf]
        %v3324 = vld [vmem:[%s3317 + $0x18] sm:$0xf]
        %v3325 = vld [vmem:[%s3317 + $0x1c] sm:$0xf]
        %v3326 = vld [vmem:[%s3317 + $0x20] sm:$0xf]
        %v3327 = vld [vmem:[%s3317 + $0x24] sm:$0xf]
        %v3328 = vld [vmem:[%s3317 + $0x28] sm:$0xf]
        %v3329 = vld [vmem:[%s3317 + $0x2c] sm:$0xf]
        %v3330 = vld [vmem:[%s3317 + $0x30] sm:$0xf]
        %v3331 = vld [vmem:[%s3317 + $0x34] sm:$0xf]
        %v3332 = vld [vmem:[%s3317 + $0x38] sm:$0xf]
        %v3333 = vld [vmem:[%s3317 + $0x3c] sm:$0xf]
        %v3334 = vld [vmem:[%s3317 + $0x40] sm:$0xf]
        %v3335 = vld [vmem:[%s3317 + $0x44] sm:$0xf]
        %v3336 = vld [vmem:[%s3317 + $0x48] sm:$0xf]
        %v3337 = vld [vmem:[%s3317 + $0x4c] sm:$0xf]
        %v3338 = vld [vmem:[%s3317 + $0x50] sm:$0xf]
        %v3339 = vld [vmem:[%s3317 + $0x54] sm:$0xf]
        %v3340 = vld [vmem:[%s3317 + $0x58] sm:$0xf]
        %v3341 = vld [vmem:[%s3317 + $0x5c] sm:$0xf]
        %v3342 = vld [vmem:[%s3317 + $0x60] sm:$0xf]
        %v3343 = vld [vmem:[%s3317 + $0x64] sm:$0xf]
        %v3344 = vld [vmem:[%s3317 + $0x68] sm:$0xf]
        %v3345 = vld [vmem:[%s3317 + $0x6c] sm:$0xf]
        %v3346 = vld [vmem:[%s3317 + $0x70] sm:$0xf]
        %v3347 = vld [vmem:[%s3317 + $0x74] sm:$0xf]
        %v3348 = vld [vmem:[%s3317 + $0x78] sm:$0xf]
        %v3349 = vld [vmem:[%s3317 + $0x7c] sm:$0xf]
        %v3350 = vld [vmem:[%s3317 + $0x80] sm:$0xf]
        %v3351 = vld [vmem:[%s3317 + $0x84] sm:$0xf]
        %v3352 = vld [vmem:[%s3317 + $0x88] sm:$0xf]
        %v3353 = vld [vmem:[%s3317 + $0x8c] sm:$0xf]
        %v3354 = vld [vmem:[%s3317 + $0x90] sm:$0xf]
        %v3355 = vld [vmem:[%s3317 + $0x94] sm:$0xf]
        %v3356 = vld [vmem:[%s3317 + $0x98] sm:$0xf]
        %v3357 = vld [vmem:[%s3317 + $0x9c] sm:$0xf]
        %v3358 = vld [vmem:[%s3317 + $0xa0] sm:$0xf]
        %v3359 = vld [vmem:[%s3317 + $0xa4] sm:$0xf]
        %v3360 = vld [vmem:[%s3317 + $0xa8] sm:$0xf]
        %v3361 = vld [vmem:[%s3317 + $0xac] sm:$0xf]
        %v3362 = vld [vmem:[%s3317 + $0xb0] sm:$0xf]
        %v3363 = vld [vmem:[%s3317 + $0xb4] sm:$0xf]
        %v3364 = vld [vmem:[%s3317 + $0xb8] sm:$0xf]
        %v3365 = vld [vmem:[%s3317 + $0xbc] sm:$0xf]
        %v3414 = vunpack.c.l.b16 %v3318
        %v3415 = vunpack.c.l.b16 %v3319
        %v3416 = vunpack.c.l.b16 %v3320
        %v3417 = vunpack.c.l.b16 %v3321
        %v3418 = vunpack.c.l.b16 %v3322
        %v3419 = vunpack.c.l.b16 %v3323
        %v3420 = vunpack.c.l.b16 %v3324
        %v3421 = vunpack.c.l.b16 %v3325
        %v3422 = vunpack.c.l.b16 %v3326
        %v3423 = vunpack.c.l.b16 %v3327
        %v3424 = vunpack.c.l.b16 %v3328
        %v3425 = vunpack.c.l.b16 %v3329
        %v3426 = vunpack.c.l.b16 %v3330
        %v3427 = vunpack.c.l.b16 %v3331
        %v3428 = vunpack.c.l.b16 %v3332
        %v3429 = vunpack.c.l.b16 %v3333
        %v3430 = vunpack.c.l.b16 %v3334
        %v3431 = vunpack.c.l.b16 %v3335
        %v3432 = vunpack.c.l.b16 %v3336
        %v3433 = vunpack.c.l.b16 %v3337
        %v3434 = vunpack.c.l.b16 %v3338
        %v3435 = vunpack.c.l.b16 %v3339
        %v3436 = vunpack.c.l.b16 %v3340
        %v3437 = vunpack.c.l.b16 %v3341
        %v3438 = vunpack.c.l.b16 %v3342
        %v3439 = vunpack.c.l.b16 %v3343
        %v3440 = vunpack.c.l.b16 %v3344
        %v3441 = vunpack.c.l.b16 %v3345
        %v3442 = vunpack.c.l.b16 %v3346
        %v3443 = vunpack.c.l.b16 %v3347
        %v3444 = vunpack.c.l.b16 %v3348
        %v3445 = vunpack.c.l.b16 %v3349
        %v3446 = vunpack.c.l.b16 %v3350
        %v3447 = vunpack.c.l.b16 %v3351
        %v3448 = vunpack.c.l.b16 %v3352
        %v3449 = vunpack.c.l.b16 %v3353
        %v3450 = vunpack.c.l.b16 %v3354
        %v3451 = vunpack.c.l.b16 %v3355
        %v3452 = vunpack.c.l.b16 %v3356
        %v3453 = vunpack.c.l.b16 %v3357
        %v3454 = vunpack.c.l.b16 %v3358
        %v3455 = vunpack.c.l.b16 %v3359
        %v3456 = vunpack.c.l.b16 %v3360
        %v3457 = vunpack.c.l.b16 %v3361
        %v3458 = vunpack.c.l.b16 %v3362
        %v3459 = vunpack.c.l.b16 %v3363
        %v3460 = vunpack.c.l.b16 %v3364
        %v3461 = vunpack.c.l.b16 %v3365
        %v3462 = vpack.c.b16 %v3415, %v3414
        %v3463 = vpack.c.b16 %v3417, %v3416
        %v3464 = vpack.c.b16 %v3419, %v3418
        %v3465 = vpack.c.b16 %v3421, %v3420
        %v3466 = vpack.c.b16 %v3423, %v3422
        %v3467 = vpack.c.b16 %v3425, %v3424
        %v3468 = vpack.c.b16 %v3427, %v3426
        %v3469 = vpack.c.b16 %v3429, %v3428
        %v3470 = vpack.c.b16 %v3431, %v3430
        %v3471 = vpack.c.b16 %v3433, %v3432
        %v3472 = vpack.c.b16 %v3435, %v3434
        %v3473 = vpack.c.b16 %v3437, %v3436
        %v3474 = vpack.c.b16 %v3439, %v3438
        %v3475 = vpack.c.b16 %v3441, %v3440
        %v3476 = vpack.c.b16 %v3443, %v3442
        %v3477 = vpack.c.b16 %v3445, %v3444
        %v3478 = vpack.c.b16 %v3447, %v3446
        %v3479 = vpack.c.b16 %v3449, %v3448
        %v3480 = vpack.c.b16 %v3451, %v3450
        %v3481 = vpack.c.b16 %v3453, %v3452
        %v3482 = vpack.c.b16 %v3455, %v3454
        %v3483 = vpack.c.b16 %v3457, %v3456
        %v3484 = vpack.c.b16 %v3459, %v3458
        %v3485 = vpack.c.b16 %v3461, %v3460
        %3510 = vmatprep.subr.bf16.mxu0 0
        %3511 = vmatpush1.bf16.msra.mxu0 %v3462
        %3512 = vmatprep.subr.bf16.mxu0 0
        %3513 = vmatpush1.bf16.msra.mxu0 %v3463
        %3514 = vmatprep.subr.bf16.mxu0 0
        %3515 = vmatpush1.bf16.msra.mxu0 %v3464
        %3516 = vmatprep.subr.bf16.mxu0 0
        %3517 = vmatpush1.bf16.msra.mxu0 %v3465
        %3518 = vmatprep.subr.bf16.mxu0 0
        %3519 = vmatpush1.bf16.msra.mxu0 %v3466
        %3520 = vmatprep.subr.bf16.mxu0 0
        %3521 = vmatpush1.bf16.msra.mxu0 %v3467
        %3522 = vmatprep.subr.bf16.mxu0 0
        %3523 = vmatpush1.bf16.msra.mxu0 %v3468
        %3524 = vmatprep.subr.bf16.mxu0 0
        %3525 = vmatpush1.bf16.msra.mxu0 %v3469
        %3526 = vmatprep.subr.bf16.mxu0 0
        %3527 = vmatpush1.bf16.msra.mxu0 %v3470
        %3528 = vmatprep.subr.bf16.mxu0 0
        %3529 = vmatpush1.bf16.msra.mxu0 %v3471
        %3530 = vmatprep.subr.bf16.mxu0 0
        %3531 = vmatpush1.bf16.msra.mxu0 %v3472
        %3532 = vmatprep.subr.bf16.mxu0 0
        %3533 = vmatpush1.bf16.msra.mxu0 %v3473
        %3534 = vmatprep.subr.bf16.mxu0 0
        %3535 = vmatpush1.bf16.msra.mxu0 %v3474
        %3536 = vmatprep.subr.bf16.mxu0 0
        %3537 = vmatpush1.bf16.msra.mxu0 %v3475
        %3538 = vmatprep.subr.bf16.mxu0 0
        %3539 = vmatpush1.bf16.msra.mxu0 %v3476
        %3540 = vmatprep.subr.bf16.mxu0 0
        %3541 = vmatpush1.bf16.msra.mxu0 %v3477
        %3542 = vmatprep.mubr.bf16.mxu0 %v2902
        %3543 = vmatmul.mubr.bf16.gmra.mrb[0].mxu0 %v2885
        %v3544 = vpop.f32.mrb[0].mxu0
        %v3545 = vadd.f32 0.0, %v3544
        %v3546 = vpop.f32.mrb[0].mxu0
        %v3547 = vpop.f32.mrb[0].mxu0
        %v3548 = vadd.f32 0.0, %v3547
        %v3549 = vpop.f32.mrb[0].mxu0
        %3550 = vmatprep.mubr.bf16.mxu0 %v2948
        %3551 = vmatmul.mubr.bf16.gmra.mrb[0].mxu0 %v2931
        %v3552 = vpop.f32.mrb[0].mxu0
        %v3553 = vadd.f32 0.0, %v3552
        %v3554 = vpop.f32.mrb[0].mxu0
        %v3555 = vpop.f32.mrb[0].mxu0
        %v3556 = vadd.f32 0.0, %v3555
        %v3557 = vpop.f32.mrb[0].mxu0
        %3558 = vmatprep.mubr.bf16.mxu0 %v2994
        %3559 = vmatmul.mubr.bf16.gmra.mrb[0].mxu0 %v2977
        %v3560 = vpop.f32.mrb[0].mxu0
        %v3561 = vadd.f32 0.0, %v3560
        %v3562 = vpop.f32.mrb[0].mxu0
        %v3563 = vpop.f32.mrb[0].mxu0
        %v3564 = vadd.f32 0.0, %v3563
        %v3565 = vpop.f32.mrb[0].mxu0
        %3566 = vmatprep.mubr.bf16.mxu0 %v3040
        %3567 = vmatmul.mubr.bf16.gmra.mrb[0].mxu0 %v3023
        %v3568 = vpop.f32.mrb[0].mxu0
        %v3569 = vadd.f32 0.0, %v3568
        %v3570 = vpop.f32.mrb[0].mxu0
        %v3571 = vpop.f32.mrb[0].mxu0
        %v3572 = vadd.f32 0.0, %v3571
        %v3573 = vpop.f32.mrb[0].mxu0
        %3574 = vmatprep.mubr.bf16.mxu0 %v3086
        %3575 = vmatmul.mubr.bf16.gmra.mrb[0].mxu0 %v3069
        %v3576 = vpop.f32.mrb[0].mxu0
        %v3577 = vadd.f32 0.0, %v3576
        %v3578 = vpop.f32.mrb[0].mxu0
        %v3579 = vpop.f32.mrb[0].mxu0
        %v3580 = vadd.f32 0.0, %v3579
        %v3581 = vpop.f32.mrb[0].mxu0
        %3582 = vmatprep.mubr.bf16.mxu0 %v3132
        %3583 = vmatmul.mubr.bf16.gmra.mrb[0].mxu0 %v3115
        %v3584 = vpop.f32.mrb[0].mxu0
        %v3585 = vadd.f32 0.0, %v3584
        %v3586 = vpop.f32.mrb[0].mxu0
        %v3587 = vpop.f32.mrb[0].mxu0
        %v3588 = vadd.f32 0.0, %v3587
        %v3589 = vpop.f32.mrb[0].mxu0
        %3590 = vmatprep.mubr.bf16.mxu0 %v3178
        %3591 = vmatmul.mubr.bf16.gmra.mrb[0].mxu0 %v3161
        %v3592 = vpop.f32.mrb[0].mxu0
        %v3593 = vadd.f32 0.0, %v3592
        %v3594 = vpop.f32.mrb[0].mxu0
        %v3595 = vpop.f32.mrb[0].mxu0
        %v3596 = vadd.f32 0.0, %v3595
        %v3597 = vpop.f32.mrb[0].mxu0
        %3598 = vmatprep.mubr.bf16.mxu0 %v3296
        %3599 = vmatmul.mubr.bf16.gmra.mrb[0].mxu0 %v3279
        %v3600 = vpop.f32.mrb[0].mxu0
        %v3601 = vadd.f32 0.0, %v3600
        %v3602 = vpop.f32.mrb[0].mxu0
        %v3603 = vpop.f32.mrb[0].mxu0
        %v3604 = vadd.f32 0.0, %v3603
        %v3605 = vpop.f32.mrb[0].mxu0
        %3606 = vdwg.mxu0
        %3607 = vmatprep.subr.bf16.mxu0 0
        %3608 = vmatpush1.bf16.msra.mxu0 %v3478
        %3609 = vmatprep.subr.bf16.mxu0 0
        %3610 = vmatpush1.bf16.msra.mxu0 %v3479
        %3611 = vmatprep.subr.bf16.mxu0 0
        %3612 = vmatpush1.bf16.msra.mxu0 %v3480
        %3613 = vmatprep.subr.bf16.mxu0 0
        %3614 = vmatpush1.bf16.msra.mxu0 %v3481
        %3615 = vmatprep.subr.bf16.mxu0 0
        %3616 = vmatpush1.bf16.msra.mxu0 %v3482
        %3617 = vmatprep.subr.bf16.mxu0 0
        %3618 = vmatpush1.bf16.msra.mxu0 %v3483
        %3619 = vmatprep.subr.bf16.mxu0 0
        %3620 = vmatpush1.bf16.msra.mxu0 %v3484
        %3621 = vmatprep.subr.bf16.mxu0 0
        %3622 = vmatpush1.bf16.msra.mxu0 %v3485
        %3623 = vmatprep.subr.bf16.mxu0 0
        %3624 = vmatpush1.bf16.msra.mxu0 0
        %3625 = vmatprep.subr.bf16.mxu0 0
        %3626 = vmatpush1.bf16.msra.mxu0 0
        %3627 = vmatprep.subr.bf16.mxu0 0
        %3628 = vmatpush1.bf16.msra.mxu0 0
        %3629 = vmatprep.subr.bf16.mxu0 0
        %3630 = vmatpush1.bf16.msra.mxu0 0
        %3631 = vmatprep.subr.bf16.mxu0 0
        %3632 = vmatpush1.bf16.msra.mxu0 0
        %3633 = vmatprep.subr.bf16.mxu0 0
        %3634 = vmatpush1.bf16.msra.mxu0 0
        %3635 = vmatprep.subr.bf16.mxu0 0
        %3636 = vmatpush1.bf16.msra.mxu0 0
        %3637 = vmatprep.subr.bf16.mxu0 0
        %3638 = vmatpush1.bf16.msra.mxu0 0
        %3639 = vmatprep.mubr.bf16.mxu0 0
        %3640 = vmatmul.mubr.bf16.gmra.mrb[0].mxu0 %v2919
        %v3641 = vpop.f32.mrb[0].mxu0
        %v3642 = vadd.f32 %v3545, %v3641
        %v3643 = vpop.f32.mrb[0].mxu0
        %v3644 = vpop.f32.mrb[0].mxu0
        %v3645 = vadd.f32 %v3548, %v3644
        %v3646 = vpop.f32.mrb[0].mxu0
        %3647 = vmatprep.mubr.bf16.mxu0 0
        %3648 = vmatmul.mubr.bf16.gmra.mrb[0].mxu0 %v2965
        %v3649 = vpop.f32.mrb[0].mxu0
        %v3650 = vadd.f32 %v3553, %v3649
        %v3651 = vpop.f32.mrb[0].mxu0
        %v3652 = vpop.f32.mrb[0].mxu0
        %v3653 = vadd.f32 %v3556, %v3652
        %v3654 = vpop.f32.mrb[0].mxu0
        %3655 = vmatprep.mubr.bf16.mxu0 0
        %3656 = vmatmul.mubr.bf16.gmra.mrb[0].mxu0 %v3011
        %v3657 = vpop.f32.mrb[0].mxu0
        %v3658 = vadd.f32 %v3561, %v3657
        %v3659 = vpop.f32.mrb[0].mxu0
        %v3660 = vpop.f32.mrb[0].mxu0
        %v3661 = vadd.f32 %v3564, %v3660
        %v3662 = vpop.f32.mrb[0].mxu0
        %3663 = vmatprep.mubr.bf16.mxu0 0
        %3664 = vmatmul.mubr.bf16.gmra.mrb[0].mxu0 %v3057
        %v3665 = vpop.f32.mrb[0].mxu0
        %v3666 = vadd.f32 %v3569, %v3665
        %v3667 = vpop.f32.mrb[0].mxu0
        %v3668 = vpop.f32.mrb[0].mxu0
        %v3669 = vadd.f32 %v3572, %v3668
        %v3670 = vpop.f32.mrb[0].mxu0
        %3671 = vmatprep.mubr.bf16.mxu0 0
        %3672 = vmatmul.mubr.bf16.gmra.mrb[0].mxu0 %v3103
        %v3673 = vpop.f32.mrb[0].mxu0
        %v3674 = vadd.f32 %v3577, %v3673
        %v3675 = vpop.f32.mrb[0].mxu0
        %v3676 = vpop.f32.mrb[0].mxu0
        %v3677 = vadd.f32 %v3580, %v3676
        %v3678 = vpop.f32.mrb[0].mxu0
        %3679 = vmatprep.mubr.bf16.mxu0 0
        %3680 = vmatmul.mubr.bf16.gmra.mrb[0].mxu0 %v3149
        %v3681 = vpop.f32.mrb[0].mxu0
        %v3682 = vadd.f32 %v3585, %v3681
        %v3683 = vpop.f32.mrb[0].mxu0
        %v3684 = vpop.f32.mrb[0].mxu0
        %v3685 = vadd.f32 %v3588, %v3684
        %v3686 = vpop.f32.mrb[0].mxu0
        %3687 = vmatprep.mubr.bf16.mxu0 0
        %3688 = vmatmul.mubr.bf16.gmra.mrb[0].mxu0 %v3195
        %v3689 = vpop.f32.mrb[0].mxu0
        %v3690 = vadd.f32 %v3593, %v3689
        %v3691 = vpop.f32.mrb[0].mxu0
        %v3692 = vpop.f32.mrb[0].mxu0
        %v3693 = vadd.f32 %v3596, %v3692
        %v3694 = vpop.f32.mrb[0].mxu0
        %3695 = vmatprep.mubr.bf16.mxu0 0
        %3696 = vmatmul.mubr.bf16.gmra.mrb[0].mxu0 %v3313
        %v3697 = vpop.f32.mrb[0].mxu0
        %v3698 = vadd.f32 %v3601, %v3697
        %v3699 = vpop.f32.mrb[0].mxu0
        %v3700 = vpop.f32.mrb[0].mxu0
        %v3701 = vadd.f32 %v3604, %v3700
        %v3702 = vpop.f32.mrb[0].mxu0
        %3703 = vdwg.mxu0
        %v3752 = vunpack.c.l.b16 %v3220
        %v3753 = vunpack.c.l.b16 %v3221
        %v3754 = vunpack.c.l.b16 %v3222
        %v3755 = vunpack.c.l.b16 %v3223
        %v3756 = vunpack.c.l.b16 %v3224
        %v3757 = vunpack.c.l.b16 %v3225
        %v3758 = vunpack.c.l.b16 %v3226
        %v3759 = vunpack.c.l.b16 %v3227
        %v3760 = vunpack.c.l.b16 %v3228
        %v3761 = vunpack.c.l.b16 %v3229
        %v3762 = vunpack.c.l.b16 %v3230
        %v3763 = vunpack.c.l.b16 %v3231
        %v3764 = vunpack.c.l.b16 %v3232
        %v3765 = vunpack.c.l.b16 %v3233
        %v3766 = vunpack.c.l.b16 %v3234
        %v3767 = vunpack.c.l.b16 %v3235
        %v3768 = vunpack.c.l.b16 %v3236
        %v3769 = vunpack.c.l.b16 %v3237
        %v3770 = vunpack.c.l.b16 %v3238
        %v3771 = vunpack.c.l.b16 %v3239
        %v3772 = vunpack.c.l.b16 %v3240
        %v3773 = vunpack.c.l.b16 %v3241
        %v3774 = vunpack.c.l.b16 %v3242
        %v3775 = vunpack.c.l.b16 %v3243
        %v3776 = vunpack.c.l.b16 %v3244
        %v3777 = vunpack.c.l.b16 %v3245
        %v3778 = vunpack.c.l.b16 %v3246
        %v3779 = vunpack.c.l.b16 %v3247
        %v3780 = vunpack.c.l.b16 %v3248
        %v3781 = vunpack.c.l.b16 %v3249
        %v3782 = vunpack.c.l.b16 %v3250
        %v3783 = vunpack.c.l.b16 %v3251
        %v3784 = vunpack.c.l.b16 %v3252
        %v3785 = vunpack.c.l.b16 %v3253
        %v3786 = vunpack.c.l.b16 %v3254
        %v3787 = vunpack.c.l.b16 %v3255
        %v3788 = vunpack.c.l.b16 %v3256
        %v3789 = vunpack.c.l.b16 %v3257
        %v3790 = vunpack.c.l.b16 %v3258
        %v3791 = vunpack.c.l.b16 %v3259
        %v3792 = vunpack.c.l.b16 %v3260
        %v3793 = vunpack.c.l.b16 %v3261
        %v3794 = vunpack.c.l.b16 %v3262
        %v3795 = vunpack.c.l.b16 %v3263
        %v3796 = vunpack.c.l.b16 %v3264
        %v3797 = vunpack.c.l.b16 %v3265
        %v3798 = vunpack.c.l.b16 %v3266
        %v3799 = vunpack.c.l.b16 %v3267
        %v3800 = vpack.c.b16 %v3753, %v3752
        %v3801 = vpack.c.b16 %v3755, %v3754
        %v3802 = vpack.c.b16 %v3757, %v3756
        %v3803 = vpack.c.b16 %v3759, %v3758
        %v3804 = vpack.c.b16 %v3761, %v3760
        %v3805 = vpack.c.b16 %v3763, %v3762
        %v3806 = vpack.c.b16 %v3765, %v3764
        %v3807 = vpack.c.b16 %v3767, %v3766
        %v3808 = vpack.c.b16 %v3769, %v3768
        %v3809 = vpack.c.b16 %v3771, %v3770
        %v3810 = vpack.c.b16 %v3773, %v3772
        %v3811 = vpack.c.b16 %v3775, %v3774
        %v3812 = vpack.c.b16 %v3777, %v3776
        %v3813 = vpack.c.b16 %v3779, %v3778
        %v3814 = vpack.c.b16 %v3781, %v3780
        %v3815 = vpack.c.b16 %v3783, %v3782
        %v3816 = vpack.c.b16 %v3785, %v3784
        %v3817 = vpack.c.b16 %v3787, %v3786
        %v3818 = vpack.c.b16 %v3789, %v3788
        %v3819 = vpack.c.b16 %v3791, %v3790
        %v3820 = vpack.c.b16 %v3793, %v3792
        %v3821 = vpack.c.b16 %v3795, %v3794
        %v3822 = vpack.c.b16 %v3797, %v3796
        %v3823 = vpack.c.b16 %v3799, %v3798
        %3848 = vmatprep.subr.bf16.mxu0 0
        %3849 = vmatpush1.bf16.msra.mxu0 %v3800
        %3850 = vmatprep.subr.bf16.mxu0 0
        %3851 = vmatpush1.bf16.msra.mxu0 %v3801
        %3852 = vmatprep.subr.bf16.mxu0 0
        %3853 = vmatpush1.bf16.msra.mxu0 %v3802
        %3854 = vmatprep.subr.bf16.mxu0 0
        %3855 = vmatpush1.bf16.msra.mxu0 %v3803
        %3856 = vmatprep.subr.bf16.mxu0 0
        %3857 = vmatpush1.bf16.msra.mxu0 %v3804
        %3858 = vmatprep.subr.bf16.mxu0 0
        %3859 = vmatpush1.bf16.msra.mxu0 %v3805
        %3860 = vmatprep.subr.bf16.mxu0 0
        %3861 = vmatpush1.bf16.msra.mxu0 %v3806
        %3862 = vmatprep.subr.bf16.mxu0 0
        %3863 = vmatpush1.bf16.msra.mxu0 %v3807
        %3864 = vmatprep.subr.bf16.mxu0 0
        %3865 = vmatpush1.bf16.msra.mxu0 %v3808
        %3866 = vmatprep.subr.bf16.mxu0 0
        %3867 = vmatpush1.bf16.msra.mxu0 %v3809
        %3868 = vmatprep.subr.bf16.mxu0 0
        %3869 = vmatpush1.bf16.msra.mxu0 %v3810
        %3870 = vmatprep.subr.bf16.mxu0 0
        %3871 = vmatpush1.bf16.msra.mxu0 %v3811
        %3872 = vmatprep.subr.bf16.mxu0 0
        %3873 = vmatpush1.bf16.msra.mxu0 %v3812
        %3874 = vmatprep.subr.bf16.mxu0 0
        %3875 = vmatpush1.bf16.msra.mxu0 %v3813
        %3876 = vmatprep.subr.bf16.mxu0 0
        %3877 = vmatpush1.bf16.msra.mxu0 %v3814
        %3878 = vmatprep.subr.bf16.mxu0 0
        %3879 = vmatpush1.bf16.msra.mxu0 %v3815
        %3880 = vmatprep.mubr.bf16.mxu0 %v2856
        %3881 = vmatmul.mubr.bf16.gmra.mrb[0].mxu0 %v2839
        %v3882 = vpop.f32.mrb[0].mxu0
        %v3883 = vadd.f32 %v3642, %v3882
        %v3884 = vpop.f32.mrb[0].mxu0
        %v3885 = vpop.f32.mrb[0].mxu0
        %v3886 = vadd.f32 %v3645, %v3885
        %v3887 = vpop.f32.mrb[0].mxu0
        %3888 = vmatprep.mubr.bf16.mxu0 %v2902
        %3889 = vmatmul.mubr.bf16.gmra.mrb[0].mxu0 %v2885
        %v3890 = vpop.f32.mrb[0].mxu0
        %v3891 = vadd.f32 %v3650, %v3890
        %v3892 = vpop.f32.mrb[0].mxu0
        %v3893 = vpop.f32.mrb[0].mxu0
        %v3894 = vadd.f32 %v3653, %v3893
        %v3895 = vpop.f32.mrb[0].mxu0
        %3896 = vmatprep.mubr.bf16.mxu0 %v2948
        %3897 = vmatmul.mubr.bf16.gmra.mrb[0].mxu0 %v2931
        %v3898 = vpop.f32.mrb[0].mxu0
        %v3899 = vadd.f32 %v3658, %v3898
        %v3900 = vpop.f32.mrb[0].mxu0
        %v3901 = vpop.f32.mrb[0].mxu0
        %v3902 = vadd.f32 %v3661, %v3901
        %v3903 = vpop.f32.mrb[0].mxu0
        %3904 = vmatprep.mubr.bf16.mxu0 %v2994
        %3905 = vmatmul.mubr.bf16.gmra.mrb[0].mxu0 %v2977
        %v3906 = vpop.f32.mrb[0].mxu0
        %v3907 = vadd.f32 %v3666, %v3906
        %v3908 = vpop.f32.mrb[0].mxu0
        %v3909 = vpop.f32.mrb[0].mxu0
        %v3910 = vadd.f32 %v3669, %v3909
        %v3911 = vpop.f32.mrb[0].mxu0
        %3912 = vmatprep.mubr.bf16.mxu0 %v3040
        %3913 = vmatmul.mubr.bf16.gmra.mrb[0].mxu0 %v3023
        %v3914 = vpop.f32.mrb[0].mxu0
        %v3915 = vadd.f32 %v3674, %v3914
        %v3916 = vpop.f32.mrb[0].mxu0
        %v3917 = vpop.f32.mrb[0].mxu0
        %v3918 = vadd.f32 %v3677, %v3917
        %v3919 = vpop.f32.mrb[0].mxu0
        %3920 = vmatprep.mubr.bf16.mxu0 %v3086
        %3921 = vmatmul.mubr.bf16.gmra.mrb[0].mxu0 %v3069
        %v3922 = vpop.f32.mrb[0].mxu0
        %v3923 = vadd.f32 %v3682, %v3922
        %v3924 = vpop.f32.mrb[0].mxu0
        %v3925 = vpop.f32.mrb[0].mxu0
        %v3926 = vadd.f32 %v3685, %v3925
        %v3927 = vpop.f32.mrb[0].mxu0
        %3928 = vmatprep.mubr.bf16.mxu0 %v3132
        %3929 = vmatmul.mubr.bf16.gmra.mrb[0].mxu0 %v3115
        %v3930 = vpop.f32.mrb[0].mxu0
        %v3931 = vadd.f32 %v3690, %v3930
        %v3932 = vpop.f32.mrb[0].mxu0
        %v3933 = vpop.f32.mrb[0].mxu0
        %v3934 = vadd.f32 %v3693, %v3933
        %v3935 = vpop.f32.mrb[0].mxu0
        %3936 = vmatprep.mubr.bf16.mxu0 %v3178
        %3937 = vmatmul.mubr.bf16.gmra.mrb[0].mxu0 %v3161
        %v3938 = vpop.f32.mrb[0].mxu0
        %v3939 = vadd.f32 %v3698, %v3938
        %v3940 = vpop.f32.mrb[0].mxu0
        %v3941 = vpop.f32.mrb[0].mxu0
        %v3942 = vadd.f32 %v3701, %v3941
        %v3943 = vpop.f32.mrb[0].mxu0
        %3944 = vdwg.mxu0
        %3945 = vmatprep.subr.bf16.mxu0 0
        %3946 = vmatpush1.bf16.msra.mxu0 %v3816
        %3947 = vmatprep.subr.bf16.mxu0 0
        %3948 = vmatpush1.bf16.msra.mxu0 %v3817
        %3949 = vmatprep.subr.bf16.mxu0 0
        %3950 = vmatpush1.bf16.msra.mxu0 %v3818
        %3951 = vmatprep.subr.bf16.mxu0 0
        %3952 = vmatpush1.bf16.msra.mxu0 %v3819
        %3953 = vmatprep.subr.bf16.mxu0 0
        %3954 = vmatpush1.bf16.msra.mxu0 %v3820
        %3955 = vmatprep.subr.bf16.mxu0 0
        %3956 = vmatpush1.bf16.msra.mxu0 %v3821
        %3957 = vmatprep.subr.bf16.mxu0 0
        %3958 = vmatpush1.bf16.msra.mxu0 %v3822
        %3959 = vmatprep.subr.bf16.mxu0 0
        %3960 = vmatpush1.bf16.msra.mxu0 %v3823
        %3961 = vmatprep.subr.bf16.mxu0 0
        %3962 = vmatpush1.bf16.msra.mxu0 0
        %3963 = vmatprep.subr.bf16.mxu0 0
        %3964 = vmatpush1.bf16.msra.mxu0 0
        %3965 = vmatprep.subr.bf16.mxu0 0
        %3966 = vmatpush1.bf16.msra.mxu0 0
        %3967 = vmatprep.subr.bf16.mxu0 0
        %3968 = vmatpush1.bf16.msra.mxu0 0
        %3969 = vmatprep.subr.bf16.mxu0 0
        %3970 = vmatpush1.bf16.msra.mxu0 0
        %3971 = vmatprep.subr.bf16.mxu0 0
        %3972 = vmatpush1.bf16.msra.mxu0 0
        %3973 = vmatprep.subr.bf16.mxu0 0
        %3974 = vmatpush1.bf16.msra.mxu0 0
        %3975 = vmatprep.subr.bf16.mxu0 0
        %3976 = vmatpush1.bf16.msra.mxu0 0
        %3977 = vmatprep.mubr.bf16.mxu0 0
        %3978 = vmatmul.mubr.bf16.gmra.mrb[0].mxu0 %v2873
        %v3979 = vpop.f32.mrb[0].mxu0
        %v3980 = vadd.f32 %v3883, %v3979
        %v3981 = vpop.f32.mrb[0].mxu0
        %v3982 = vpop.f32.mrb[0].mxu0
        %v3983 = vadd.f32 %v3886, %v3982
        %v3984 = vpop.f32.mrb[0].mxu0
        %3985 = vmatprep.mubr.bf16.mxu0 0
        %3986 = vmatmul.mubr.bf16.gmra.mrb[0].mxu0 %v2919
        %v3987 = vpop.f32.mrb[0].mxu0
        %v3988 = vadd.f32 %v3891, %v3987
        %v3989 = vpop.f32.mrb[0].mxu0
        %v3990 = vpop.f32.mrb[0].mxu0
        %v3991 = vadd.f32 %v3894, %v3990
        %v3992 = vpop.f32.mrb[0].mxu0
        %3993 = vmatprep.mubr.bf16.mxu0 0
        %3994 = vmatmul.mubr.bf16.gmra.mrb[0].mxu0 %v2965
        %v3995 = vpop.f32.mrb[0].mxu0
        %v3996 = vadd.f32 %v3899, %v3995
        %v3997 = vpop.f32.mrb[0].mxu0
        %v3998 = vpop.f32.mrb[0].mxu0
        %v3999 = vadd.f32 %v3902, %v3998
        %v4000 = vpop.f32.mrb[0].mxu0
        %4001 = vmatprep.mubr.bf16.mxu0 0
        %4002 = vmatmul.mubr.bf16.gmra.mrb[0].mxu0 %v3011
        %v4003 = vpop.f32.mrb[0].mxu0
        %v4004 = vadd.f32 %v3907, %v4003
        %v4005 = vpop.f32.mrb[0].mxu0
        %v4006 = vpop.f32.mrb[0].mxu0
        %v4007 = vadd.f32 %v3910, %v4006
        %v4008 = vpop.f32.mrb[0].mxu0
        %4009 = vmatprep.mubr.bf16.mxu0 0
        %4010 = vmatmul.mubr.bf16.gmra.mrb[0].mxu0 %v3057
        %v4011 = vpop.f32.mrb[0].mxu0
        %v4012 = vadd.f32 %v3915, %v4011
        %v4013 = vpop.f32.mrb[0].mxu0
        %v4014 = vpop.f32.mrb[0].mxu0
        %v4015 = vadd.f32 %v3918, %v4014
        %v4016 = vpop.f32.mrb[0].mxu0
        %4017 = vmatprep.mubr.bf16.mxu0 0
        %4018 = vmatmul.mubr.bf16.gmra.mrb[0].mxu0 %v3103
        %v4019 = vpop.f32.mrb[0].mxu0
        %v4020 = vadd.f32 %v3923, %v4019
        %v4021 = vpop.f32.mrb[0].mxu0
        %v4022 = vpop.f32.mrb[0].mxu0
        %v4023 = vadd.f32 %v3926, %v4022
        %v4024 = vpop.f32.mrb[0].mxu0
        %4025 = vmatprep.mubr.bf16.mxu0 0
        %4026 = vmatmul.mubr.bf16.gmra.mrb[0].mxu0 %v3149
        %v4027 = vpop.f32.mrb[0].mxu0
        %v4028 = vadd.f32 %v3931, %v4027
        %v4029 = vpop.f32.mrb[0].mxu0
        %v4030 = vpop.f32.mrb[0].mxu0
        %v4031 = vadd.f32 %v3934, %v4030
        %v4032 = vpop.f32.mrb[0].mxu0
        %4033 = vmatprep.mubr.bf16.mxu0 0
        %4034 = vmatmul.mubr.bf16.gmra.mrb[0].mxu0 %v3195
        %v4035 = vpop.f32.mrb[0].mxu0
        %v4036 = vadd.f32 %v3939, %v4035
        %v4037 = vpop.f32.mrb[0].mxu0
        %v4038 = vpop.f32.mrb[0].mxu0
        %v4039 = vadd.f32 %v3942, %v4038
        %v4040 = vpop.f32.mrb[0].mxu0
        %4041 = vdwg.mxu0
        %v4043 = vshrl.u32 %v2604, 16
        %v4045 = vrot.slane %v4043, 3
        %v4046 = vshll.u32 %v2604, 16
        %v4048 = vrot.slane %v4046, 4
        %v4049 = vor.u32 %v4045, %v4048
        %v4050 = vrot.slane %v2774, 3
        %v4051 = vrot.slane %v2770, 4
        %v4052 = vor.u32 %v4050, %v4051
        %v4053 = vsel %vm617, %v4049, %v4052
        %v4055 = vshrl.u32 %v2773, 16
        %v4057 = vrot.slane %v4055, 3
        %v4058 = vshll.u32 %v2773, 16
        %v4060 = vrot.slane %v4058, 4
        %v4061 = vor.u32 %v4057, %v4060
        %v4063 = vshrl.u32 %v2776, 16
        %v4065 = vrot.slane %v4063, 3
        %v4066 = vshll.u32 %v2776, 16
        %v4068 = vrot.slane %v4066, 4
        %v4069 = vor.u32 %v4065, %v4068
        %v4070 = vsel %vm617, %v4061, %v4069
        %v4072 = vshrl.u32 %v2827, 16
        %v4074 = vrot.slane %v4072, 3
        %v4075 = vshll.u32 %v2827, 16
        %v4077 = vrot.slane %v4075, 4
        %v4078 = vor.u32 %v4074, %v4077
        %v4080 = vshrl.u32 %v2826, 16
        %v4082 = vrot.slane %v4080, 3
        %v4083 = vshll.u32 %v2826, 16
        %v4085 = vrot.slane %v4083, 4
        %v4086 = vor.u32 %v4082, %v4085
        %v4087 = vsel %vm617, %v4078, %v4086
        %s4091 = scalar_lea.vmem [#allocation8], 384
        %v4092 = vld [vmem:[%s4091] sm:$0xf]
        %v4093 = vld [vmem:[%s4091 + $0x4] sm:$0xf]
        %v4094 = vld [vmem:[%s4091 + $0x8] sm:$0xf]
        %v4095 = vld [vmem:[%s4091 + $0xc] sm:$0xf]
        %v4096 = vld [vmem:[%s4091 + $0x10] sm:$0xf]
        %v4097 = vld [vmem:[%s4091 + $0x14] sm:$0xf]
        %v4098 = vld [vmem:[%s4091 + $0x18] sm:$0xf]
        %v4099 = vld [vmem:[%s4091 + $0x1c] sm:$0xf]
        %v4100 = vld [vmem:[%s4091 + $0x20] sm:$0xf]
        %v4101 = vld [vmem:[%s4091 + $0x24] sm:$0xf]
        %v4102 = vld [vmem:[%s4091 + $0x28] sm:$0xf]
        %v4103 = vld [vmem:[%s4091 + $0x2c] sm:$0xf]
        %v4104 = vld [vmem:[%s4091 + $0x30] sm:$0xf]
        %v4105 = vld [vmem:[%s4091 + $0x34] sm:$0xf]
        %v4106 = vld [vmem:[%s4091 + $0x38] sm:$0xf]
        %v4107 = vld [vmem:[%s4091 + $0x3c] sm:$0xf]
        %v4108 = vld [vmem:[%s4091 + $0x40] sm:$0xf]
        %v4109 = vld [vmem:[%s4091 + $0x44] sm:$0xf]
        %v4110 = vld [vmem:[%s4091 + $0x48] sm:$0xf]
        %v4111 = vld [vmem:[%s4091 + $0x4c] sm:$0xf]
        %v4112 = vld [vmem:[%s4091 + $0x50] sm:$0xf]
        %v4113 = vld [vmem:[%s4091 + $0x54] sm:$0xf]
        %v4114 = vld [vmem:[%s4091 + $0x58] sm:$0xf]
        %v4115 = vld [vmem:[%s4091 + $0x5c] sm:$0xf]
        %v4116 = vld [vmem:[%s4091 + $0x60] sm:$0xf]
        %v4117 = vld [vmem:[%s4091 + $0x64] sm:$0xf]
        %v4118 = vld [vmem:[%s4091 + $0x68] sm:$0xf]
        %v4119 = vld [vmem:[%s4091 + $0x6c] sm:$0xf]
        %v4120 = vld [vmem:[%s4091 + $0x70] sm:$0xf]
        %v4121 = vld [vmem:[%s4091 + $0x74] sm:$0xf]
        %v4122 = vld [vmem:[%s4091 + $0x78] sm:$0xf]
        %v4123 = vld [vmem:[%s4091 + $0x7c] sm:$0xf]
        %v4124 = vld [vmem:[%s4091 + $0x80] sm:$0xf]
        %v4125 = vld [vmem:[%s4091 + $0x84] sm:$0xf]
        %v4126 = vld [vmem:[%s4091 + $0x88] sm:$0xf]
        %v4127 = vld [vmem:[%s4091 + $0x8c] sm:$0xf]
        %v4128 = vld [vmem:[%s4091 + $0x90] sm:$0xf]
        %v4129 = vld [vmem:[%s4091 + $0x94] sm:$0xf]
        %v4130 = vld [vmem:[%s4091 + $0x98] sm:$0xf]
        %v4131 = vld [vmem:[%s4091 + $0x9c] sm:$0xf]
        %v4132 = vld [vmem:[%s4091 + $0xa0] sm:$0xf]
        %v4133 = vld [vmem:[%s4091 + $0xa4] sm:$0xf]
        %v4134 = vld [vmem:[%s4091 + $0xa8] sm:$0xf]
        %v4135 = vld [vmem:[%s4091 + $0xac] sm:$0xf]
        %v4136 = vld [vmem:[%s4091 + $0xb0] sm:$0xf]
        %v4137 = vld [vmem:[%s4091 + $0xb4] sm:$0xf]
        %v4138 = vld [vmem:[%s4091 + $0xb8] sm:$0xf]
        %v4139 = vld [vmem:[%s4091 + $0xbc] sm:$0xf]
        %v4188 = vunpack.c.l.b16 %v4092
        %v4189 = vunpack.c.l.b16 %v4093
        %v4190 = vunpack.c.l.b16 %v4094
        %v4191 = vunpack.c.l.b16 %v4095
        %v4192 = vunpack.c.l.b16 %v4096
        %v4193 = vunpack.c.l.b16 %v4097
        %v4194 = vunpack.c.l.b16 %v4098
        %v4195 = vunpack.c.l.b16 %v4099
        %v4196 = vunpack.c.l.b16 %v4100
        %v4197 = vunpack.c.l.b16 %v4101
        %v4198 = vunpack.c.l.b16 %v4102
        %v4199 = vunpack.c.l.b16 %v4103
        %v4200 = vunpack.c.l.b16 %v4104
        %v4201 = vunpack.c.l.b16 %v4105
        %v4202 = vunpack.c.l.b16 %v4106
        %v4203 = vunpack.c.l.b16 %v4107
        %v4204 = vunpack.c.l.b16 %v4108
        %v4205 = vunpack.c.l.b16 %v4109
        %v4206 = vunpack.c.l.b16 %v4110
        %v4207 = vunpack.c.l.b16 %v4111
        %v4208 = vunpack.c.l.b16 %v4112
        %v4209 = vunpack.c.l.b16 %v4113
        %v4210 = vunpack.c.l.b16 %v4114
        %v4211 = vunpack.c.l.b16 %v4115
        %v4212 = vunpack.c.l.b16 %v4116
        %v4213 = vunpack.c.l.b16 %v4117
        %v4214 = vunpack.c.l.b16 %v4118
        %v4215 = vunpack.c.l.b16 %v4119
        %v4216 = vunpack.c.l.b16 %v4120
        %v4217 = vunpack.c.l.b16 %v4121
        %v4218 = vunpack.c.l.b16 %v4122
        %v4219 = vunpack.c.l.b16 %v4123
        %v4220 = vunpack.c.l.b16 %v4124
        %v4221 = vunpack.c.l.b16 %v4125
        %v4222 = vunpack.c.l.b16 %v4126
        %v4223 = vunpack.c.l.b16 %v4127
        %v4224 = vunpack.c.l.b16 %v4128
        %v4225 = vunpack.c.l.b16 %v4129
        %v4226 = vunpack.c.l.b16 %v4130
        %v4227 = vunpack.c.l.b16 %v4131
        %v4228 = vunpack.c.l.b16 %v4132
        %v4229 = vunpack.c.l.b16 %v4133
        %v4230 = vunpack.c.l.b16 %v4134
        %v4231 = vunpack.c.l.b16 %v4135
        %v4232 = vunpack.c.l.b16 %v4136
        %v4233 = vunpack.c.l.b16 %v4137
        %v4234 = vunpack.c.l.b16 %v4138
        %v4235 = vunpack.c.l.b16 %v4139
        %v4236 = vpack.c.b16 %v4189, %v4188
        %v4237 = vpack.c.b16 %v4191, %v4190
        %v4238 = vpack.c.b16 %v4193, %v4192
        %v4239 = vpack.c.b16 %v4195, %v4194
        %v4240 = vpack.c.b16 %v4197, %v4196
        %v4241 = vpack.c.b16 %v4199, %v4198
        %v4242 = vpack.c.b16 %v4201, %v4200
        %v4243 = vpack.c.b16 %v4203, %v4202
        %v4244 = vpack.c.b16 %v4205, %v4204
        %v4245 = vpack.c.b16 %v4207, %v4206
        %v4246 = vpack.c.b16 %v4209, %v4208
        %v4247 = vpack.c.b16 %v4211, %v4210
        %v4248 = vpack.c.b16 %v4213, %v4212
        %v4249 = vpack.c.b16 %v4215, %v4214
        %v4250 = vpack.c.b16 %v4217, %v4216
        %v4251 = vpack.c.b16 %v4219, %v4218
        %v4252 = vpack.c.b16 %v4221, %v4220
        %v4253 = vpack.c.b16 %v4223, %v4222
        %v4254 = vpack.c.b16 %v4225, %v4224
        %v4255 = vpack.c.b16 %v4227, %v4226
        %v4256 = vpack.c.b16 %v4229, %v4228
        %v4257 = vpack.c.b16 %v4231, %v4230
        %v4258 = vpack.c.b16 %v4233, %v4232
        %v4259 = vpack.c.b16 %v4235, %v4234
        %4284 = vmatprep.subr.bf16.mxu0 0
        %4285 = vmatpush1.bf16.msra.mxu0 %v4236
        %4286 = vmatprep.subr.bf16.mxu0 0
        %4287 = vmatpush1.bf16.msra.mxu0 %v4237
        %4288 = vmatprep.subr.bf16.mxu0 0
        %4289 = vmatpush1.bf16.msra.mxu0 %v4238
        %4290 = vmatprep.subr.bf16.mxu0 0
        %4291 = vmatpush1.bf16.msra.mxu0 %v4239
        %4292 = vmatprep.subr.bf16.mxu0 0
        %4293 = vmatpush1.bf16.msra.mxu0 %v4240
        %4294 = vmatprep.subr.bf16.mxu0 0
        %4295 = vmatpush1.bf16.msra.mxu0 %v4241
        %4296 = vmatprep.subr.bf16.mxu0 0
        %4297 = vmatpush1.bf16.msra.mxu0 %v4242
        %4298 = vmatprep.subr.bf16.mxu0 0
        %4299 = vmatpush1.bf16.msra.mxu0 %v4243
        %4300 = vmatprep.subr.bf16.mxu0 0
        %4301 = vmatpush1.bf16.msra.mxu0 %v4244
        %4302 = vmatprep.subr.bf16.mxu0 0
        %4303 = vmatpush1.bf16.msra.mxu0 %v4245
        %4304 = vmatprep.subr.bf16.mxu0 0
        %4305 = vmatpush1.bf16.msra.mxu0 %v4246
        %4306 = vmatprep.subr.bf16.mxu0 0
        %4307 = vmatpush1.bf16.msra.mxu0 %v4247
        %4308 = vmatprep.subr.bf16.mxu0 0
        %4309 = vmatpush1.bf16.msra.mxu0 %v4248
        %4310 = vmatprep.subr.bf16.mxu0 0
        %4311 = vmatpush1.bf16.msra.mxu0 %v4249
        %4312 = vmatprep.subr.bf16.mxu0 0
        %4313 = vmatpush1.bf16.msra.mxu0 %v4250
        %4314 = vmatprep.subr.bf16.mxu0 0
        %4315 = vmatpush1.bf16.msra.mxu0 %v4251
        %4316 = vmatprep.mubr.bf16.mxu0 %v2948
        %4317 = vmatmul.mubr.bf16.gmra.mrb[0].mxu0 %v2931
        %v4318 = vpop.f32.mrb[0].mxu0
        %v4319 = vadd.f32 0.0, %v4318
        %v4320 = vpop.f32.mrb[0].mxu0
        %v4321 = vpop.f32.mrb[0].mxu0
        %v4322 = vadd.f32 0.0, %v4321
        %v4323 = vpop.f32.mrb[0].mxu0
        %4324 = vmatprep.mubr.bf16.mxu0 %v2994
        %4325 = vmatmul.mubr.bf16.gmra.mrb[0].mxu0 %v2977
        %v4326 = vpop.f32.mrb[0].mxu0
        %v4327 = vadd.f32 0.0, %v4326
        %v4328 = vpop.f32.mrb[0].mxu0
        %v4329 = vpop.f32.mrb[0].mxu0
        %v4330 = vadd.f32 0.0, %v4329
        %v4331 = vpop.f32.mrb[0].mxu0
        %4332 = vmatprep.mubr.bf16.mxu0 %v3040
        %4333 = vmatmul.mubr.bf16.gmra.mrb[0].mxu0 %v3023
        %v4334 = vpop.f32.mrb[0].mxu0
        %v4335 = vadd.f32 0.0, %v4334
        %v4336 = vpop.f32.mrb[0].mxu0
        %v4337 = vpop.f32.mrb[0].mxu0
        %v4338 = vadd.f32 0.0, %v4337
        %v4339 = vpop.f32.mrb[0].mxu0
        %4340 = vmatprep.mubr.bf16.mxu0 %v3086
        %4341 = vmatmul.mubr.bf16.gmra.mrb[0].mxu0 %v3069
        %v4342 = vpop.f32.mrb[0].mxu0
        %v4343 = vadd.f32 0.0, %v4342
        %v4344 = vpop.f32.mrb[0].mxu0
        %v4345 = vpop.f32.mrb[0].mxu0
        %v4346 = vadd.f32 0.0, %v4345
        %v4347 = vpop.f32.mrb[0].mxu0
        %4348 = vmatprep.mubr.bf16.mxu0 %v3132
        %4349 = vmatmul.mubr.bf16.gmra.mrb[0].mxu0 %v3115
        %v4350 = vpop.f32.mrb[0].mxu0
        %v4351 = vadd.f32 0.0, %v4350
        %v4352 = vpop.f32.mrb[0].mxu0
        %v4353 = vpop.f32.mrb[0].mxu0
        %v4354 = vadd.f32 0.0, %v4353
        %v4355 = vpop.f32.mrb[0].mxu0
        %4356 = vmatprep.mubr.bf16.mxu0 %v3178
        %4357 = vmatmul.mubr.bf16.gmra.mrb[0].mxu0 %v3161
        %v4358 = vpop.f32.mrb[0].mxu0
        %v4359 = vadd.f32 0.0, %v4358
        %v4360 = vpop.f32.mrb[0].mxu0
        %v4361 = vpop.f32.mrb[0].mxu0
        %v4362 = vadd.f32 0.0, %v4361
        %v4363 = vpop.f32.mrb[0].mxu0
        %4364 = vmatprep.mubr.bf16.mxu0 %v3296
        %4365 = vmatmul.mubr.bf16.gmra.mrb[0].mxu0 %v3279
        %v4366 = vpop.f32.mrb[0].mxu0
        %v4367 = vadd.f32 0.0, %v4366
        %v4368 = vpop.f32.mrb[0].mxu0
        %v4369 = vpop.f32.mrb[0].mxu0
        %v4370 = vadd.f32 0.0, %v4369
        %v4371 = vpop.f32.mrb[0].mxu0
        %4372 = vmatprep.mubr.bf16.mxu0 %v4070
        %4373 = vmatmul.mubr.bf16.gmra.mrb[0].mxu0 %v4053
        %v4374 = vpop.f32.mrb[0].mxu0
        %v4375 = vadd.f32 0.0, %v4374
        %v4376 = vpop.f32.mrb[0].mxu0
        %v4377 = vpop.f32.mrb[0].mxu0
        %v4378 = vadd.f32 0.0, %v4377
        %v4379 = vpop.f32.mrb[0].mxu0
        %4380 = vdwg.mxu0
        %4381 = vmatprep.subr.bf16.mxu0 0
        %4382 = vmatpush1.bf16.msra.mxu0 %v4252
        %4383 = vmatprep.subr.bf16.mxu0 0
        %4384 = vmatpush1.bf16.msra.mxu0 %v4253
        %4385 = vmatprep.subr.bf16.mxu0 0
        %4386 = vmatpush1.bf16.msra.mxu0 %v4254
        %4387 = vmatprep.subr.bf16.mxu0 0
        %4388 = vmatpush1.bf16.msra.mxu0 %v4255
        %4389 = vmatprep.subr.bf16.mxu0 0
        %4390 = vmatpush1.bf16.msra.mxu0 %v4256
        %4391 = vmatprep.subr.bf16.mxu0 0
        %4392 = vmatpush1.bf16.msra.mxu0 %v4257
        %4393 = vmatprep.subr.bf16.mxu0 0
        %4394 = vmatpush1.bf16.msra.mxu0 %v4258
        %4395 = vmatprep.subr.bf16.mxu0 0
        %4396 = vmatpush1.bf16.msra.mxu0 %v4259
        %4397 = vmatprep.subr.bf16.mxu0 0
        %4398 = vmatpush1.bf16.msra.mxu0 0
        %4399 = vmatprep.subr.bf16.mxu0 0
        %4400 = vmatpush1.bf16.msra.mxu0 0
        %4401 = vmatprep.subr.bf16.mxu0 0
        %4402 = vmatpush1.bf16.msra.mxu0 0
        %4403 = vmatprep.subr.bf16.mxu0 0
        %4404 = vmatpush1.bf16.msra.mxu0 0
        %4405 = vmatprep.subr.bf16.mxu0 0
        %4406 = vmatpush1.bf16.msra.mxu0 0
        %4407 = vmatprep.subr.bf16.mxu0 0
        %4408 = vmatpush1.bf16.msra.mxu0 0
        %4409 = vmatprep.subr.bf16.mxu0 0
        %4410 = vmatpush1.bf16.msra.mxu0 0
        %4411 = vmatprep.subr.bf16.mxu0 0
        %4412 = vmatpush1.bf16.msra.mxu0 0
        %4413 = vmatprep.mubr.bf16.mxu0 0
        %4414 = vmatmul.mubr.bf16.gmra.mrb[0].mxu0 %v2965
        %v4415 = vpop.f32.mrb[0].mxu0
        %v4416 = vadd.f32 %v4319, %v4415
        %v4417 = vpop.f32.mrb[0].mxu0
        %v4418 = vpop.f32.mrb[0].mxu0
        %v4419 = vadd.f32 %v4322, %v4418
        %v4420 = vpop.f32.mrb[0].mxu0
        %4421 = vmatprep.mubr.bf16.mxu0 0
        %4422 = vmatmul.mubr.bf16.gmra.mrb[0].mxu0 %v3011
        %v4423 = vpop.f32.mrb[0].mxu0
        %v4424 = vadd.f32 %v4327, %v4423
        %v4425 = vpop.f32.mrb[0].mxu0
        %v4426 = vpop.f32.mrb[0].mxu0
        %v4427 = vadd.f32 %v4330, %v4426
        %v4428 = vpop.f32.mrb[0].mxu0
        %4429 = vmatprep.mubr.bf16.mxu0 0
        %4430 = vmatmul.mubr.bf16.gmra.mrb[0].mxu0 %v3057
        %v4431 = vpop.f32.mrb[0].mxu0
        %v4432 = vadd.f32 %v4335, %v4431
        %v4433 = vpop.f32.mrb[0].mxu0
        %v4434 = vpop.f32.mrb[0].mxu0
        %v4435 = vadd.f32 %v4338, %v4434
        %v4436 = vpop.f32.mrb[0].mxu0
        %4437 = vmatprep.mubr.bf16.mxu0 0
        %4438 = vmatmul.mubr.bf16.gmra.mrb[0].mxu0 %v3103
        %v4439 = vpop.f32.mrb[0].mxu0
        %v4440 = vadd.f32 %v4343, %v4439
        %v4441 = vpop.f32.mrb[0].mxu0
        %v4442 = vpop.f32.mrb[0].mxu0
        %v4443 = vadd.f32 %v4346, %v4442
        %v4444 = vpop.f32.mrb[0].mxu0
        %4445 = vmatprep.mubr.bf16.mxu0 0
        %4446 = vmatmul.mubr.bf16.gmra.mrb[0].mxu0 %v3149
        %v4447 = vpop.f32.mrb[0].mxu0
        %v4448 = vadd.f32 %v4351, %v4447
        %v4449 = vpop.f32.mrb[0].mxu0
        %v4450 = vpop.f32.mrb[0].mxu0
        %v4451 = vadd.f32 %v4354, %v4450
        %v4452 = vpop.f32.mrb[0].mxu0
        %4453 = vmatprep.mubr.bf16.mxu0 0
        %4454 = vmatmul.mubr.bf16.gmra.mrb[0].mxu0 %v3195
        %v4455 = vpop.f32.mrb[0].mxu0
        %v4456 = vadd.f32 %v4359, %v4455
        %v4457 = vpop.f32.mrb[0].mxu0
        %v4458 = vpop.f32.mrb[0].mxu0
        %v4459 = vadd.f32 %v4362, %v4458
        %v4460 = vpop.f32.mrb[0].mxu0
        %4461 = vmatprep.mubr.bf16.mxu0 0
        %4462 = vmatmul.mubr.bf16.gmra.mrb[0].mxu0 %v3313
        %v4463 = vpop.f32.mrb[0].mxu0
        %v4464 = vadd.f32 %v4367, %v4463
        %v4465 = vpop.f32.mrb[0].mxu0
        %v4466 = vpop.f32.mrb[0].mxu0
        %v4467 = vadd.f32 %v4370, %v4466
        %v4468 = vpop.f32.mrb[0].mxu0
        %4469 = vmatprep.mubr.bf16.mxu0 0
        %4470 = vmatmul.mubr.bf16.gmra.mrb[0].mxu0 %v4087
        %v4471 = vpop.f32.mrb[0].mxu0
        %v4472 = vadd.f32 %v4375, %v4471
        %v4473 = vpop.f32.mrb[0].mxu0
        %v4474 = vpop.f32.mrb[0].mxu0
        %v4475 = vadd.f32 %v4378, %v4474
        %v4476 = vpop.f32.mrb[0].mxu0
        %4477 = vdwg.mxu0
        %v4478 = vadd.f32 %v3980, %v4416
        %v4479 = vadd.f32 %v3983, %v4419
        %v4480 = vadd.f32 %v3988, %v4424
        %v4481 = vadd.f32 %v3991, %v4427
        %v4482 = vadd.f32 %v3996, %v4432
        %v4483 = vadd.f32 %v3999, %v4435
        %v4484 = vadd.f32 %v4004, %v4440
        %v4485 = vadd.f32 %v4007, %v4443
        %v4486 = vadd.f32 %v4012, %v4448
        %v4487 = vadd.f32 %v4015, %v4451
        %v4488 = vadd.f32 %v4020, %v4456
        %v4489 = vadd.f32 %v4023, %v4459
        %v4490 = vadd.f32 %v4028, %v4464
        %v4491 = vadd.f32 %v4031, %v4467
        %v4492 = vadd.f32 %v4036, %v4472
        %v4493 = vadd.f32 %v4039, %v4475
        %v4494 = vld [vmem:[%s4] sm:$0x1]
        %v4496 = vlaneseq
        %v4497 = vshrl.u32 %v4496, 7
        %v4498 = vsub.s32 0, %v4497
        %v4499 = vrot.slane %v4494, %v4498
        %v4501 = vadd.f32 %v4478, %v4499
        %v4502 = vadd.f32 %v4479, %v4499
        %v4503 = vadd.f32 %v4480, %v4499
        %v4504 = vadd.f32 %v4481, %v4499
        %v4505 = vadd.f32 %v4482, %v4499
        %v4506 = vadd.f32 %v4483, %v4499
        %v4507 = vadd.f32 %v4484, %v4499
        %v4508 = vadd.f32 %v4485, %v4499
        %v4509 = vadd.f32 %v4486, %v4499
        %v4510 = vadd.f32 %v4487, %v4499
        %v4511 = vadd.f32 %v4488, %v4499
        %v4512 = vadd.f32 %v4489, %v4499
        %v4513 = vadd.f32 %v4490, %v4499
        %v4514 = vadd.f32 %v4491, %v4499
        %v4515 = vadd.f32 %v4492, %v4499
        %v4516 = vadd.f32 %v4493, %v4499
        %s4517 = sadd.s32 %s288, 2
        %s4518 = smul.u32 %s4517, 4
        %s4519 = smul.addr %s4518, 4
        %s4520 = scalar_lea.vmem %s251, %s4519 [#allocation3]
        %v4521 = vld [vmem:[%s4520 + $0x4] sm:$0xf]
        %v4522 = vld [vmem:[%s4520 + $0x8] sm:$0xf]
        %v4523 = vld [vmem:[%s4520 + $0x14] sm:$0xf]
        %v4524 = vld [vmem:[%s4520 + $0x18] sm:$0xf]
        %v4525 = vld [vmem:[%s4520 + $0x24] sm:$0xf]
        %v4526 = vld [vmem:[%s4520 + $0x28] sm:$0xf]
        %v4527 = vld [vmem:[%s4520 + $0x34] sm:$0xf]
        %v4528 = vld [vmem:[%s4520 + $0x38] sm:$0xf]
        %v4529 = vld [vmem:[%s4520 + $0x44] sm:$0xf]
        %v4530 = vld [vmem:[%s4520 + $0x48] sm:$0xf]
        %v4531 = vld [vmem:[%s4520 + $0x54] sm:$0xf]
        %v4532 = vld [vmem:[%s4520 + $0x58] sm:$0xf]
        %v4533 = vld [vmem:[%s4520 + $0x64] sm:$0xf]
        %v4534 = vld [vmem:[%s4520 + $0x68] sm:$0xf]
        %v4535 = vld [vmem:[%s4520 + $0x74] sm:$0xf]
        %v4536 = vld [vmem:[%s4520 + $0x78] sm:$0xf]
        %v4537 = vunpack.c.l.bf16 %v4521
        %v4538 = vunpack.c.l.bf16 %v4522
        %v4539 = vunpack.c.l.bf16 %v4523
        %v4540 = vunpack.c.l.bf16 %v4524
        %v4541 = vunpack.c.l.bf16 %v4525
        %v4542 = vunpack.c.l.bf16 %v4526
        %v4543 = vunpack.c.l.bf16 %v4527
        %v4544 = vunpack.c.l.bf16 %v4528
        %v4545 = vunpack.c.l.bf16 %v4529
        %v4546 = vunpack.c.l.bf16 %v4530
        %v4547 = vunpack.c.l.bf16 %v4531
        %v4548 = vunpack.c.l.bf16 %v4532
        %v4549 = vunpack.c.l.bf16 %v4533
        %v4550 = vunpack.c.l.bf16 %v4534
        %v4551 = vunpack.c.l.bf16 %v4535
        %v4552 = vunpack.c.l.bf16 %v4536
        %v4553 = vadd.f32 %v4501, %v4537
        %v4554 = vadd.f32 %v4502, %v4538
        %v4555 = vadd.f32 %v4503, %v4539
        %v4556 = vadd.f32 %v4504, %v4540
        %v4557 = vadd.f32 %v4505, %v4541
        %v4558 = vadd.f32 %v4506, %v4542
        %v4559 = vadd.f32 %v4507, %v4543
        %v4560 = vadd.f32 %v4508, %v4544
        %v4561 = vadd.f32 %v4509, %v4545
        %v4562 = vadd.f32 %v4510, %v4546
        %v4563 = vadd.f32 %v4511, %v4547
        %v4564 = vadd.f32 %v4512, %v4548
        %v4565 = vadd.f32 %v4513, %v4549
        %v4566 = vadd.f32 %v4514, %v4550
        %v4567 = vadd.f32 %v4515, %v4551
        %v4568 = vadd.f32 %v4516, %v4552
        %v4569 = vmax.f32 %v4553, 0.0
        %v4570 = vmax.f32 %v4554, 0.0
        %v4571 = vmax.f32 %v4555, 0.0
        %v4572 = vmax.f32 %v4556, 0.0
        %v4573 = vmax.f32 %v4557, 0.0
        %v4574 = vmax.f32 %v4558, 0.0
        %v4575 = vmax.f32 %v4559, 0.0
        %v4576 = vmax.f32 %v4560, 0.0
        %v4577 = vmax.f32 %v4561, 0.0
        %v4578 = vmax.f32 %v4562, 0.0
        %v4579 = vmax.f32 %v4563, 0.0
        %v4580 = vmax.f32 %v4564, 0.0
        %v4581 = vmax.f32 %v4565, 0.0
        %v4582 = vmax.f32 %v4566, 0.0
        %v4583 = vmax.f32 %v4567, 0.0
        %v4584 = vmax.f32 %v4568, 0.0
        %v4585 = vpack.c.bf16 %v4570, %v4569
        %v4586 = vpack.c.bf16 %v4572, %v4571
        %v4587 = vpack.c.bf16 %v4574, %v4573
        %v4588 = vpack.c.bf16 %v4576, %v4575
        %v4589 = vpack.c.bf16 %v4578, %v4577
        %v4590 = vpack.c.bf16 %v4580, %v4579
        %v4591 = vpack.c.bf16 %v4582, %v4581
        %v4592 = vpack.c.bf16 %v4584, %v4583
        %v4601 = vunpack.c.l.b16 %v4585
        %v4602 = vunpack.c.h.b16 %v4585
        %v4603 = vunpack.c.l.b16 %v4586
        %v4604 = vunpack.c.h.b16 %v4586
        %v4605 = vunpack.c.l.b16 %v4587
        %v4606 = vunpack.c.h.b16 %v4587
        %v4607 = vunpack.c.l.b16 %v4588
        %v4608 = vunpack.c.h.b16 %v4588
        %v4609 = vunpack.c.l.b16 %v4589
        %v4610 = vunpack.c.h.b16 %v4589
        %v4611 = vunpack.c.l.b16 %v4590
        %v4612 = vunpack.c.h.b16 %v4590
        %v4613 = vunpack.c.l.b16 %v4591
        %v4614 = vunpack.c.h.b16 %v4591
        %v4615 = vunpack.c.l.b16 %v4592
        %v4616 = vunpack.c.h.b16 %v4592
        %v4617 = vpack.c.b16 %v4601, %v4601
        %v4618 = vpack.c.b16 %v4602, %v4602
        %v4619 = vpack.c.b16 %v4603, %v4603
        %v4620 = vpack.c.b16 %v4604, %v4604
        %v4621 = vpack.c.b16 %v4605, %v4605
        %v4622 = vpack.c.b16 %v4606, %v4606
        %v4623 = vpack.c.b16 %v4607, %v4607
        %v4624 = vpack.c.b16 %v4608, %v4608
        %v4625 = vpack.c.b16 %v4609, %v4609
        %v4626 = vpack.c.b16 %v4610, %v4610
        %v4627 = vpack.c.b16 %v4611, %v4611
        %v4628 = vpack.c.b16 %v4612, %v4612
        %v4629 = vpack.c.b16 %v4613, %v4613
        %v4630 = vpack.c.b16 %v4614, %v4614
        %v4631 = vpack.c.b16 %v4615, %v4615
        %v4632 = vpack.c.b16 %v4616, %v4616
        %4649 = vst [vmem:[%s285] sm:$0xf] %v4617
        %4650 = vst [vmem:[%s285 + $0x4] sm:$0xf] %v4618
        %4651 = vst [vmem:[%s285 + $0x8] sm:$0xf] %v4619
        %4652 = vst [vmem:[%s285 + $0xc] sm:$0xf] %v4620
        %4653 = vst [vmem:[%s285 + $0x10] sm:$0xf] %v4621
        %4654 = vst [vmem:[%s285 + $0x14] sm:$0xf] %v4622
        %4655 = vst [vmem:[%s285 + $0x18] sm:$0xf] %v4623
        %4656 = vst [vmem:[%s285 + $0x1c] sm:$0xf] %v4624
        %4657 = vst [vmem:[%s285 + $0x20] sm:$0xf] %v4625
        %4658 = vst [vmem:[%s285 + $0x24] sm:$0xf] %v4626
        %4659 = vst [vmem:[%s285 + $0x28] sm:$0xf] %v4627
        %4660 = vst [vmem:[%s285 + $0x2c] sm:$0xf] %v4628
        %4661 = vst [vmem:[%s285 + $0x30] sm:$0xf] %v4629
        %4662 = vst [vmem:[%s285 + $0x34] sm:$0xf] %v4630
        %4663 = vst [vmem:[%s285 + $0x38] sm:$0xf] %v4631
        %4664 = vst [vmem:[%s285 + $0x3c] sm:$0xf] %v4632
        %s4665 = sand.u32 %s155, 1
        %s4666 = scalar_lea.sflag [#allocation5], %s4665
        %s4667 = sand.u32 %s155, 1
        %s4668 = smul.addr %s4667, 64
        %s4669 = scalar_lea.vmem [#allocation9], %s4668
        // Predicated region
        $region61: #{tpu_custom_call.1} parent=39 // pred_check
          %p4670 = pneg %p165
        $region62: #{tpu_custom_call.1} parent=39 // pred_check_branch
          %4672 = sbr.rel (%p4670) target = $region64
        $region63: #{tpu_custom_call.1} parent=39 // pred_region
          %s4673 = smul.u32 8, %s28
          %s4675 = ssub.s32 1024, 1024
          %4676 = vsyncadd %s4666, %s4675
          %s4677 = smul.addr %s4673, 2
          %s4678 = smul.addr %s27, 32
          %s4679 = sadd.s32 %s4677, %s4678
          %s4680 = smul.addr %s4679, 64
          %s4681 = scalar_lea.hbm %s5, %s4680
          %s4682 = sshll.u32 %s4669, 4
          %s4683 = int_to_ptr.vmem [resolvable:$true] %s4682
          %4688 = dma.vmem_to_hbm [thread:$0]  %s4683, 1024, %s4681, %s4666, 64, 64, 4
        $region64: #{tpu_custom_call.1} parent=39 // pred_fallthru
          _
      $region40: #{tpu_custom_call.1} parent=5 // pred_fallthru
        _
      %p4689 = scmp.le.s32.totalorder 2, %s18
      // Predicated region
      $region65: #{tpu_custom_call.1} parent=5 // pred_check
        %p4690 = pneg %p4689
      $region66: #{tpu_custom_call.1} parent=5 // pred_check_branch
        %4692 = sbr.rel (%p4690) target = $region68
      $region67: #{tpu_custom_call.1} parent=5 // pred_region
        %s4693 = ssub.s32 %s18, 2
        // Predicated region
        $region69: #{tpu_custom_call.1} parent=67 // pred_check
          %p4694 = pneg %p171
        $region70: #{tpu_custom_call.1} parent=67 // pred_check_branch
          %4696 = sbr.rel (%p4694) target = $region72
        $region71: #{tpu_custom_call.1} parent=67 // pred_region
          %s4697 = sand.u32 %s156, 1
          %s4698 = scalar_lea.sflag [#allocation5], %s4697
          %s4699 = sand.u32 %s156, 1
          %s4700 = smul.addr %s4699, 64
          %s4701 = scalar_lea.vmem [#allocation9], %s4700
          %4702 = dma.done %s4698, 1024
        $region72: #{tpu_custom_call.1} parent=67 // pred_fallthru
          _
      $region68: #{tpu_custom_call.1} parent=5 // pred_fallthru
        _
    $region6: #{tpu_custom_call.1} parent=1 // loop_footer
      %s22 = sadd.s32 1, %s18
    $region7: #{tpu_custom_call.1} parent=1 // loop_footer_branch
      %17 = sbr.rel target = $region3
    $region8: #{tpu_custom_call.1} parent=1 // loop_exit
      _
    %4703 = vsyncpa [#allocation4], 1
    %s4704 = scalar_lea.sflag [#allocation4], 1
    %4705 = vsyncpa %s4704, 1
    %4706 = vsyncpa [#allocation7], 1
    %4707 = vsyncpa [#allocation5], 1
    %s4708 = scalar_lea.sflag [#allocation5], 1
    %4709 = vsyncpa %s4708, 1

</llo_original>
